<compile_context>
chip_gen: v5e
topology: v5e:2x2
jax: 0.10.0
libtpu: 0.0.40
codegen_flags: <defaults>
</compile_context>

<pallas_src>
import jax
import jax.numpy as jnp
from jax.experimental import pallas as pl
from jax.experimental.pallas import tpu as pltpu


# ---------------------------------------------------------------------------
# 2D sin-cos positional embedding (get_2d_sincos_pos_embed), frozen parameter.
# ---------------------------------------------------------------------------
def _get_1d_sincos(embed_dim, pos):
    omega = jnp.arange(embed_dim // 2, dtype=jnp.float32) / (embed_dim / 2.0)
    omega = 1.0 / (10000.0 ** omega)
    pos = pos.reshape(-1)
    out = jnp.einsum("m,d->md", pos, omega)
    return jnp.concatenate([jnp.sin(out), jnp.cos(out)], axis=1)


def get_2d_sincos_pos_embed(embed_dim, grid_size):
    grid_h = jnp.arange(grid_size, dtype=jnp.float32)
    grid_w = jnp.arange(grid_size, dtype=jnp.float32)
    gw, gh = jnp.meshgrid(grid_w, grid_h)          # w varies fastest
    emb_h = _get_1d_sincos(embed_dim // 2, gw)
    emb_w = _get_1d_sincos(embed_dim // 2, gh)
    return jnp.concatenate([emb_h, emb_w], axis=1)  # (grid_size**2, embed_dim)


def round_up(x, m):
    return ((x + m - 1) // m) * m


# ---------------------------------------------------------------------------
# Fused kernel: grid = (depth,).
#   step l: run transformer layer l on all B*N token rows.
#   l == 0        : input Linear + pos-embed -> VMEM activation scratch
#   l == depth-1  : final LayerNorm -> output
# ---------------------------------------------------------------------------
def make_base_encoder_kernel(B, N, depth, num_heads, shortnum, eps=1e-5):
    def kernel(x_ref, lin_w_ref, lin_b_ref, pos_ref,
               ln1_w_ref, ln1_b_ref, qkv_w_ref, qkv_b_ref,
               proj_w_ref, proj_b_ref, ln2_w_ref, ln2_b_ref,
               fc1_w_ref, fc1_b_ref, fc2_w_ref, fc2_b_ref,
               fn_w_ref, fn_b_ref,
               o_ref,
               x_sc, short_sc):
        l = pl.program_id(0)                 # transformer layer index
        D = lin_w_ref.shape[1]
        H = num_heads
        hd = D // H
        scale = 1.0 / float(hd) ** 0.5
        BN = B * N
        in_pad = x_ref.shape[2]

        def layer_norm(v, w, b):
            # single-pass LN: mean and E[x^2] computed together.
            mu = jnp.mean(v, axis=-1, keepdims=True)
            msq = jnp.mean(v * v, axis=-1, keepdims=True)
            var = msq - mu * mu
            return (v - mu) * jax.lax.rsqrt(var + eps) * w + b

        # ---- entry (only on first grid step): input Linear + pos-embed -----
        @pl.when(l == 0)
        def _():
            x0 = x_ref[...].reshape(BN, in_pad)
            h = jnp.dot(x0, lin_w_ref[...],
                        preferred_element_type=jnp.float32) + lin_b_ref[...]
            h = (h.reshape(B, N, D) + pos_ref[...][None]).reshape(BN, D)
            x_sc[...] = h
            short_sc[...] = h

        # ---- transformer block `l` (this layer's weights streamed in) ------
        x = x_sc[...]
        y = layer_norm(x, ln1_w_ref[0, 0], ln1_b_ref[0, 0])
        qkv = jnp.dot(y, qkv_w_ref[0],
                      preferred_element_type=jnp.float32) + qkv_b_ref[0, 0]

        attn_rows = []
        for b in range(B):                   # B is tiny & static; unrolled
            qkv_b = qkv[b * N:(b + 1) * N]
            # fold softmax scale into q (cheaper than scaling the (H,N,N) map)
            q = qkv_b[:, 0:D].reshape(N, H, hd) * scale
            k = qkv_b[:, D:2 * D].reshape(N, H, hd)
            v = qkv_b[:, 2 * D:3 * D].reshape(N, H, hd)
            att = jnp.einsum("qhd,khd->hqk", q, k,
                             preferred_element_type=jnp.float32)
            att = att - jnp.max(att, axis=-1, keepdims=True)
            att = jnp.exp(att)
            # approx reciprocal -> EUP slot (free vs. VALU Newton sequence)
            att = att * pl.reciprocal(jnp.sum(att, axis=-1, keepdims=True),
                                      approx=True)
            ob = jnp.einsum("hqk,khd->qhd", att, v,
                            preferred_element_type=jnp.float32).reshape(N, D)
            attn_rows.append(ob)
        ao = jnp.concatenate(attn_rows, axis=0)                 # (B*N, D)
        ao = jnp.dot(ao, proj_w_ref[0],
                     preferred_element_type=jnp.float32) + proj_b_ref[0, 0]
        x = x + ao

        y = layer_norm(x, ln2_w_ref[0, 0], ln2_b_ref[0, 0])
        y = jnp.dot(y, fc1_w_ref[0],
                    preferred_element_type=jnp.float32) + fc1_b_ref[0, 0]
        y = jax.nn.gelu(y, approximate=True)
        y = jnp.dot(y, fc2_w_ref[0],
                    preferred_element_type=jnp.float32) + fc2_b_ref[0, 0]
        x = x + y
        x_sc[...] = x

        # TODO(synk): BaseT_shortcut internals unavailable; emulate the
        # shortnum-grouped accumulated shortcut (matches the JAX reference).
        @pl.when((l + 1) % shortnum == 0)
        def _():
            xs = x_sc[...] + short_sc[...]
            x_sc[...] = xs
            short_sc[...] = xs

        # ---- exit (last grid step): final LayerNorm -> token output --------
        @pl.when(l == depth - 1)
        def _():
            o_ref[...] = layer_norm(x_sc[...], fn_w_ref[...], fn_b_ref[...])

    return kernel


# ---------------------------------------------------------------------------
# Wrapper: one pallas_call, per-layer weight streaming via BlockSpec.
# ---------------------------------------------------------------------------
def base_encoder_forward(x, p, depth, num_heads, shortnum):
    B, N, in_dim = x.shape
    D = p["lin_w"].shape[1]
    in_pad = round_up(in_dim, 8)

    x_pad = jnp.pad(x, ((0, 0), (0, 0), (0, in_pad - in_dim)))
    lin_w = jnp.pad(p["lin_w"], ((0, in_pad - in_dim), (0, 0)))

    def spec_shared(arr):
        nd = arr.ndim
        return pl.BlockSpec(arr.shape, lambda l, _nd=nd: (0,) * _nd)

    def spec_per_layer(arr):
        nd = arr.ndim
        return pl.BlockSpec((1,) + arr.shape[1:],
                            lambda l, _nd=nd: (l,) + (0,) * (_nd - 1))

    args_specs = [
        (x_pad, spec_shared(x_pad)),
        (lin_w, spec_shared(lin_w)),
        (p["lin_b"], spec_shared(p["lin_b"])),
        (p["pos"], spec_shared(p["pos"])),
        (p["ln1_w"], spec_per_layer(p["ln1_w"])),
        (p["ln1_b"], spec_per_layer(p["ln1_b"])),
        (p["qkv_w"], spec_per_layer(p["qkv_w"])),
        (p["qkv_b"], spec_per_layer(p["qkv_b"])),
        (p["proj_w"], spec_per_layer(p["proj_w"])),
        (p["proj_b"], spec_per_layer(p["proj_b"])),
        (p["ln2_w"], spec_per_layer(p["ln2_w"])),
        (p["ln2_b"], spec_per_layer(p["ln2_b"])),
        (p["fc1_w"], spec_per_layer(p["fc1_w"])),
        (p["fc1_b"], spec_per_layer(p["fc1_b"])),
        (p["fc2_w"], spec_per_layer(p["fc2_w"])),
        (p["fc2_b"], spec_per_layer(p["fc2_b"])),
        (p["fn_w"], spec_shared(p["fn_w"])),
        (p["fn_b"], spec_shared(p["fn_b"])),
    ]
    args = [a for a, _ in args_specs]
    in_specs = [spec for _, spec in args_specs]

    kernel = make_base_encoder_kernel(B, N, depth, num_heads, shortnum)

    out = pl.pallas_call(
        kernel,
        out_shape=jax.ShapeDtypeStruct((B * N, D), jnp.float32),
        grid=(depth,),
        in_specs=in_specs,
        out_specs=pl.BlockSpec((B * N, D), lambda l: (0, 0)),
        scratch_shapes=[
            pltpu.VMEM((B * N, D), jnp.float32),   # activation accumulator
            pltpu.VMEM((B * N, D), jnp.float32),   # accumulated shortcut
        ],
        compiler_params=pltpu.CompilerParams(
            dimension_semantics=("arbitrary",),
            vmem_limit_bytes=64 * 1024 * 1024),
    )(*args)
    return out.reshape(B, N, D)


# ---------------------------------------------------------------------------
# Deterministic parameter construction (synthetic; no checkpoint load).
# ---------------------------------------------------------------------------
def _rnd(key, shape, scale=0.02):
    return jax.random.normal(key, shape, jnp.float32) * scale


def init_params(key, in_dim, D, depth, mlp_hidden, N):
    ks = jax.random.split(key, 10)
    p = {}
    p["lin_w"] = _rnd(ks[0], (in_dim, D))
    p["lin_b"] = _rnd(ks[1], (1, D))
    p["pos"] = get_2d_sincos_pos_embed(D, int(N ** 0.5)).astype(jnp.float32)
    p["ln1_w"] = jnp.ones((depth, 1, D), jnp.float32)
    p["ln1_b"] = jnp.zeros((depth, 1, D), jnp.float32)
    p["qkv_w"] = _rnd(ks[2], (depth, D, 3 * D))
    p["qkv_b"] = _rnd(ks[3], (depth, 1, 3 * D))
    p["proj_w"] = _rnd(ks[4], (depth, D, D))
    p["proj_b"] = _rnd(ks[5], (depth, 1, D))
    p["ln2_w"] = jnp.ones((depth, 1, D), jnp.float32)
    p["ln2_b"] = jnp.zeros((depth, 1, D), jnp.float32)
    p["fc1_w"] = _rnd(ks[6], (depth, D, mlp_hidden))
    p["fc1_b"] = _rnd(ks[7], (depth, 1, mlp_hidden))
    p["fc2_w"] = _rnd(ks[8], (depth, mlp_hidden, D))
    p["fc2_b"] = _rnd(ks[9], (depth, 1, D))
    p["fn_w"] = jnp.ones((1, D), jnp.float32)
    p["fn_b"] = jnp.zeros((1, D), jnp.float32)
    return p


# ---------------------------------------------------------------------------
# Pure-JAX reference (same math) for validation.
# ---------------------------------------------------------------------------
def base_encoder_reference(x, p, depth, num_heads, shortnum, eps=1e-5):
    D = p["lin_w"].shape[1]
    hd = D // num_heads

    def ln(v, w, b):
        mu = v.mean(-1, keepdims=True)
        var = ((v - mu) ** 2).mean(-1, keepdims=True)
        return (v - mu) / jnp.sqrt(var + eps) * w + b

    h = x @ p["lin_w"] + p["lin_b"][0]
    h = h + p["pos"][None]
    short = h
    for l in range(depth):
        y = ln(h, p["ln1_w"][l, 0], p["ln1_b"][l, 0])
        qkv = y @ p["qkv_w"][l] + p["qkv_b"][l, 0]
        B, N, _ = qkv.shape
        q = qkv[..., :D].reshape(B, N, num_heads, hd)
        k = qkv[..., D:2 * D].reshape(B, N, num_heads, hd)
        v = qkv[..., 2 * D:].reshape(B, N, num_heads, hd)
        att = jnp.einsum("bqhd,bkhd->bhqk", q, k) / jnp.sqrt(float(hd))
        att = jax.nn.softmax(att, axis=-1)
        ao = jnp.einsum("bhqk,bkhd->bqhd", att, v).reshape(B, N, D)
        h = h + ao @ p["proj_w"][l] + p["proj_b"][l, 0]
        y = ln(h, p["ln2_w"][l, 0], p["ln2_b"][l, 0])
        y = jax.nn.gelu(y @ p["fc1_w"][l] + p["fc1_b"][l, 0], approximate=True)
        h = h + y @ p["fc2_w"][l] + p["fc2_b"][l, 0]
        if (l + 1) % shortnum == 0:
            h = h + short
            short = h
    return ln(h, p["fn_w"][0], p["fn_b"][0])


# ---------------------------------------------------------------------------
if __name__ == "__main__":
    B = 2
    num_patches = 16          # 4x4 grid for the 2D sincos pos-embed
    in_dim = 4
    encoder_dim = 32
    encoder_depth = 2
    encoder_num_heads = 4
    shortnum = 2
    mlp_hidden = 4 * encoder_dim

    key = jax.random.PRNGKey(0)
    kp, kx = jax.random.split(key)
    params = init_params(kp, in_dim, encoder_dim, encoder_depth,
                         mlp_hidden, num_patches)
    x = jax.random.normal(kx, (B, num_patches, in_dim), jnp.float32)

    out = base_encoder_forward(x, params, encoder_depth, encoder_num_heads,
                               shortnum)
    out = jax.block_until_ready(out)

    # Validate against the pure-JAX reference.
    ref = base_encoder_reference(x, params, encoder_depth, encoder_num_heads,
                                 shortnum)
    assert out.shape == (B, num_patches, encoder_dim), out.shape
    max_err = float(jnp.max(jnp.abs(out - ref)))
    assert jnp.allclose(out, ref, atol=5e-4, rtol=5e-4), max_err
    print("KERNEL_OK")
</pallas_src>

<mosaic_0001>
module attributes {stable_mosaic.version = 11 : i64} {
  func.func @kernel(%arg0: i32, %arg1: memref<2x16x8xf32, #tpu.memory_space<vmem>>, %arg2: memref<8x32xf32, #tpu.memory_space<vmem>>, %arg3: memref<1x32xf32, #tpu.memory_space<vmem>>, %arg4: memref<16x32xf32, #tpu.memory_space<vmem>>, %arg5: memref<1x1x32xf32, #tpu.memory_space<vmem>>, %arg6: memref<1x1x32xf32, #tpu.memory_space<vmem>>, %arg7: memref<1x32x96xf32, #tpu.memory_space<vmem>>, %arg8: memref<1x1x96xf32, #tpu.memory_space<vmem>>, %arg9: memref<1x32x32xf32, #tpu.memory_space<vmem>>, %arg10: memref<1x1x32xf32, #tpu.memory_space<vmem>>, %arg11: memref<1x1x32xf32, #tpu.memory_space<vmem>>, %arg12: memref<1x1x32xf32, #tpu.memory_space<vmem>>, %arg13: memref<1x32x128xf32, #tpu.memory_space<vmem>>, %arg14: memref<1x1x128xf32, #tpu.memory_space<vmem>>, %arg15: memref<1x128x32xf32, #tpu.memory_space<vmem>>, %arg16: memref<1x1x32xf32, #tpu.memory_space<vmem>>, %arg17: memref<1x32xf32, #tpu.memory_space<vmem>>, %arg18: memref<1x32xf32, #tpu.memory_space<vmem>>, %arg19: memref<32x32xf32, #tpu.memory_space<vmem>>, %arg20: memref<32x32xf32, #tpu.memory_space<vmem>>, %arg21: memref<32x32xf32, #tpu.memory_space<vmem>>) attributes {dimension_semantics = [#tpu.dimension_semantics<arbitrary>], iteration_bounds = array<i64: 2>, scalar_prefetch = 0 : i64, scratch_operands = 2 : i64, tpu.core_type = #tpu.core_type<tc>, window_params = [{pipeline_mode = #tpu.pipeline_mode<synchronous>, transform_indices = @transform_0, window_bounds = array<i64: 2, 16, 8>}, {pipeline_mode = #tpu.pipeline_mode<synchronous>, transform_indices = @transform_1, window_bounds = array<i64: 8, 32>}, {pipeline_mode = #tpu.pipeline_mode<synchronous>, transform_indices = @transform_2, window_bounds = array<i64: 1, 32>}, {pipeline_mode = #tpu.pipeline_mode<synchronous>, transform_indices = @transform_3, window_bounds = array<i64: 16, 32>}, {transform_indices = @transform_4, window_bounds = array<i64: 1, 1, 32>}, {transform_indices = @transform_5, window_bounds = array<i64: 1, 1, 32>}, {transform_indices = @transform_6, window_bounds = array<i64: 1, 32, 96>}, {transform_indices = @transform_7, window_bounds = array<i64: 1, 1, 96>}, {transform_indices = @transform_8, window_bounds = array<i64: 1, 32, 32>}, {transform_indices = @transform_9, window_bounds = array<i64: 1, 1, 32>}, {transform_indices = @transform_10, window_bounds = array<i64: 1, 1, 32>}, {transform_indices = @transform_11, window_bounds = array<i64: 1, 1, 32>}, {transform_indices = @transform_12, window_bounds = array<i64: 1, 32, 128>}, {transform_indices = @transform_13, window_bounds = array<i64: 1, 1, 128>}, {transform_indices = @transform_14, window_bounds = array<i64: 1, 128, 32>}, {transform_indices = @transform_15, window_bounds = array<i64: 1, 1, 32>}, {pipeline_mode = #tpu.pipeline_mode<synchronous>, transform_indices = @transform_16, window_bounds = array<i64: 1, 32>}, {pipeline_mode = #tpu.pipeline_mode<synchronous>, transform_indices = @transform_17, window_bounds = array<i64: 1, 32>}, {pipeline_mode = #tpu.pipeline_mode<synchronous>, transform_indices = @transform_18, window_bounds = array<i64: 32, 32>}]} {
    %c0_i32 = arith.constant 0 : i32
    %0 = arith.cmpi eq, %arg0, %c0_i32 : i32
    %1 = arith.extui %0 : i1 to i32
    %c0_i32_0 = arith.constant 0 : i32
    %2 = arith.cmpi ne, %1, %c0_i32_0 : i32
    scf.if %2 {
      %c0_76 = arith.constant 0 : index
      %c0_77 = arith.constant 0 : index
      %c0_78 = arith.constant 0 : index
      %172 = vector.load %arg1[%c0_76, %c0_77, %c0_78] : memref<2x16x8xf32, #tpu.memory_space<vmem>>, vector<2x16x8xf32>
      %173 = vector.shape_cast %172 : vector<2x16x8xf32> to vector<32x8xf32>
      %c0_79 = arith.constant 0 : index
      %c0_80 = arith.constant 0 : index
      %174 = vector.load %arg2[%c0_79, %c0_80] : memref<8x32xf32, #tpu.memory_space<vmem>>, vector<8x32xf32>
      %cst_81 = arith.constant dense<0.000000e+00> : vector<32x32xf32>
      %175 = tpu.matmul %173, %174, %cst_81 {dimension_numbers = #tpu.dot_dimension_numbers<[1], [0], [0], [1], [0, 0, 1, 1], [], []>} : vector<32x8xf32>, vector<8x32xf32>, vector<32x32xf32> -> vector<32x32xf32>
      %c0_82 = arith.constant 0 : index
      %c0_83 = arith.constant 0 : index
      %176 = vector.load %arg3[%c0_82, %c0_83] : memref<1x32xf32, #tpu.memory_space<vmem>>, vector<1x32xf32>
      %177 = vector.broadcast %176 : vector<1x32xf32> to vector<32x32xf32>
      %178 = arith.addf %175, %177 : vector<32x32xf32>
      %179 = vector.shape_cast %178 : vector<32x32xf32> to vector<2x16x32xf32>
      %c0_84 = arith.constant 0 : index
      %c0_85 = arith.constant 0 : index
      %180 = vector.load %arg4[%c0_84, %c0_85] : memref<16x32xf32, #tpu.memory_space<vmem>>, vector<16x32xf32>
      %181 = vector.shape_cast %180 : vector<16x32xf32> to vector<1x16x32xf32>
      %182 = vector.broadcast %181 : vector<1x16x32xf32> to vector<2x16x32xf32>
      %183 = arith.addf %179, %182 : vector<2x16x32xf32>
      %184 = vector.shape_cast %183 : vector<2x16x32xf32> to vector<32x32xf32>
      %c0_86 = arith.constant 0 : index
      %c0_87 = arith.constant 0 : index
      %185 = vector.load %arg20[%c0_86, %c0_87] : memref<32x32xf32, #tpu.memory_space<vmem>>, vector<32x32xf32>
      tpu.vector_store %arg20[%c0_86, %c0_87], %184 {strides = array<i32>} : memref<32x32xf32, #tpu.memory_space<vmem>>, vector<32x32xf32>,
      %c0_88 = arith.constant 0 : index
      %c0_89 = arith.constant 0 : index
      %186 = vector.load %arg21[%c0_88, %c0_89] : memref<32x32xf32, #tpu.memory_space<vmem>>, vector<32x32xf32>
      tpu.vector_store %arg21[%c0_88, %c0_89], %184 {strides = array<i32>} : memref<32x32xf32, #tpu.memory_space<vmem>>, vector<32x32xf32>,
    } else {
    }
    %c0 = arith.constant 0 : index
    %c0_1 = arith.constant 0 : index
    %3 = vector.load %arg20[%c0, %c0_1] : memref<32x32xf32, #tpu.memory_space<vmem>>, vector<32x32xf32>
    %c0_2 = arith.constant 0 : index
    %c0_3 = arith.constant 0 : index
    %c0_4 = arith.constant 0 : index
    %4 = vector.load %arg5[%c0_2, %c0_3, %c0_4] : memref<1x1x32xf32, #tpu.memory_space<vmem>>, vector<1x1x32xf32>
    %5 = vector.shape_cast %4 : vector<1x1x32xf32> to vector<32xf32>
    %c0_5 = arith.constant 0 : index
    %c0_6 = arith.constant 0 : index
    %c0_7 = arith.constant 0 : index
    %6 = vector.load %arg6[%c0_5, %c0_6, %c0_7] : memref<1x1x32xf32, #tpu.memory_space<vmem>>, vector<1x1x32xf32>
    %7 = vector.shape_cast %6 : vector<1x1x32xf32> to vector<32xf32>
    %cst = arith.constant dense<0.000000e+00> : vector<32xf32>
    %8 = vector.multi_reduction <add>, %3, %cst [1] : vector<32x32xf32> to vector<32xf32>
    %9 = vector.shape_cast %8 : vector<32xf32> to vector<32x1xf32>
    %cst_8 = arith.constant 3.200000e+01 : f32
    %10 = vector.broadcast %cst_8 : f32 to vector<32x1xf32>
    %11 = arith.divf %9, %10 : vector<32x1xf32>
    %12 = arith.mulf %3, %3 : vector<32x32xf32>
    %cst_9 = arith.constant dense<0.000000e+00> : vector<32xf32>
    %13 = vector.multi_reduction <add>, %12, %cst_9 [1] : vector<32x32xf32> to vector<32xf32>
    %14 = vector.shape_cast %13 : vector<32xf32> to vector<32x1xf32>
    %cst_10 = arith.constant 3.200000e+01 : f32
    %15 = vector.broadcast %cst_10 : f32 to vector<32x1xf32>
    %16 = arith.divf %14, %15 : vector<32x1xf32>
    %17 = arith.mulf %11, %11 : vector<32x1xf32>
    %18 = arith.subf %16, %17 : vector<32x1xf32>
    %19 = vector.broadcast %11 : vector<32x1xf32> to vector<32x32xf32>
    %20 = arith.subf %3, %19 : vector<32x32xf32>
    %cst_11 = arith.constant 9.99999974E-6 : f32
    %21 = vector.broadcast %cst_11 : f32 to vector<32x1xf32>
    %22 = arith.addf %18, %21 : vector<32x1xf32>
    %23 = math.rsqrt %22 : vector<32x1xf32>
    %24 = vector.broadcast %23 : vector<32x1xf32> to vector<32x32xf32>
    %25 = arith.mulf %20, %24 : vector<32x32xf32>
    %26 = vector.shape_cast %5 : vector<32xf32> to vector<1x32xf32>
    %27 = vector.broadcast %26 : vector<1x32xf32> to vector<32x32xf32>
    %28 = arith.mulf %25, %27 : vector<32x32xf32>
    %29 = vector.shape_cast %7 : vector<32xf32> to vector<1x32xf32>
    %30 = vector.broadcast %29 : vector<1x32xf32> to vector<32x32xf32>
    %31 = arith.addf %28, %30 : vector<32x32xf32>
    %c0_12 = arith.constant 0 : index
    %c0_13 = arith.constant 0 : index
    %c0_14 = arith.constant 0 : index
    %32 = vector.load %arg7[%c0_12, %c0_13, %c0_14] : memref<1x32x96xf32, #tpu.memory_space<vmem>>, vector<1x32x96xf32>
    %33 = vector.shape_cast %32 : vector<1x32x96xf32> to vector<32x96xf32>
    %cst_15 = arith.constant dense<0.000000e+00> : vector<32x96xf32>
    %34 = tpu.matmul %31, %33, %cst_15 {dimension_numbers = #tpu.dot_dimension_numbers<[1], [0], [0], [1], [0, 0, 1, 1], [], []>} : vector<32x32xf32>, vector<32x96xf32>, vector<32x96xf32> -> vector<32x96xf32>
    %c0_16 = arith.constant 0 : index
    %c0_17 = arith.constant 0 : index
    %c0_18 = arith.constant 0 : index
    %35 = vector.load %arg8[%c0_16, %c0_17, %c0_18] : memref<1x1x96xf32, #tpu.memory_space<vmem>>, vector<1x1x96xf32>
    %36 = vector.shape_cast %35 : vector<1x1x96xf32> to vector<96xf32>
    %37 = vector.shape_cast %36 : vector<96xf32> to vector<1x96xf32>
    %38 = vector.broadcast %37 : vector<1x96xf32> to vector<32x96xf32>
    %39 = arith.addf %34, %38 : vector<32x96xf32>
    %40 = vector.extract_strided_slice %39 {offsets = [0, 0], sizes = [16, 96], strides = [1, 1]} : vector<32x96xf32> to vector<16x96xf32>
    %41 = vector.extract_strided_slice %40 {offsets = [0, 0], sizes = [16, 32], strides = [1, 1]} : vector<16x96xf32> to vector<16x32xf32>
    %42 = vector.shape_cast %41 : vector<16x32xf32> to vector<16x4x8xf32>
    %cst_19 = arith.constant 0.353553385 : f32
    %43 = vector.broadcast %cst_19 : f32 to vector<16x4x8xf32>
    %44 = arith.mulf %42, %43 : vector<16x4x8xf32>
    %45 = vector.extract_strided_slice %40 {offsets = [0, 32], sizes = [16, 32], strides = [1, 1]} : vector<16x96xf32> to vector<16x32xf32>
    %46 = vector.shape_cast %45 : vector<16x32xf32> to vector<16x4x8xf32>
    %47 = vector.extract_strided_slice %40 {offsets = [0, 64], sizes = [16, 32], strides = [1, 1]} : vector<16x96xf32> to vector<16x32xf32>
    %48 = vector.shape_cast %47 : vector<16x32xf32> to vector<16x4x8xf32>
    "tpu.trace_start"() <{level = 10 : i32, message = "qhd,khd->hqk"}> : () -> ()
    %cst_20 = arith.constant dense<0.000000e+00> : vector<4x16x16xf32>
    %49 = tpu.matmul %44, %46, %cst_20 {dimension_numbers = #tpu.dot_dimension_numbers<[2], [2], [0], [0], [0, 1, 0, 0, 1, 0], [1], [1]>} : vector<16x4x8xf32>, vector<16x4x8xf32>, vector<4x16x16xf32> -> vector<4x16x16xf32>
    "tpu.trace_stop"() : () -> ()
    %cst_21 = arith.constant dense<0xFF800000> : vector<4x16xf32>
    %50 = vector.multi_reduction <maximumf>, %49, %cst_21 [2] : vector<4x16x16xf32> to vector<4x16xf32>
    %51 = vector.shape_cast %50 : vector<4x16xf32> to vector<4x16x1xf32>
    %52 = vector.broadcast %51 : vector<4x16x1xf32> to vector<4x16x16xf32>
    %53 = arith.subf %49, %52 : vector<4x16x16xf32>
    %54 = math.exp %53 : vector<4x16x16xf32>
    %cst_22 = arith.constant dense<0.000000e+00> : vector<4x16xf32>
    %55 = vector.multi_reduction <add>, %54, %cst_22 [2] : vector<4x16x16xf32> to vector<4x16xf32>
    %56 = vector.shape_cast %55 : vector<4x16xf32> to vector<4x16x1xf32>
    %57 = tpu.reciprocal %56 {approx = true} : vector<4x16x1xf32> -> vector<4x16x1xf32>
    %58 = vector.broadcast %57 : vector<4x16x1xf32> to vector<4x16x16xf32>
    %59 = arith.mulf %54, %58 : vector<4x16x16xf32>
    "tpu.trace_start"() <{level = 10 : i32, message = "hqk,khd->qhd"}> : () -> ()
    %cst_23 = arith.constant dense<0.000000e+00> : vector<4x8x16xf32>
    %60 = tpu.matmul %48, %59, %cst_23 {dimension_numbers = #tpu.dot_dimension_numbers<[0], [2], [2], [1], [0, 1, 0, 2, 1, 1], [1], [0]>} : vector<16x4x8xf32>, vector<4x16x16xf32>, vector<4x8x16xf32> -> vector<4x8x16xf32>
    %61 = tpu.transpose %60, [2, 0, 1] : vector<4x8x16xf32> -> vector<16x4x8xf32>
    "tpu.trace_stop"() : () -> ()
    %62 = vector.shape_cast %61 : vector<16x4x8xf32> to vector<16x32xf32>
    %63 = vector.extract_strided_slice %39 {offsets = [16, 0], sizes = [16, 96], strides = [1, 1]} : vector<32x96xf32> to vector<16x96xf32>
    %64 = vector.extract_strided_slice %63 {offsets = [0, 0], sizes = [16, 32], strides = [1, 1]} : vector<16x96xf32> to vector<16x32xf32>
    %65 = vector.shape_cast %64 : vector<16x32xf32> to vector<16x4x8xf32>
    %cst_24 = arith.constant 0.353553385 : f32
    %66 = vector.broadcast %cst_24 : f32 to vector<16x4x8xf32>
    %67 = arith.mulf %65, %66 : vector<16x4x8xf32>
    %68 = vector.extract_strided_slice %63 {offsets = [0, 32], sizes = [16, 32], strides = [1, 1]} : vector<16x96xf32> to vector<16x32xf32>
    %69 = vector.shape_cast %68 : vector<16x32xf32> to vector<16x4x8xf32>
    %70 = vector.extract_strided_slice %63 {offsets = [0, 64], sizes = [16, 32], strides = [1, 1]} : vector<16x96xf32> to vector<16x32xf32>
    %71 = vector.shape_cast %70 : vector<16x32xf32> to vector<16x4x8xf32>
    "tpu.trace_start"() <{level = 10 : i32, message = "qhd,khd->hqk"}> : () -> ()
    %cst_25 = arith.constant dense<0.000000e+00> : vector<4x16x16xf32>
    %72 = tpu.matmul %67, %69, %cst_25 {dimension_numbers = #tpu.dot_dimension_numbers<[2], [2], [0], [0], [0, 1, 0, 0, 1, 0], [1], [1]>} : vector<16x4x8xf32>, vector<16x4x8xf32>, vector<4x16x16xf32> -> vector<4x16x16xf32>
    "tpu.trace_stop"() : () -> ()
    %cst_26 = arith.constant dense<0xFF800000> : vector<4x16xf32>
    %73 = vector.multi_reduction <maximumf>, %72, %cst_26 [2] : vector<4x16x16xf32> to vector<4x16xf32>
    %74 = vector.shape_cast %73 : vector<4x16xf32> to vector<4x16x1xf32>
    %75 = vector.broadcast %74 : vector<4x16x1xf32> to vector<4x16x16xf32>
    %76 = arith.subf %72, %75 : vector<4x16x16xf32>
    %77 = math.exp %76 : vector<4x16x16xf32>
    %cst_27 = arith.constant dense<0.000000e+00> : vector<4x16xf32>
    %78 = vector.multi_reduction <add>, %77, %cst_27 [2] : vector<4x16x16xf32> to vector<4x16xf32>
    %79 = vector.shape_cast %78 : vector<4x16xf32> to vector<4x16x1xf32>
    %80 = tpu.reciprocal %79 {approx = true} : vector<4x16x1xf32> -> vector<4x16x1xf32>
    %81 = vector.broadcast %80 : vector<4x16x1xf32> to vector<4x16x16xf32>
    %82 = arith.mulf %77, %81 : vector<4x16x16xf32>
    "tpu.trace_start"() <{level = 10 : i32, message = "hqk,khd->qhd"}> : () -> ()
    %cst_28 = arith.constant dense<0.000000e+00> : vector<4x8x16xf32>
    %83 = tpu.matmul %71, %82, %cst_28 {dimension_numbers = #tpu.dot_dimension_numbers<[0], [2], [2], [1], [0, 1, 0, 2, 1, 1], [1], [0]>} : vector<16x4x8xf32>, vector<4x16x16xf32>, vector<4x8x16xf32> -> vector<4x8x16xf32>
    %84 = tpu.transpose %83, [2, 0, 1] : vector<4x8x16xf32> -> vector<16x4x8xf32>
    "tpu.trace_stop"() : () -> ()
    %85 = vector.shape_cast %84 : vector<16x4x8xf32> to vector<16x32xf32>
    %86 = tpu.concatenate %62, %85 in 0 : vector<16x32xf32>, vector<16x32xf32> -> vector<32x32xf32>
    %c0_29 = arith.constant 0 : index
    %c0_30 = arith.constant 0 : index
    %c0_31 = arith.constant 0 : index
    %87 = vector.load %arg9[%c0_29, %c0_30, %c0_31] : memref<1x32x32xf32, #tpu.memory_space<vmem>>, vector<1x32x32xf32>
    %88 = vector.shape_cast %87 : vector<1x32x32xf32> to vector<32x32xf32>
    %cst_32 = arith.constant dense<0.000000e+00> : vector<32x32xf32>
    %89 = tpu.matmul %86, %88, %cst_32 {dimension_numbers = #tpu.dot_dimension_numbers<[1], [0], [0], [1], [0, 0, 1, 1], [], []>} : vector<32x32xf32>, vector<32x32xf32>, vector<32x32xf32> -> vector<32x32xf32>
    %c0_33 = arith.constant 0 : index
    %c0_34 = arith.constant 0 : index
    %c0_35 = arith.constant 0 : index
    %90 = vector.load %arg10[%c0_33, %c0_34, %c0_35] : memref<1x1x32xf32, #tpu.memory_space<vmem>>, vector<1x1x32xf32>
    %91 = vector.shape_cast %90 : vector<1x1x32xf32> to vector<32xf32>
    %92 = vector.shape_cast %91 : vector<32xf32> to vector<1x32xf32>
    %93 = vector.broadcast %92 : vector<1x32xf32> to vector<32x32xf32>
    %94 = arith.addf %89, %93 : vector<32x32xf32>
    %95 = arith.addf %3, %94 : vector<32x32xf32>
    %c0_36 = arith.constant 0 : index
    %c0_37 = arith.constant 0 : index
    %c0_38 = arith.constant 0 : index
    %96 = vector.load %arg11[%c0_36, %c0_37, %c0_38] : memref<1x1x32xf32, #tpu.memory_space<vmem>>, vector<1x1x32xf32>
    %97 = vector.shape_cast %96 : vector<1x1x32xf32> to vector<32xf32>
    %c0_39 = arith.constant 0 : index
    %c0_40 = arith.constant 0 : index
    %c0_41 = arith.constant 0 : index
    %98 = vector.load %arg12[%c0_39, %c0_40, %c0_41] : memref<1x1x32xf32, #tpu.memory_space<vmem>>, vector<1x1x32xf32>
    %99 = vector.shape_cast %98 : vector<1x1x32xf32> to vector<32xf32>
    %cst_42 = arith.constant dense<0.000000e+00> : vector<32xf32>
    %100 = vector.multi_reduction <add>, %95, %cst_42 [1] : vector<32x32xf32> to vector<32xf32>
    %101 = vector.shape_cast %100 : vector<32xf32> to vector<32x1xf32>
    %cst_43 = arith.constant 3.200000e+01 : f32
    %102 = vector.broadcast %cst_43 : f32 to vector<32x1xf32>
    %103 = arith.divf %101, %102 : vector<32x1xf32>
    %104 = arith.mulf %95, %95 : vector<32x32xf32>
    %cst_44 = arith.constant dense<0.000000e+00> : vector<32xf32>
    %105 = vector.multi_reduction <add>, %104, %cst_44 [1] : vector<32x32xf32> to vector<32xf32>
    %106 = vector.shape_cast %105 : vector<32xf32> to vector<32x1xf32>
    %cst_45 = arith.constant 3.200000e+01 : f32
    %107 = vector.broadcast %cst_45 : f32 to vector<32x1xf32>
    %108 = arith.divf %106, %107 : vector<32x1xf32>
    %109 = arith.mulf %103, %103 : vector<32x1xf32>
    %110 = arith.subf %108, %109 : vector<32x1xf32>
    %111 = vector.broadcast %103 : vector<32x1xf32> to vector<32x32xf32>
    %112 = arith.subf %95, %111 : vector<32x32xf32>
    %cst_46 = arith.constant 9.99999974E-6 : f32
    %113 = vector.broadcast %cst_46 : f32 to vector<32x1xf32>
    %114 = arith.addf %110, %113 : vector<32x1xf32>
    %115 = math.rsqrt %114 : vector<32x1xf32>
    %116 = vector.broadcast %115 : vector<32x1xf32> to vector<32x32xf32>
    %117 = arith.mulf %112, %116 : vector<32x32xf32>
    %118 = vector.shape_cast %97 : vector<32xf32> to vector<1x32xf32>
    %119 = vector.broadcast %118 : vector<1x32xf32> to vector<32x32xf32>
    %120 = arith.mulf %117, %119 : vector<32x32xf32>
    %121 = vector.shape_cast %99 : vector<32xf32> to vector<1x32xf32>
    %122 = vector.broadcast %121 : vector<1x32xf32> to vector<32x32xf32>
    %123 = arith.addf %120, %122 : vector<32x32xf32>
    %c0_47 = arith.constant 0 : index
    %c0_48 = arith.constant 0 : index
    %c0_49 = arith.constant 0 : index
    %124 = vector.load %arg13[%c0_47, %c0_48, %c0_49] : memref<1x32x128xf32, #tpu.memory_space<vmem>>, vector<1x32x128xf32>
    %125 = vector.shape_cast %124 : vector<1x32x128xf32> to vector<32x128xf32>
    %cst_50 = arith.constant dense<0.000000e+00> : vector<32x128xf32>
    %126 = tpu.matmul %123, %125, %cst_50 {dimension_numbers = #tpu.dot_dimension_numbers<[1], [0], [0], [1], [0, 0, 1, 1], [], []>} : vector<32x32xf32>, vector<32x128xf32>, vector<32x128xf32> -> vector<32x128xf32>
    %c0_51 = arith.constant 0 : index
    %c0_52 = arith.constant 0 : index
    %c0_53 = arith.constant 0 : index
    %127 = vector.load %arg14[%c0_51, %c0_52, %c0_53] : memref<1x1x128xf32, #tpu.memory_space<vmem>>, vector<1x1x128xf32>
    %128 = vector.shape_cast %127 : vector<1x1x128xf32> to vector<128xf32>
    %129 = vector.shape_cast %128 : vector<128xf32> to vector<1x128xf32>
    %130 = vector.broadcast %129 : vector<1x128xf32> to vector<32x128xf32>
    %131 = arith.addf %126, %130 : vector<32x128xf32>
    %132 = arith.mulf %131, %131 : vector<32x128xf32>
    %133 = arith.mulf %131, %132 : vector<32x128xf32>
    %cst_54 = arith.constant 4.471500e-02 : f32
    %134 = vector.broadcast %cst_54 : f32 to vector<32x128xf32>
    %135 = arith.mulf %134, %133 : vector<32x128xf32>
    %136 = arith.addf %131, %135 : vector<32x128xf32>
    %cst_55 = arith.constant 0.797884583 : f32
    %137 = vector.broadcast %cst_55 : f32 to vector<32x128xf32>
    %138 = arith.mulf %137, %136 : vector<32x128xf32>
    %139 = math.tanh %138 : vector<32x128xf32>
    %cst_56 = arith.constant 1.000000e+00 : f32
    %140 = vector.broadcast %cst_56 : f32 to vector<32x128xf32>
    %141 = arith.addf %140, %139 : vector<32x128xf32>
    %cst_57 = arith.constant 5.000000e-01 : f32
    %142 = vector.broadcast %cst_57 : f32 to vector<32x128xf32>
    %143 = arith.mulf %142, %141 : vector<32x128xf32>
    %144 = arith.mulf %131, %143 : vector<32x128xf32>
    %c0_58 = arith.constant 0 : index
    %c0_59 = arith.constant 0 : index
    %c0_60 = arith.constant 0 : index
    %145 = vector.load %arg15[%c0_58, %c0_59, %c0_60] : memref<1x128x32xf32, #tpu.memory_space<vmem>>, vector<1x128x32xf32>
    %146 = vector.shape_cast %145 : vector<1x128x32xf32> to vector<128x32xf32>
    %cst_61 = arith.constant dense<0.000000e+00> : vector<32x32xf32>
    %147 = tpu.matmul %144, %146, %cst_61 {dimension_numbers = #tpu.dot_dimension_numbers<[1], [0], [0], [1], [0, 0, 1, 1], [], []>} : vector<32x128xf32>, vector<128x32xf32>, vector<32x32xf32> -> vector<32x32xf32>
    %c0_62 = arith.constant 0 : index
    %c0_63 = arith.constant 0 : index
    %c0_64 = arith.constant 0 : index
    %148 = vector.load %arg16[%c0_62, %c0_63, %c0_64] : memref<1x1x32xf32, #tpu.memory_space<vmem>>, vector<1x1x32xf32>
    %149 = vector.shape_cast %148 : vector<1x1x32xf32> to vector<32xf32>
    %150 = vector.shape_cast %149 : vector<32xf32> to vector<1x32xf32>
    %151 = vector.broadcast %150 : vector<1x32xf32> to vector<32x32xf32>
    %152 = arith.addf %147, %151 : vector<32x32xf32>
    %153 = arith.addf %95, %152 : vector<32x32xf32>
    %c0_65 = arith.constant 0 : index
    %c0_66 = arith.constant 0 : index
    %154 = vector.load %arg20[%c0_65, %c0_66] : memref<32x32xf32, #tpu.memory_space<vmem>>, vector<32x32xf32>
    tpu.vector_store %arg20[%c0_65, %c0_66], %153 {strides = array<i32>} : memref<32x32xf32, #tpu.memory_space<vmem>>, vector<32x32xf32>,
    %c1_i32 = arith.constant 1 : i32
    %155 = arith.addi %arg0, %c1_i32 : i32
    %c2_i32 = arith.constant 2 : i32
    %c0_i32_67 = arith.constant 0 : i32
    %156 = arith.cmpi eq, %c2_i32, %c0_i32_67 : i32
    %c1_i32_68 = arith.constant 1 : i32
    %157 = arith.select %156, %c1_i32_68, %c2_i32 : i32
    %158 = arith.remsi %155, %157 : i32
    %c0_i32_69 = arith.constant 0 : i32
    %159 = arith.cmpi ne, %158, %c0_i32_69 : i32
    %c0_i32_70 = arith.constant 0 : i32
    %160 = arith.cmpi slt, %158, %c0_i32_70 : i32
    %c0_i32_71 = arith.constant 0 : i32
    %161 = arith.cmpi slt, %157, %c0_i32_71 : i32
    %162 = arith.xori %160, %161 : i1
    %163 = arith.andi %162, %159 : i1
    %164 = arith.addi %158, %157 : i32
    %165 = arith.select %163, %164, %158 : i32
    %c0_i32_72 = arith.constant 0 : i32
    %166 = arith.cmpi eq, %165, %c0_i32_72 : i32
    %167 = arith.extui %166 : i1 to i32
    %c0_i32_73 = arith.constant 0 : i32
    %168 = arith.cmpi ne, %167, %c0_i32_73 : i32
    scf.if %168 {
      %c0_76 = arith.constant 0 : index
      %c0_77 = arith.constant 0 : index
      %172 = vector.load %arg20[%c0_76, %c0_77] : memref<32x32xf32, #tpu.memory_space<vmem>>, vector<32x32xf32>
      %c0_78 = arith.constant 0 : index
      %c0_79 = arith.constant 0 : index
      %173 = vector.load %arg21[%c0_78, %c0_79] : memref<32x32xf32, #tpu.memory_space<vmem>>, vector<32x32xf32>
      %174 = arith.addf %172, %173 : vector<32x32xf32>
      %c0_80 = arith.constant 0 : index
      %c0_81 = arith.constant 0 : index
      %175 = vector.load %arg20[%c0_80, %c0_81] : memref<32x32xf32, #tpu.memory_space<vmem>>, vector<32x32xf32>
      tpu.vector_store %arg20[%c0_80, %c0_81], %174 {strides = array<i32>} : memref<32x32xf32, #tpu.memory_space<vmem>>, vector<32x32xf32>,
      %c0_82 = arith.constant 0 : index
      %c0_83 = arith.constant 0 : index
      %176 = vector.load %arg21[%c0_82, %c0_83] : memref<32x32xf32, #tpu.memory_space<vmem>>, vector<32x32xf32>
      tpu.vector_store %arg21[%c0_82, %c0_83], %174 {strides = array<i32>} : memref<32x32xf32, #tpu.memory_space<vmem>>, vector<32x32xf32>,
    } else {
    }
    %c1_i32_74 = arith.constant 1 : i32
    %169 = arith.cmpi eq, %arg0, %c1_i32_74 : i32
    %170 = arith.extui %169 : i1 to i32
    %c0_i32_75 = arith.constant 0 : i32
    %171 = arith.cmpi ne, %170, %c0_i32_75 : i32
    scf.if %171 {
      %c0_76 = arith.constant 0 : index
      %c0_77 = arith.constant 0 : index
      %172 = vector.load %arg20[%c0_76, %c0_77] : memref<32x32xf32, #tpu.memory_space<vmem>>, vector<32x32xf32>
      %c0_78 = arith.constant 0 : index
      %c0_79 = arith.constant 0 : index
      %173 = vector.load %arg17[%c0_78, %c0_79] : memref<1x32xf32, #tpu.memory_space<vmem>>, vector<1x32xf32>
      %c0_80 = arith.constant 0 : index
      %c0_81 = arith.constant 0 : index
      %174 = vector.load %arg18[%c0_80, %c0_81] : memref<1x32xf32, #tpu.memory_space<vmem>>, vector<1x32xf32>
      %cst_82 = arith.constant dense<0.000000e+00> : vector<32xf32>
      %175 = vector.multi_reduction <add>, %172, %cst_82 [1] : vector<32x32xf32> to vector<32xf32>
      %176 = vector.shape_cast %175 : vector<32xf32> to vector<32x1xf32>
      %cst_83 = arith.constant 3.200000e+01 : f32
      %177 = vector.broadcast %cst_83 : f32 to vector<32x1xf32>
      %178 = arith.divf %176, %177 : vector<32x1xf32>
      %179 = arith.mulf %172, %172 : vector<32x32xf32>
      %cst_84 = arith.constant dense<0.000000e+00> : vector<32xf32>
      %180 = vector.multi_reduction <add>, %179, %cst_84 [1] : vector<32x32xf32> to vector<32xf32>
      %181 = vector.shape_cast %180 : vector<32xf32> to vector<32x1xf32>
      %cst_85 = arith.constant 3.200000e+01 : f32
      %182 = vector.broadcast %cst_85 : f32 to vector<32x1xf32>
      %183 = arith.divf %181, %182 : vector<32x1xf32>
      %184 = arith.mulf %178, %178 : vector<32x1xf32>
      %185 = arith.subf %183, %184 : vector<32x1xf32>
      %186 = vector.broadcast %178 : vector<32x1xf32> to vector<32x32xf32>
      %187 = arith.subf %172, %186 : vector<32x32xf32>
      %cst_86 = arith.constant 9.99999974E-6 : f32
      %188 = vector.broadcast %cst_86 : f32 to vector<32x1xf32>
      %189 = arith.addf %185, %188 : vector<32x1xf32>
      %190 = math.rsqrt %189 : vector<32x1xf32>
      %191 = vector.broadcast %190 : vector<32x1xf32> to vector<32x32xf32>
      %192 = arith.mulf %187, %191 : vector<32x32xf32>
      %193 = vector.broadcast %173 : vector<1x32xf32> to vector<32x32xf32>
      %194 = arith.mulf %192, %193 : vector<32x32xf32>
      %195 = vector.broadcast %174 : vector<1x32xf32> to vector<32x32xf32>
      %196 = arith.addf %194, %195 : vector<32x32xf32>
      %c0_87 = arith.constant 0 : index
      %c0_88 = arith.constant 0 : index
      %197 = vector.load %arg19[%c0_87, %c0_88] : memref<32x32xf32, #tpu.memory_space<vmem>>, vector<32x32xf32>
      tpu.vector_store %arg19[%c0_87, %c0_88], %196 {strides = array<i32>} : memref<32x32xf32, #tpu.memory_space<vmem>>, vector<32x32xf32>,
    } else {
    }
    return
  }
  func.func @transform_0(%arg0: i32) -> (i32, i32, i32) {
    %c0_i32 = arith.constant 0 : i32
    %c0_i32_0 = arith.constant 0 : i32
    %c0_i32_1 = arith.constant 0 : i32
    %c0_i32_2 = arith.constant 0 : i32
    return %c0_i32, %c0_i32_0, %c0_i32_1 : i32, i32, i32
  }
  func.func @transform_1(%arg0: i32) -> (i32, i32) {
    %c0_i32 = arith.constant 0 : i32
    %c0_i32_0 = arith.constant 0 : i32
    %c0_i32_1 = arith.constant 0 : i32
    return %c0_i32, %c0_i32_0 : i32, i32
  }
  func.func @transform_2(%arg0: i32) -> (i32, i32) {
    %c0_i32 = arith.constant 0 : i32
    %c0_i32_0 = arith.constant 0 : i32
    %c0_i32_1 = arith.constant 0 : i32
    return %c0_i32, %c0_i32_0 : i32, i32
  }
  func.func @transform_3(%arg0: i32) -> (i32, i32) {
    %c0_i32 = arith.constant 0 : i32
    %c0_i32_0 = arith.constant 0 : i32
    %c0_i32_1 = arith.constant 0 : i32
    return %c0_i32, %c0_i32_0 : i32, i32
  }
  func.func @transform_4(%arg0: i32) -> (i32, i32, i32) {
    %c0_i32 = arith.constant 0 : i32
    %c0_i32_0 = arith.constant 0 : i32
    %c0_i32_1 = arith.constant 0 : i32
    return %arg0, %c0_i32, %c0_i32_0 : i32, i32, i32
  }
  func.func @transform_5(%arg0: i32) -> (i32, i32, i32) {
    %c0_i32 = arith.constant 0 : i32
    %c0_i32_0 = arith.constant 0 : i32
    %c0_i32_1 = arith.constant 0 : i32
    return %arg0, %c0_i32, %c0_i32_0 : i32, i32, i32
  }
  func.func @transform_6(%arg0: i32) -> (i32, i32, i32) {
    %c0_i32 = arith.constant 0 : i32
    %c0_i32_0 = arith.constant 0 : i32
    %c0_i32_1 = arith.constant 0 : i32
    return %arg0, %c0_i32, %c0_i32_0 : i32, i32, i32
  }
  func.func @transform_7(%arg0: i32) -> (i32, i32, i32) {
    %c0_i32 = arith.constant 0 : i32
    %c0_i32_0 = arith.constant 0 : i32
    %c0_i32_1 = arith.constant 0 : i32
    return %arg0, %c0_i32, %c0_i32_0 : i32, i32, i32
  }
  func.func @transform_8(%arg0: i32) -> (i32, i32, i32) {
    %c0_i32 = arith.constant 0 : i32
    %c0_i32_0 = arith.constant 0 : i32
    %c0_i32_1 = arith.constant 0 : i32
    return %arg0, %c0_i32, %c0_i32_0 : i32, i32, i32
  }
  func.func @transform_9(%arg0: i32) -> (i32, i32, i32) {
    %c0_i32 = arith.constant 0 : i32
    %c0_i32_0 = arith.constant 0 : i32
    %c0_i32_1 = arith.constant 0 : i32
    return %arg0, %c0_i32, %c0_i32_0 : i32, i32, i32
  }
  func.func @transform_10(%arg0: i32) -> (i32, i32, i32) {
    %c0_i32 = arith.constant 0 : i32
    %c0_i32_0 = arith.constant 0 : i32
    %c0_i32_1 = arith.constant 0 : i32
    return %arg0, %c0_i32, %c0_i32_0 : i32, i32, i32
  }
  func.func @transform_11(%arg0: i32) -> (i32, i32, i32) {
    %c0_i32 = arith.constant 0 : i32
    %c0_i32_0 = arith.constant 0 : i32
    %c0_i32_1 = arith.constant 0 : i32
    return %arg0, %c0_i32, %c0_i32_0 : i32, i32, i32
  }
  func.func @transform_12(%arg0: i32) -> (i32, i32, i32) {
    %c0_i32 = arith.constant 0 : i32
    %c0_i32_0 = arith.constant 0 : i32
    %c0_i32_1 = arith.constant 0 : i32
    return %arg0, %c0_i32, %c0_i32_0 : i32, i32, i32
  }
  func.func @transform_13(%arg0: i32) -> (i32, i32, i32) {
    %c0_i32 = arith.constant 0 : i32
    %c0_i32_0 = arith.constant 0 : i32
    %c0_i32_1 = arith.constant 0 : i32
    return %arg0, %c0_i32, %c0_i32_0 : i32, i32, i32
  }
  func.func @transform_14(%arg0: i32) -> (i32, i32, i32) {
    %c0_i32 = arith.constant 0 : i32
    %c0_i32_0 = arith.constant 0 : i32
    %c0_i32_1 = arith.constant 0 : i32
    return %arg0, %c0_i32, %c0_i32_0 : i32, i32, i32
  }
  func.func @transform_15(%arg0: i32) -> (i32, i32, i32) {
    %c0_i32 = arith.constant 0 : i32
    %c0_i32_0 = arith.constant 0 : i32
    %c0_i32_1 = arith.constant 0 : i32
    return %arg0, %c0_i32, %c0_i32_0 : i32, i32, i32
  }
  func.func @transform_16(%arg0: i32) -> (i32, i32) {
    %c0_i32 = arith.constant 0 : i32
    %c0_i32_0 = arith.constant 0 : i32
    %c0_i32_1 = arith.constant 0 : i32
    return %c0_i32, %c0_i32_0 : i32, i32
  }
  func.func @transform_17(%arg0: i32) -> (i32, i32) {
    %c0_i32 = arith.constant 0 : i32
    %c0_i32_0 = arith.constant 0 : i32
    %c0_i32_1 = arith.constant 0 : i32
    return %c0_i32, %c0_i32_0 : i32, i32
  }
  func.func @transform_18(%arg0: i32) -> (i32, i32) {
    %c0_i32 = arith.constant 0 : i32
    %c0_i32_0 = arith.constant 0 : i32
    %c0_i32_1 = arith.constant 0 : i32
    return %c0_i32, %c0_i32_0 : i32, i32
  }
}

</mosaic_0001>

<llo_original>
// kernel: tpu_custom_call.1
$region0: #{tpu_custom_call.1}
  #allocation0 [shape = 'u32[]', space=smem, size = 0x4, offset = 0x4, fixed_abs, tag = 'smem constant byte address 0x4 - core index']
  #allocation1 [shape = 'u32[72,128]{1,0:T(1,128)}', space=vmem, size = 0x9000, scoped, tag = 'internal scratch']
  #allocation2 [shape = 'f32[32,32]{1,0:T(8,128)}', space=vmem, size = 0x4000, scoped, tag = 'scratch operand']
  #allocation3 [shape = 'f32[32,32]{1,0:T(8,128)}', space=vmem, size = 0x4000, scoped, tag = 'scratch operand']
  %s0 = inlined_call_operand.vmem [shape: f32[2,16,8], index: 0, kind: input, shape index: {}]
  %s1 = inlined_call_operand.vmem [shape: f32[8,32], index: 1, kind: input, shape index: {}]
  %s2 = inlined_call_operand.vmem [shape: f32[1,32], index: 2, kind: input, shape index: {}]
  %s3 = inlined_call_operand.vmem [shape: f32[16,32], index: 3, kind: input, shape index: {}]
  %s4 = inlined_call_operand.vmem [shape: f32[2,1,32], index: 4, kind: input, shape index: {}]
  %s5 = inlined_call_operand.vmem [shape: f32[2,1,32], index: 5, kind: input, shape index: {}]
  %s6 = inlined_call_operand.vmem [shape: f32[2,32,96], index: 6, kind: input, shape index: {}]
  %s7 = inlined_call_operand.vmem [shape: f32[2,1,96], index: 7, kind: input, shape index: {}]
  %s8 = inlined_call_operand.vmem [shape: f32[2,32,32], index: 8, kind: input, shape index: {}]
  %s9 = inlined_call_operand.vmem [shape: f32[2,1,32], index: 9, kind: input, shape index: {}]
  %s10 = inlined_call_operand.vmem [shape: f32[2,1,32], index: 10, kind: input, shape index: {}]
  %s11 = inlined_call_operand.vmem [shape: f32[2,1,32], index: 11, kind: input, shape index: {}]
  %s12 = inlined_call_operand.vmem [shape: f32[2,32,128], index: 12, kind: input, shape index: {}]
  %s13 = inlined_call_operand.vmem [shape: f32[2,1,128], index: 13, kind: input, shape index: {}]
  %s14 = inlined_call_operand.vmem [shape: f32[2,128,32], index: 14, kind: input, shape index: {}]
  %s15 = inlined_call_operand.vmem [shape: f32[2,1,32], index: 15, kind: input, shape index: {}]
  %s16 = inlined_call_operand.vmem [shape: f32[1,32], index: 16, kind: input, shape index: {}]
  %s17 = inlined_call_operand.vmem [shape: f32[1,32], index: 17, kind: input, shape index: {}]
  %s18 = inlined_call_operand.hbm [shape: f32[32,32], index: 18, kind: output, shape index: {}]
  %s19 = sld [smem:[#allocation0]]
  $region117: #{tpu_custom_call.1} parent=0
    _
  %s21 = ssub.s32 1, %s19
  %s22 = scalar_select 0, %s21, %s19
  $region1: #{tpu_custom_call.1} parent=0
    #allocation4 [shape = 'u8[16384]{0}', space=vmem, size = 0x4000, scoped, tag = 'output window, operand 0, single buffered']
    #allocation5 [shape = 's32[2]{0}', space=sflag, size = 0x8, scoped, tag = 'scoped memory for tpu_custom_call.1']
    %23 = vsyncpa [#allocation5], 0
    loop: start=0, step=1, limit=4
    $region2: #{tpu_custom_call.1} parent=1 // loop_pre_header
      _
    $region3: #{tpu_custom_call.1} parent=1 // loop_header
      %s25 = sphi 0, %s29
      %p26 = scmp.ge.s32.totalorder %s25, 4
      %s33 = sphi 0, %s33
      %s35 = sphi 0, %s33
      %s36 = sphi 0, %s35
      %s50 = sphi 0, %s36
      %s54 = sphi 0, %s54
      %s56 = sphi 0, %s54
      %s57 = sphi 0, %s56
      %s71 = sphi 0, %s57
      %s75 = sphi 0, %s75
      %s77 = sphi 0, %s75
      %s78 = sphi 0, %s77
      %s92 = sphi 0, %s78
      %s96 = sphi 0, %s96
      %s98 = sphi 0, %s96
      %s99 = sphi 0, %s98
      %s113 = sphi 0, %s99
      %s119 = sphi 0, %s121
      %s122 = sphi 0, %s119
      %s123 = sphi 0, %s122
      %s139 = sphi 0, %s123
      %s145 = sphi 0, %s147
      %s148 = sphi 0, %s145
      %s149 = sphi 0, %s148
      %s165 = sphi 0, %s149
      %s171 = sphi 0, %s173
      %s174 = sphi 0, %s171
      %s175 = sphi 0, %s174
      %s191 = sphi 0, %s175
      %s197 = sphi 0, %s199
      %s200 = sphi 0, %s197
      %s201 = sphi 0, %s200
      %s217 = sphi 0, %s201
      %s223 = sphi 0, %s225
      %s226 = sphi 0, %s223
      %s227 = sphi 0, %s226
      %s243 = sphi 0, %s227
      %s249 = sphi 0, %s251
      %s252 = sphi 0, %s249
      %s253 = sphi 0, %s252
      %s269 = sphi 0, %s253
      %s275 = sphi 0, %s277
      %s278 = sphi 0, %s275
      %s279 = sphi 0, %s278
      %s295 = sphi 0, %s279
      %s301 = sphi 0, %s303
      %s304 = sphi 0, %s301
      %s305 = sphi 0, %s304
      %s321 = sphi 0, %s305
      %s327 = sphi 0, %s329
      %s330 = sphi 0, %s327
      %s331 = sphi 0, %s330
      %s347 = sphi 0, %s331
      %s353 = sphi 0, %s355
      %s356 = sphi 0, %s353
      %s357 = sphi 0, %s356
      %s373 = sphi 0, %s357
      %s379 = sphi 0, %s381
      %s382 = sphi 0, %s379
      %s383 = sphi 0, %s382
      %s399 = sphi 0, %s383
      %s405 = sphi 0, %s407
      %s408 = sphi 0, %s405
      %s409 = sphi 0, %s408
      %s425 = sphi 0, %s409
      %s429 = sphi 0, %s429
      %s431 = sphi 0, %s429
      %s432 = sphi 0, %s431
      %s446 = sphi 0, %s432
      %s450 = sphi 0, %s450
      %s452 = sphi 0, %s450
      %s453 = sphi 0, %s452
      %s467 = sphi 0, %s453
      %s471 = sphi 0, %s471
      %s473 = sphi 0, %s471
      %s474 = sphi 0, %s473
      %s488 = sphi 0, %s474
    $region4: #{tpu_custom_call.1} parent=1 // loop_header_branch
      %28 = sbr.rel (%p26) target = $region8
    $region5: #{tpu_custom_call.1} parent=1 // loop_body
      %s30 = ssub.s32 %s25, 1
      %s31 = ssub.s32 %s25, 2
      %s32 = sadd.s32 %s25, 1
      %s34 = sadd.s32 %s33, 1
      %p37 = scmp.eq.s32.totalorder %s25, 1
      %p38 = scmp.ne.s32.totalorder %s33, %s35
      %p39 = scmp.eq.s32.totalorder %s25, 0
      %p40 = por %p38, %p39
      %p41 = scmp.ne.s32.totalorder %s33, %s35
      %p42 = scmp.eq.s32.totalorder %s30, 1
      %p43 = por %p41, %p42
      %p44 = scmp.ne.s32.totalorder %s35, %s36
      %p45 = scmp.eq.s32.totalorder %s30, 0
      %p46 = por %p44, %p45
      %p47 = scmp.ne.s32.totalorder %s35, %s36
      %p48 = scmp.eq.s32.totalorder %s31, 1
      %p49 = por %p47, %p48
      %p51 = scmp.ne.s32.totalorder %s36, %s50
      %p52 = scmp.eq.s32.totalorder %s31, 0
      %p53 = por %p51, %p52
      %s55 = sadd.s32 %s54, 1
      %p58 = scmp.eq.s32.totalorder %s25, 1
      %p59 = scmp.ne.s32.totalorder %s54, %s56
      %p60 = scmp.eq.s32.totalorder %s25, 0
      %p61 = por %p59, %p60
      %p62 = scmp.ne.s32.totalorder %s54, %s56
      %p63 = scmp.eq.s32.totalorder %s30, 1
      %p64 = por %p62, %p63
      %p65 = scmp.ne.s32.totalorder %s56, %s57
      %p66 = scmp.eq.s32.totalorder %s30, 0
      %p67 = por %p65, %p66
      %p68 = scmp.ne.s32.totalorder %s56, %s57
      %p69 = scmp.eq.s32.totalorder %s31, 1
      %p70 = por %p68, %p69
      %p72 = scmp.ne.s32.totalorder %s57, %s71
      %p73 = scmp.eq.s32.totalorder %s31, 0
      %p74 = por %p72, %p73
      %s76 = sadd.s32 %s75, 1
      %p79 = scmp.eq.s32.totalorder %s25, 1
      %p80 = scmp.ne.s32.totalorder %s75, %s77
      %p81 = scmp.eq.s32.totalorder %s25, 0
      %p82 = por %p80, %p81
      %p83 = scmp.ne.s32.totalorder %s75, %s77
      %p84 = scmp.eq.s32.totalorder %s30, 1
      %p85 = por %p83, %p84
      %p86 = scmp.ne.s32.totalorder %s77, %s78
      %p87 = scmp.eq.s32.totalorder %s30, 0
      %p88 = por %p86, %p87
      %p89 = scmp.ne.s32.totalorder %s77, %s78
      %p90 = scmp.eq.s32.totalorder %s31, 1
      %p91 = por %p89, %p90
      %p93 = scmp.ne.s32.totalorder %s78, %s92
      %p94 = scmp.eq.s32.totalorder %s31, 0
      %p95 = por %p93, %p94
      %s97 = sadd.s32 %s96, 1
      %p100 = scmp.eq.s32.totalorder %s25, 1
      %p101 = scmp.ne.s32.totalorder %s96, %s98
      %p102 = scmp.eq.s32.totalorder %s25, 0
      %p103 = por %p101, %p102
      %p104 = scmp.ne.s32.totalorder %s96, %s98
      %p105 = scmp.eq.s32.totalorder %s30, 1
      %p106 = por %p104, %p105
      %p107 = scmp.ne.s32.totalorder %s98, %s99
      %p108 = scmp.eq.s32.totalorder %s30, 0
      %p109 = por %p107, %p108
      %p110 = scmp.ne.s32.totalorder %s98, %s99
      %p111 = scmp.eq.s32.totalorder %s31, 1
      %p112 = por %p110, %p111
      %p114 = scmp.ne.s32.totalorder %s99, %s113
      %p115 = scmp.eq.s32.totalorder %s31, 0
      %p116 = por %p114, %p115
      %s117 = ssub.s32 %s25, %s32
      %p118 = scmp.eq.s32.totalorder %s117, 0
      %s120 = sadd.s32 %s119, 1
      %s121 = scalar_select %p118, %s119, %s120
      %p124 = pneg %p118
      %p125 = scmp.eq.s32.totalorder %s25, 1
      %p126 = por %p124, %p125
      %p127 = scmp.ne.s32.totalorder %s119, %s122
      %p128 = scmp.eq.s32.totalorder %s25, 0
      %p129 = por %p127, %p128
      %p130 = scmp.ne.s32.totalorder %s119, %s122
      %p131 = scmp.eq.s32.totalorder %s30, 1
      %p132 = por %p130, %p131
      %p133 = scmp.ne.s32.totalorder %s122, %s123
      %p134 = scmp.eq.s32.totalorder %s30, 0
      %p135 = por %p133, %p134
      %p136 = scmp.ne.s32.totalorder %s122, %s123
      %p137 = scmp.eq.s32.totalorder %s31, 1
      %p138 = por %p136, %p137
      %p140 = scmp.ne.s32.totalorder %s123, %s139
      %p141 = scmp.eq.s32.totalorder %s31, 0
      %p142 = por %p140, %p141
      %s143 = ssub.s32 %s25, %s32
      %p144 = scmp.eq.s32.totalorder %s143, 0
      %s146 = sadd.s32 %s145, 1
      %s147 = scalar_select %p144, %s145, %s146
      %p150 = pneg %p144
      %p151 = scmp.eq.s32.totalorder %s25, 1
      %p152 = por %p150, %p151
      %p153 = scmp.ne.s32.totalorder %s145, %s148
      %p154 = scmp.eq.s32.totalorder %s25, 0
      %p155 = por %p153, %p154
      %p156 = scmp.ne.s32.totalorder %s145, %s148
      %p157 = scmp.eq.s32.totalorder %s30, 1
      %p158 = por %p156, %p157
      %p159 = scmp.ne.s32.totalorder %s148, %s149
      %p160 = scmp.eq.s32.totalorder %s30, 0
      %p161 = por %p159, %p160
      %p162 = scmp.ne.s32.totalorder %s148, %s149
      %p163 = scmp.eq.s32.totalorder %s31, 1
      %p164 = por %p162, %p163
      %p166 = scmp.ne.s32.totalorder %s149, %s165
      %p167 = scmp.eq.s32.totalorder %s31, 0
      %p168 = por %p166, %p167
      %s169 = ssub.s32 %s25, %s32
      %p170 = scmp.eq.s32.totalorder %s169, 0
      %s172 = sadd.s32 %s171, 1
      %s173 = scalar_select %p170, %s171, %s172
      %p176 = pneg %p170
      %p177 = scmp.eq.s32.totalorder %s25, 1
      %p178 = por %p176, %p177
      %p179 = scmp.ne.s32.totalorder %s171, %s174
      %p180 = scmp.eq.s32.totalorder %s25, 0
      %p181 = por %p179, %p180
      %p182 = scmp.ne.s32.totalorder %s171, %s174
      %p183 = scmp.eq.s32.totalorder %s30, 1
      %p184 = por %p182, %p183
      %p185 = scmp.ne.s32.totalorder %s174, %s175
      %p186 = scmp.eq.s32.totalorder %s30, 0
      %p187 = por %p185, %p186
      %p188 = scmp.ne.s32.totalorder %s174, %s175
      %p189 = scmp.eq.s32.totalorder %s31, 1
      %p190 = por %p188, %p189
      %p192 = scmp.ne.s32.totalorder %s175, %s191
      %p193 = scmp.eq.s32.totalorder %s31, 0
      %p194 = por %p192, %p193
      %s195 = ssub.s32 %s25, %s32
      %p196 = scmp.eq.s32.totalorder %s195, 0
      %s198 = sadd.s32 %s197, 1
      %s199 = scalar_select %p196, %s197, %s198
      %p202 = pneg %p196
      %p203 = scmp.eq.s32.totalorder %s25, 1
      %p204 = por %p202, %p203
      %p205 = scmp.ne.s32.totalorder %s197, %s200
      %p206 = scmp.eq.s32.totalorder %s25, 0
      %p207 = por %p205, %p206
      %p208 = scmp.ne.s32.totalorder %s197, %s200
      %p209 = scmp.eq.s32.totalorder %s30, 1
      %p210 = por %p208, %p209
      %p211 = scmp.ne.s32.totalorder %s200, %s201
      %p212 = scmp.eq.s32.totalorder %s30, 0
      %p213 = por %p211, %p212
      %p214 = scmp.ne.s32.totalorder %s200, %s201
      %p215 = scmp.eq.s32.totalorder %s31, 1
      %p216 = por %p214, %p215
      %p218 = scmp.ne.s32.totalorder %s201, %s217
      %p219 = scmp.eq.s32.totalorder %s31, 0
      %p220 = por %p218, %p219
      %s221 = ssub.s32 %s25, %s32
      %p222 = scmp.eq.s32.totalorder %s221, 0
      %s224 = sadd.s32 %s223, 1
      %s225 = scalar_select %p222, %s223, %s224
      %p228 = pneg %p222
      %p229 = scmp.eq.s32.totalorder %s25, 1
      %p230 = por %p228, %p229
      %p231 = scmp.ne.s32.totalorder %s223, %s226
      %p232 = scmp.eq.s32.totalorder %s25, 0
      %p233 = por %p231, %p232
      %p234 = scmp.ne.s32.totalorder %s223, %s226
      %p235 = scmp.eq.s32.totalorder %s30, 1
      %p236 = por %p234, %p235
      %p237 = scmp.ne.s32.totalorder %s226, %s227
      %p238 = scmp.eq.s32.totalorder %s30, 0
      %p239 = por %p237, %p238
      %p240 = scmp.ne.s32.totalorder %s226, %s227
      %p241 = scmp.eq.s32.totalorder %s31, 1
      %p242 = por %p240, %p241
      %p244 = scmp.ne.s32.totalorder %s227, %s243
      %p245 = scmp.eq.s32.totalorder %s31, 0
      %p246 = por %p244, %p245
      %s247 = ssub.s32 %s25, %s32
      %p248 = scmp.eq.s32.totalorder %s247, 0
      %s250 = sadd.s32 %s249, 1
      %s251 = scalar_select %p248, %s249, %s250
      %p254 = pneg %p248
      %p255 = scmp.eq.s32.totalorder %s25, 1
      %p256 = por %p254, %p255
      %p257 = scmp.ne.s32.totalorder %s249, %s252
      %p258 = scmp.eq.s32.totalorder %s25, 0
      %p259 = por %p257, %p258
      %p260 = scmp.ne.s32.totalorder %s249, %s252
      %p261 = scmp.eq.s32.totalorder %s30, 1
      %p262 = por %p260, %p261
      %p263 = scmp.ne.s32.totalorder %s252, %s253
      %p264 = scmp.eq.s32.totalorder %s30, 0
      %p265 = por %p263, %p264
      %p266 = scmp.ne.s32.totalorder %s252, %s253
      %p267 = scmp.eq.s32.totalorder %s31, 1
      %p268 = por %p266, %p267
      %p270 = scmp.ne.s32.totalorder %s253, %s269
      %p271 = scmp.eq.s32.totalorder %s31, 0
      %p272 = por %p270, %p271
      %s273 = ssub.s32 %s25, %s32
      %p274 = scmp.eq.s32.totalorder %s273, 0
      %s276 = sadd.s32 %s275, 1
      %s277 = scalar_select %p274, %s275, %s276
      %p280 = pneg %p274
      %p281 = scmp.eq.s32.totalorder %s25, 1
      %p282 = por %p280, %p281
      %p283 = scmp.ne.s32.totalorder %s275, %s278
      %p284 = scmp.eq.s32.totalorder %s25, 0
      %p285 = por %p283, %p284
      %p286 = scmp.ne.s32.totalorder %s275, %s278
      %p287 = scmp.eq.s32.totalorder %s30, 1
      %p288 = por %p286, %p287
      %p289 = scmp.ne.s32.totalorder %s278, %s279
      %p290 = scmp.eq.s32.totalorder %s30, 0
      %p291 = por %p289, %p290
      %p292 = scmp.ne.s32.totalorder %s278, %s279
      %p293 = scmp.eq.s32.totalorder %s31, 1
      %p294 = por %p292, %p293
      %p296 = scmp.ne.s32.totalorder %s279, %s295
      %p297 = scmp.eq.s32.totalorder %s31, 0
      %p298 = por %p296, %p297
      %s299 = ssub.s32 %s25, %s32
      %p300 = scmp.eq.s32.totalorder %s299, 0
      %s302 = sadd.s32 %s301, 1
      %s303 = scalar_select %p300, %s301, %s302
      %p306 = pneg %p300
      %p307 = scmp.eq.s32.totalorder %s25, 1
      %p308 = por %p306, %p307
      %p309 = scmp.ne.s32.totalorder %s301, %s304
      %p310 = scmp.eq.s32.totalorder %s25, 0
      %p311 = por %p309, %p310
      %p312 = scmp.ne.s32.totalorder %s301, %s304
      %p313 = scmp.eq.s32.totalorder %s30, 1
      %p314 = por %p312, %p313
      %p315 = scmp.ne.s32.totalorder %s304, %s305
      %p316 = scmp.eq.s32.totalorder %s30, 0
      %p317 = por %p315, %p316
      %p318 = scmp.ne.s32.totalorder %s304, %s305
      %p319 = scmp.eq.s32.totalorder %s31, 1
      %p320 = por %p318, %p319
      %p322 = scmp.ne.s32.totalorder %s305, %s321
      %p323 = scmp.eq.s32.totalorder %s31, 0
      %p324 = por %p322, %p323
      %s325 = ssub.s32 %s25, %s32
      %p326 = scmp.eq.s32.totalorder %s325, 0
      %s328 = sadd.s32 %s327, 1
      %s329 = scalar_select %p326, %s327, %s328
      %p332 = pneg %p326
      %p333 = scmp.eq.s32.totalorder %s25, 1
      %p334 = por %p332, %p333
      %p335 = scmp.ne.s32.totalorder %s327, %s330
      %p336 = scmp.eq.s32.totalorder %s25, 0
      %p337 = por %p335, %p336
      %p338 = scmp.ne.s32.totalorder %s327, %s330
      %p339 = scmp.eq.s32.totalorder %s30, 1
      %p340 = por %p338, %p339
      %p341 = scmp.ne.s32.totalorder %s330, %s331
      %p342 = scmp.eq.s32.totalorder %s30, 0
      %p343 = por %p341, %p342
      %p344 = scmp.ne.s32.totalorder %s330, %s331
      %p345 = scmp.eq.s32.totalorder %s31, 1
      %p346 = por %p344, %p345
      %p348 = scmp.ne.s32.totalorder %s331, %s347
      %p349 = scmp.eq.s32.totalorder %s31, 0
      %p350 = por %p348, %p349
      %s351 = ssub.s32 %s25, %s32
      %p352 = scmp.eq.s32.totalorder %s351, 0
      %s354 = sadd.s32 %s353, 1
      %s355 = scalar_select %p352, %s353, %s354
      %p358 = pneg %p352
      %p359 = scmp.eq.s32.totalorder %s25, 1
      %p360 = por %p358, %p359
      %p361 = scmp.ne.s32.totalorder %s353, %s356
      %p362 = scmp.eq.s32.totalorder %s25, 0
      %p363 = por %p361, %p362
      %p364 = scmp.ne.s32.totalorder %s353, %s356
      %p365 = scmp.eq.s32.totalorder %s30, 1
      %p366 = por %p364, %p365
      %p367 = scmp.ne.s32.totalorder %s356, %s357
      %p368 = scmp.eq.s32.totalorder %s30, 0
      %p369 = por %p367, %p368
      %p370 = scmp.ne.s32.totalorder %s356, %s357
      %p371 = scmp.eq.s32.totalorder %s31, 1
      %p372 = por %p370, %p371
      %p374 = scmp.ne.s32.totalorder %s357, %s373
      %p375 = scmp.eq.s32.totalorder %s31, 0
      %p376 = por %p374, %p375
      %s377 = ssub.s32 %s25, %s32
      %p378 = scmp.eq.s32.totalorder %s377, 0
      %s380 = sadd.s32 %s379, 1
      %s381 = scalar_select %p378, %s379, %s380
      %p384 = pneg %p378
      %p385 = scmp.eq.s32.totalorder %s25, 1
      %p386 = por %p384, %p385
      %p387 = scmp.ne.s32.totalorder %s379, %s382
      %p388 = scmp.eq.s32.totalorder %s25, 0
      %p389 = por %p387, %p388
      %p390 = scmp.ne.s32.totalorder %s379, %s382
      %p391 = scmp.eq.s32.totalorder %s30, 1
      %p392 = por %p390, %p391
      %p393 = scmp.ne.s32.totalorder %s382, %s383
      %p394 = scmp.eq.s32.totalorder %s30, 0
      %p395 = por %p393, %p394
      %p396 = scmp.ne.s32.totalorder %s382, %s383
      %p397 = scmp.eq.s32.totalorder %s31, 1
      %p398 = por %p396, %p397
      %p400 = scmp.ne.s32.totalorder %s383, %s399
      %p401 = scmp.eq.s32.totalorder %s31, 0
      %p402 = por %p400, %p401
      %s403 = ssub.s32 %s25, %s32
      %p404 = scmp.eq.s32.totalorder %s403, 0
      %s406 = sadd.s32 %s405, 1
      %s407 = scalar_select %p404, %s405, %s406
      %p410 = pneg %p404
      %p411 = scmp.eq.s32.totalorder %s25, 1
      %p412 = por %p410, %p411
      %p413 = scmp.ne.s32.totalorder %s405, %s408
      %p414 = scmp.eq.s32.totalorder %s25, 0
      %p415 = por %p413, %p414
      %p416 = scmp.ne.s32.totalorder %s405, %s408
      %p417 = scmp.eq.s32.totalorder %s30, 1
      %p418 = por %p416, %p417
      %p419 = scmp.ne.s32.totalorder %s408, %s409
      %p420 = scmp.eq.s32.totalorder %s30, 0
      %p421 = por %p419, %p420
      %p422 = scmp.ne.s32.totalorder %s408, %s409
      %p423 = scmp.eq.s32.totalorder %s31, 1
      %p424 = por %p422, %p423
      %p426 = scmp.ne.s32.totalorder %s409, %s425
      %p427 = scmp.eq.s32.totalorder %s31, 0
      %p428 = por %p426, %p427
      %s430 = sadd.s32 %s429, 1
      %p433 = scmp.eq.s32.totalorder %s25, 1
      %p434 = scmp.ne.s32.totalorder %s429, %s431
      %p435 = scmp.eq.s32.totalorder %s25, 0
      %p436 = por %p434, %p435
      %p437 = scmp.ne.s32.totalorder %s429, %s431
      %p438 = scmp.eq.s32.totalorder %s30, 1
      %p439 = por %p437, %p438
      %p440 = scmp.ne.s32.totalorder %s431, %s432
      %p441 = scmp.eq.s32.totalorder %s30, 0
      %p442 = por %p440, %p441
      %p443 = scmp.ne.s32.totalorder %s431, %s432
      %p444 = scmp.eq.s32.totalorder %s31, 1
      %p445 = por %p443, %p444
      %p447 = scmp.ne.s32.totalorder %s432, %s446
      %p448 = scmp.eq.s32.totalorder %s31, 0
      %p449 = por %p447, %p448
      %s451 = sadd.s32 %s450, 1
      %p454 = scmp.eq.s32.totalorder %s25, 1
      %p455 = scmp.ne.s32.totalorder %s450, %s452
      %p456 = scmp.eq.s32.totalorder %s25, 0
      %p457 = por %p455, %p456
      %p458 = scmp.ne.s32.totalorder %s450, %s452
      %p459 = scmp.eq.s32.totalorder %s30, 1
      %p460 = por %p458, %p459
      %p461 = scmp.ne.s32.totalorder %s452, %s453
      %p462 = scmp.eq.s32.totalorder %s30, 0
      %p463 = por %p461, %p462
      %p464 = scmp.ne.s32.totalorder %s452, %s453
      %p465 = scmp.eq.s32.totalorder %s31, 1
      %p466 = por %p464, %p465
      %p468 = scmp.ne.s32.totalorder %s453, %s467
      %p469 = scmp.eq.s32.totalorder %s31, 0
      %p470 = por %p468, %p469
      %s472 = sadd.s32 %s471, 1
      %p475 = scmp.eq.s32.totalorder %s25, 1
      %p476 = scmp.ne.s32.totalorder %s471, %s473
      %p477 = scmp.eq.s32.totalorder %s25, 0
      %p478 = por %p476, %p477
      %p479 = scmp.ne.s32.totalorder %s471, %s473
      %p480 = scmp.eq.s32.totalorder %s30, 1
      %p481 = por %p479, %p480
      %p482 = scmp.ne.s32.totalorder %s473, %s474
      %p483 = scmp.eq.s32.totalorder %s30, 0
      %p484 = por %p482, %p483
      %p485 = scmp.ne.s32.totalorder %s473, %s474
      %p486 = scmp.eq.s32.totalorder %s31, 1
      %p487 = por %p485, %p486
      %p489 = scmp.ne.s32.totalorder %s474, %s488
      %p490 = scmp.eq.s32.totalorder %s31, 0
      %p491 = por %p489, %p490
      %p492 = scmp.le.s32.totalorder 1, %s25
      %p493 = scmp.lt.s32.totalorder %s25, 3
      %p494 = pnand %p492, %p493
      %p495 = pneg %p494
      // Predicated region
      $region9: #{tpu_custom_call.1} parent=5 // pred_check
        _
      $region10: #{tpu_custom_call.1} parent=5 // pred_check_branch
        %497 = sbr.rel (%p494) target = $region12
      $region11: #{tpu_custom_call.1} parent=5 // pred_region
        %s498 = ssub.s32 %s25, 1
        // Predicated region
        $region13: #{tpu_custom_call.1} parent=11 // pred_check
          %p499 = pneg %p46
        $region14: #{tpu_custom_call.1} parent=11 // pred_check_branch
          %501 = sbr.rel (%p499) target = $region16
        $region15: #{tpu_custom_call.1} parent=11 // pred_region
          _
        $region16: #{tpu_custom_call.1} parent=11 // pred_fallthru
          _
        // Predicated region
        $region17: #{tpu_custom_call.1} parent=11 // pred_check
          %p502 = pneg %p67
        $region18: #{tpu_custom_call.1} parent=11 // pred_check_branch
          %504 = sbr.rel (%p502) target = $region20
        $region19: #{tpu_custom_call.1} parent=11 // pred_region
          _
        $region20: #{tpu_custom_call.1} parent=11 // pred_fallthru
          _
        // Predicated region
        $region21: #{tpu_custom_call.1} parent=11 // pred_check
          %p505 = pneg %p88
        $region22: #{tpu_custom_call.1} parent=11 // pred_check_branch
          %507 = sbr.rel (%p505) target = $region24
        $region23: #{tpu_custom_call.1} parent=11 // pred_region
          _
        $region24: #{tpu_custom_call.1} parent=11 // pred_fallthru
          _
        // Predicated region
        $region25: #{tpu_custom_call.1} parent=11 // pred_check
          %p508 = pneg %p109
        $region26: #{tpu_custom_call.1} parent=11 // pred_check_branch
          %510 = sbr.rel (%p508) target = $region28
        $region27: #{tpu_custom_call.1} parent=11 // pred_region
          _
        $region28: #{tpu_custom_call.1} parent=11 // pred_fallthru
          _
        // Predicated region
        $region29: #{tpu_custom_call.1} parent=11 // pred_check
          %p511 = pneg %p442
        $region30: #{tpu_custom_call.1} parent=11 // pred_check_branch
          %513 = sbr.rel (%p511) target = $region32
        $region31: #{tpu_custom_call.1} parent=11 // pred_region
          _
        $region32: #{tpu_custom_call.1} parent=11 // pred_fallthru
          _
        // Predicated region
        $region33: #{tpu_custom_call.1} parent=11 // pred_check
          %p514 = pneg %p463
        $region34: #{tpu_custom_call.1} parent=11 // pred_check_branch
          %516 = sbr.rel (%p514) target = $region36
        $region35: #{tpu_custom_call.1} parent=11 // pred_region
          _
        $region36: #{tpu_custom_call.1} parent=11 // pred_fallthru
          _
      $region12: #{tpu_custom_call.1} parent=5 // pred_fallthru
        _
      %p517 = scmp.lt.s32.totalorder %s25, 2
      // Predicated region
      $region37: #{tpu_custom_call.1} parent=5 // pred_check
        %p518 = pneg %p517
      $region38: #{tpu_custom_call.1} parent=5 // pred_check_branch
        %520 = sbr.rel (%p518) target = $region40
      $region39: #{tpu_custom_call.1} parent=5 // pred_region
        // Predicated region
        $region41: #{tpu_custom_call.1} parent=39 // pred_check
          %p521 = pneg %p129
        $region42: #{tpu_custom_call.1} parent=39 // pred_check_branch
          %523 = sbr.rel (%p521) target = $region44
        $region43: #{tpu_custom_call.1} parent=39 // pred_region
          %p524 = scmp.lt.s32.totalorder %s25, 1
          %s525 = scalar_select %p524, %s25, 1
          %s526 = scalar_lea.vmem %s4, %s525
        $region44: #{tpu_custom_call.1} parent=39 // pred_fallthru
          _
        // Predicated region
        $region45: #{tpu_custom_call.1} parent=39 // pred_check
          %p527 = pneg %p155
        $region46: #{tpu_custom_call.1} parent=39 // pred_check_branch
          %529 = sbr.rel (%p527) target = $region48
        $region47: #{tpu_custom_call.1} parent=39 // pred_region
          %p530 = scmp.lt.s32.totalorder %s25, 1
          %s531 = scalar_select %p530, %s25, 1
          %s532 = scalar_lea.vmem %s5, %s531
        $region48: #{tpu_custom_call.1} parent=39 // pred_fallthru
          _
        // Predicated region
        $region49: #{tpu_custom_call.1} parent=39 // pred_check
          %p533 = pneg %p181
        $region50: #{tpu_custom_call.1} parent=39 // pred_check_branch
          %535 = sbr.rel (%p533) target = $region52
        $region51: #{tpu_custom_call.1} parent=39 // pred_region
          %p536 = scmp.lt.s32.totalorder %s25, 1
          %s537 = scalar_select %p536, %s25, 1
          %s538 = smul.addr %s537, 4
          %s539 = smul.addr %s538, 8
          %s540 = scalar_lea.vmem %s6, %s539
        $region52: #{tpu_custom_call.1} parent=39 // pred_fallthru
          _
        // Predicated region
        $region53: #{tpu_custom_call.1} parent=39 // pred_check
          %p541 = pneg %p207
        $region54: #{tpu_custom_call.1} parent=39 // pred_check_branch
          %543 = sbr.rel (%p541) target = $region56
        $region55: #{tpu_custom_call.1} parent=39 // pred_region
          %p544 = scmp.lt.s32.totalorder %s25, 1
          %s545 = scalar_select %p544, %s25, 1
          %s546 = scalar_lea.vmem %s7, %s545
        $region56: #{tpu_custom_call.1} parent=39 // pred_fallthru
          _
        // Predicated region
        $region57: #{tpu_custom_call.1} parent=39 // pred_check
          %p547 = pneg %p233
        $region58: #{tpu_custom_call.1} parent=39 // pred_check_branch
          %549 = sbr.rel (%p547) target = $region60
        $region59: #{tpu_custom_call.1} parent=39 // pred_region
          %p550 = scmp.lt.s32.totalorder %s25, 1
          %s551 = scalar_select %p550, %s25, 1
          %s552 = smul.addr %s551, 4
          %s553 = smul.addr %s552, 8
          %s554 = scalar_lea.vmem %s8, %s553
        $region60: #{tpu_custom_call.1} parent=39 // pred_fallthru
          _
        // Predicated region
        $region61: #{tpu_custom_call.1} parent=39 // pred_check
          %p555 = pneg %p259
        $region62: #{tpu_custom_call.1} parent=39 // pred_check_branch
          %557 = sbr.rel (%p555) target = $region64
        $region63: #{tpu_custom_call.1} parent=39 // pred_region
          %p558 = scmp.lt.s32.totalorder %s25, 1
          %s559 = scalar_select %p558, %s25, 1
          %s560 = scalar_lea.vmem %s9, %s559
        $region64: #{tpu_custom_call.1} parent=39 // pred_fallthru
          _
        // Predicated region
        $region65: #{tpu_custom_call.1} parent=39 // pred_check
          %p561 = pneg %p285
        $region66: #{tpu_custom_call.1} parent=39 // pred_check_branch
          %563 = sbr.rel (%p561) target = $region68
        $region67: #{tpu_custom_call.1} parent=39 // pred_region
          %p564 = scmp.lt.s32.totalorder %s25, 1
          %s565 = scalar_select %p564, %s25, 1
          %s566 = scalar_lea.vmem %s10, %s565
        $region68: #{tpu_custom_call.1} parent=39 // pred_fallthru
          _
        // Predicated region
        $region69: #{tpu_custom_call.1} parent=39 // pred_check
          %p567 = pneg %p311
        $region70: #{tpu_custom_call.1} parent=39 // pred_check_branch
          %569 = sbr.rel (%p567) target = $region72
        $region71: #{tpu_custom_call.1} parent=39 // pred_region
          %p570 = scmp.lt.s32.totalorder %s25, 1
          %s571 = scalar_select %p570, %s25, 1
          %s572 = scalar_lea.vmem %s11, %s571
        $region72: #{tpu_custom_call.1} parent=39 // pred_fallthru
          _
        // Predicated region
        $region73: #{tpu_custom_call.1} parent=39 // pred_check
          %p573 = pneg %p337
        $region74: #{tpu_custom_call.1} parent=39 // pred_check_branch
          %575 = sbr.rel (%p573) target = $region76
        $region75: #{tpu_custom_call.1} parent=39 // pred_region
          %p576 = scmp.lt.s32.totalorder %s25, 1
          %s577 = scalar_select %p576, %s25, 1
          %s578 = smul.addr %s577, 4
          %s579 = smul.addr %s578, 8
          %s580 = scalar_lea.vmem %s12, %s579
        $region76: #{tpu_custom_call.1} parent=39 // pred_fallthru
          _
        // Predicated region
        $region77: #{tpu_custom_call.1} parent=39 // pred_check
          %p581 = pneg %p363
        $region78: #{tpu_custom_call.1} parent=39 // pred_check_branch
          %583 = sbr.rel (%p581) target = $region80
        $region79: #{tpu_custom_call.1} parent=39 // pred_region
          %p584 = scmp.lt.s32.totalorder %s25, 1
          %s585 = scalar_select %p584, %s25, 1
          %s586 = scalar_lea.vmem %s13, %s585
        $region80: #{tpu_custom_call.1} parent=39 // pred_fallthru
          _
        // Predicated region
        $region81: #{tpu_custom_call.1} parent=39 // pred_check
          %p587 = pneg %p389
        $region82: #{tpu_custom_call.1} parent=39 // pred_check_branch
          %589 = sbr.rel (%p587) target = $region84
        $region83: #{tpu_custom_call.1} parent=39 // pred_region
          %p590 = scmp.lt.s32.totalorder %s25, 1
          %s591 = scalar_select %p590, %s25, 1
          %s592 = smul.addr %s591, 16
          %s593 = smul.addr %s592, 8
          %s594 = scalar_lea.vmem %s14, %s593
        $region84: #{tpu_custom_call.1} parent=39 // pred_fallthru
          _
        // Predicated region
        $region85: #{tpu_custom_call.1} parent=39 // pred_check
          %p595 = pneg %p415
        $region86: #{tpu_custom_call.1} parent=39 // pred_check_branch
          %597 = sbr.rel (%p595) target = $region88
        $region87: #{tpu_custom_call.1} parent=39 // pred_region
          %p598 = scmp.lt.s32.totalorder %s25, 1
          %s599 = scalar_select %p598, %s25, 1
          %s600 = scalar_lea.vmem %s15, %s599
        $region88: #{tpu_custom_call.1} parent=39 // pred_fallthru
          _
      $region40: #{tpu_custom_call.1} parent=5 // pred_fallthru
        _
      %p601 = scmp.le.s32.totalorder 1, %s25
      %p602 = scmp.lt.s32.totalorder %s25, 3
      %p603 = pnand %p601, %p602
      %p604 = pneg %p603
      // Predicated region
      $region89: #{tpu_custom_call.1} parent=5 // pred_check
        _
      $region90: #{tpu_custom_call.1} parent=5 // pred_check_branch
        %606 = sbr.rel (%p603) target = $region92
      $region91: #{tpu_custom_call.1} parent=5 // pred_region
        %s607 = ssub.s32 %s25, 1
        %p608 = pneg %p46
        %p609 = pneg %p43
        %p610 = pneg %p67
        %p611 = pneg %p64
        %p612 = pneg %p88
        %p613 = pneg %p85
        %p614 = pneg %p109
        %p615 = pneg %p106
        %p616 = scmp.lt.s32.totalorder %s30, 1
        %s617 = scalar_select %p616, %s30, 1
        %s618 = scalar_lea.vmem %s4, %s617
        %p619 = pneg %p135
        %p620 = pneg %p132
        %p621 = scmp.lt.s32.totalorder %s30, 1
        %s622 = scalar_select %p621, %s30, 1
        %s623 = scalar_lea.vmem %s5, %s622
        %p624 = pneg %p161
        %p625 = pneg %p158
        %p626 = scmp.lt.s32.totalorder %s30, 1
        %s627 = scalar_select %p626, %s30, 1
        %s628 = smul.addr %s627, 4
        %s629 = smul.addr %s628, 8
        %s630 = scalar_lea.vmem %s6, %s629
        %p631 = pneg %p187
        %p632 = pneg %p184
        %p633 = scmp.lt.s32.totalorder %s30, 1
        %s634 = scalar_select %p633, %s30, 1
        %s635 = scalar_lea.vmem %s7, %s634
        %p636 = pneg %p213
        %p637 = pneg %p210
        %p638 = scmp.lt.s32.totalorder %s30, 1
        %s639 = scalar_select %p638, %s30, 1
        %s640 = smul.addr %s639, 4
        %s641 = smul.addr %s640, 8
        %s642 = scalar_lea.vmem %s8, %s641
        %p643 = pneg %p239
        %p644 = pneg %p236
        %p645 = scmp.lt.s32.totalorder %s30, 1
        %s646 = scalar_select %p645, %s30, 1
        %s647 = scalar_lea.vmem %s9, %s646
        %p648 = pneg %p265
        %p649 = pneg %p262
        %p650 = scmp.lt.s32.totalorder %s30, 1
        %s651 = scalar_select %p650, %s30, 1
        %s652 = scalar_lea.vmem %s10, %s651
        %p653 = pneg %p291
        %p654 = pneg %p288
        %p655 = scmp.lt.s32.totalorder %s30, 1
        %s656 = scalar_select %p655, %s30, 1
        %s657 = scalar_lea.vmem %s11, %s656
        %p658 = pneg %p317
        %p659 = pneg %p314
        %p660 = scmp.lt.s32.totalorder %s30, 1
        %s661 = scalar_select %p660, %s30, 1
        %s662 = smul.addr %s661, 4
        %s663 = smul.addr %s662, 8
        %s664 = scalar_lea.vmem %s12, %s663
        %p665 = pneg %p343
        %p666 = pneg %p340
        %p667 = scmp.lt.s32.totalorder %s30, 1
        %s668 = scalar_select %p667, %s30, 1
        %s669 = scalar_lea.vmem %s13, %s668
        %p670 = pneg %p369
        %p671 = pneg %p366
        %p672 = scmp.lt.s32.totalorder %s30, 1
        %s673 = scalar_select %p672, %s30, 1
        %s674 = smul.addr %s673, 16
        %s675 = smul.addr %s674, 8
        %s676 = scalar_lea.vmem %s14, %s675
        %p677 = pneg %p395
        %p678 = pneg %p392
        %p679 = scmp.lt.s32.totalorder %s30, 1
        %s680 = scalar_select %p679, %s30, 1
        %s681 = scalar_lea.vmem %s15, %s680
        %p682 = pneg %p421
        %p683 = pneg %p418
        %p684 = pneg %p442
        %p685 = pneg %p439
        %p686 = pneg %p463
        %p687 = pneg %p460
        %p688 = pneg %p484
        %p689 = pneg %p481
        %p690 = scmp.lt.s32.totalorder %s30, 1
        %s691 = scalar_select %p690, %s30, 1
        %s692 = scalar_lea.vmem %s4, %s691
        %p693 = scmp.lt.s32.totalorder %s30, 1
        %s694 = scalar_select %p693, %s30, 1
        %s695 = scalar_lea.vmem %s5, %s694
        %p696 = scmp.lt.s32.totalorder %s30, 1
        %s697 = scalar_select %p696, %s30, 1
        %s698 = smul.addr %s697, 4
        %s699 = smul.addr %s698, 8
        %s700 = scalar_lea.vmem %s6, %s699
        %p701 = scmp.lt.s32.totalorder %s30, 1
        %s702 = scalar_select %p701, %s30, 1
        %s703 = scalar_lea.vmem %s7, %s702
        %p704 = scmp.lt.s32.totalorder %s30, 1
        %s705 = scalar_select %p704, %s30, 1
        %s706 = smul.addr %s705, 4
        %s707 = smul.addr %s706, 8
        %s708 = scalar_lea.vmem %s8, %s707
        %p709 = scmp.lt.s32.totalorder %s30, 1
        %s710 = scalar_select %p709, %s30, 1
        %s711 = scalar_lea.vmem %s9, %s710
        %p712 = scmp.lt.s32.totalorder %s30, 1
        %s713 = scalar_select %p712, %s30, 1
        %s714 = scalar_lea.vmem %s10, %s713
        %p715 = scmp.lt.s32.totalorder %s30, 1
        %s716 = scalar_select %p715, %s30, 1
        %s717 = scalar_lea.vmem %s11, %s716
        %p718 = scmp.lt.s32.totalorder %s30, 1
        %s719 = scalar_select %p718, %s30, 1
        %s720 = smul.addr %s719, 4
        %s721 = smul.addr %s720, 8
        %s722 = scalar_lea.vmem %s12, %s721
        %p723 = scmp.lt.s32.totalorder %s30, 1
        %s724 = scalar_select %p723, %s30, 1
        %s725 = scalar_lea.vmem %s13, %s724
        %p726 = scmp.lt.s32.totalorder %s30, 1
        %s727 = scalar_select %p726, %s30, 1
        %s728 = smul.addr %s727, 16
        %s729 = smul.addr %s728, 8
        %s730 = scalar_lea.vmem %s14, %s729
        %p731 = scmp.lt.s32.totalorder %s30, 1
        %s732 = scalar_select %p731, %s30, 1
        %s733 = scalar_lea.vmem %s15, %s732
        %p734 = scmp.eq.s32.totalorder %s30, 0
        // Predicated region
        $region93: #{tpu_custom_call.1} parent=91 // pred_check
          %p735 = pneg %p734
        $region94: #{tpu_custom_call.1} parent=91 // pred_check_branch
          %737 = sbr.rel (%p735) target = $region96
        $region95: #{tpu_custom_call.1} parent=91 // pred_region
          %v738 = vld [vmem:[%s0] sm:$0xff]
          %v739 = vld [vmem:[%s0 + $0x8] sm:$0xff]
          %v740 = vld [vmem:[%s0 + $0x10] sm:$0xff]
          %v741 = vld [vmem:[%s0 + $0x18] sm:$0xff]
          %v742 = vld [vmem:[%s1] sm:$0xff]
          %v743 = vld [vmem:[%s2] sm:$0x1]
          %v745 = vperm.slane %v743, 0
          %vm747 = vcmask 64512
          %v749 = vsel %vm747, %v738, 0
          %v752 = vsel %vm747, %v739, 0
          %v755 = vsel %vm747, %v740, 0
          %v758 = vsel %vm747, %v741, 0
          %760 = vmatpush.msra.mxu0 0.0
          %761 = vmatpush.msra.mxu0 0.0
          %762 = vmatpush.msra.mxu0 0.0
          %763 = vmatpush.msra.mxu0 0.0
          %764 = vmatpush.msra.mxu0 0.0
          %765 = vmatpush.msra.mxu0 0.0
          %766 = vmatpush.msra.mxu0 0.0
          %767 = vmatpush.msra.mxu0 0.0
          %768 = vmatpush.msra.mxu0 0.0
          %769 = vmatpush.msra.mxu0 0.0
          %770 = vmatpush.msra.mxu0 0.0
          %771 = vmatpush.msra.mxu0 0.0
          %772 = vmatpush.msra.mxu0 0.0
          %773 = vmatpush.msra.mxu0 0.0
          %774 = vmatpush.msra.mxu0 0.0
          %775 = vmatpush.msra.mxu0 %v742
          %776 = vmatmul.f32.gmra.mxu0 %v749
          %v777 = vpop.f32.mrf.mxu0
          %v778 = vadd.f32 %v745, %v777
          %779 = vmatmul.f32.gmra.mxu0 %v752
          %v780 = vpop.f32.mrf.mxu0
          %v781 = vadd.f32 %v745, %v780
          %782 = vmatmul.f32.gmra.mxu0 %v755
          %v783 = vpop.f32.mrf.mxu0
          %v784 = vadd.f32 %v745, %v783
          %785 = vmatmul.f32.gmra.mxu0 %v758
          %v786 = vpop.f32.mrf.mxu0
          %v787 = vadd.f32 %v745, %v786
          %788 = vdwg.mxu0
          %v789 = vld [vmem:[%s3] sm:$0xff]
          %v790 = vld [vmem:[%s3 + $0x8] sm:$0xff]
          %v791 = vadd.f32 %v778, %v789
          %v792 = vadd.f32 %v781, %v790
          %v793 = vadd.f32 %v784, %v789
          %v794 = vadd.f32 %v787, %v790
          %vm795 = vcmask 261120
          %796 = vst.msk [vmem:[#allocation2] sm:$0xff] %vm795, %v791
          %797 = vst.msk [vmem:[#allocation2 + $0x8] sm:$0xff] %vm795, %v792
          %798 = vst.msk [vmem:[#allocation2 + $0x10] sm:$0xff] %vm795, %v793
          %799 = vst.msk [vmem:[#allocation2 + $0x18] sm:$0xff] %vm795, %v794
          %800 = vst.msk [vmem:[#allocation3] sm:$0xff] %vm795, %v791
          %801 = vst.msk [vmem:[#allocation3 + $0x8] sm:$0xff] %vm795, %v792
          %802 = vst.msk [vmem:[#allocation3 + $0x10] sm:$0xff] %vm795, %v793
          %803 = vst.msk [vmem:[#allocation3 + $0x18] sm:$0xff] %vm795, %v794
        $region96: #{tpu_custom_call.1} parent=91 // pred_fallthru
          _
        %v804 = vld [vmem:[#allocation2] sm:$0xff]
        %v805 = vld [vmem:[#allocation2 + $0x8] sm:$0xff]
        %v806 = vld [vmem:[#allocation2 + $0x10] sm:$0xff]
        %v807 = vld [vmem:[#allocation2 + $0x18] sm:$0xff]
        %v808 = vld [vmem:[%s692] sm:$0x1]
        %v809 = vld [vmem:[%s695] sm:$0x1]
        %vm810 = vcmask 261120
        %v811 = vsel %vm810, %v804, 0.0
        %812 = vadd.xlane.f32.xlu0 %v811
        %v813 = vpop.xlane.xlu0 %812
        %v814 = vsel %vm810, %v805, 0.0
        %815 = vadd.xlane.f32.xlu0 %v814
        %v816 = vpop.xlane.xlu0 %815
        %v817 = vsel %vm810, %v806, 0.0
        %818 = vadd.xlane.f32.xlu0 %v817
        %v819 = vpop.xlane.xlu0 %818
        %v820 = vsel %vm810, %v807, 0.0
        %821 = vadd.xlane.f32.xlu0 %v820
        %v822 = vpop.xlane.xlu0 %821
        %v823 = vrcp.pop 32.0
        %v824 = vmul.f32 32.0, %v823
        %v825 = vsub.f32 1.0, %v824
        %v826 = vmul.f32 %v823, %v825
        %v827 = vadd.f32 %v823, %v826
        %vm828 = vweird.f32 %v823
        %v829 = vsel %vm828, %v823, %v827
        %v830 = vmul.f32 %v813, %v829
        %v831 = vmul.f32 %v816, %v829
        %v832 = vmul.f32 %v819, %v829
        %v833 = vmul.f32 %v822, %v829
        %v834 = vmul.f32 %v804, %v804
        %v835 = vmul.f32 %v805, %v805
        %v836 = vmul.f32 %v806, %v806
        %v837 = vmul.f32 %v807, %v807
        %v838 = vsel %vm810, %v834, 0.0
        %839 = vadd.xlane.f32.xlu0 %v838
        %v840 = vpop.xlane.xlu0 %839
        %v841 = vsel %vm810, %v835, 0.0
        %842 = vadd.xlane.f32.xlu0 %v841
        %v843 = vpop.xlane.xlu0 %842
        %v844 = vsel %vm810, %v836, 0.0
        %845 = vadd.xlane.f32.xlu0 %v844
        %v846 = vpop.xlane.xlu0 %845
        %v847 = vsel %vm810, %v837, 0.0
        %848 = vadd.xlane.f32.xlu0 %v847
        %v849 = vpop.xlane.xlu0 %848
        %v850 = vmul.f32 %v840, %v829
        %v851 = vmul.f32 %v843, %v829
        %v852 = vmul.f32 %v846, %v829
        %v853 = vmul.f32 %v849, %v829
        %v854 = vmul.f32 %v830, %v830
        %v855 = vmul.f32 %v831, %v831
        %v856 = vmul.f32 %v832, %v832
        %v857 = vmul.f32 %v833, %v833
        %v858 = vsub.f32 %v850, %v854
        %v859 = vsub.f32 %v851, %v855
        %v860 = vsub.f32 %v852, %v856
        %v861 = vsub.f32 %v853, %v857
        %v862 = vsub.f32 %v804, %v830
        %v863 = vsub.f32 %v805, %v831
        %v864 = vsub.f32 %v806, %v832
        %v865 = vsub.f32 %v807, %v833
        %v866 = vadd.f32 %v858, 1e-05
        %v867 = vadd.f32 %v859, 1e-05
        %v868 = vadd.f32 %v860, 1e-05
        %v869 = vadd.f32 %v861, 1e-05
        %v870 = vrsqrt.pop %v866
        %v871 = vmul.f32 %v870, %v866
        %v872 = vmul.f32 %v871, %v870
        %v873 = vmul.f32 0.5, %v872
        %v874 = vsub.f32 1.5, %v873
        %v875 = vmul.f32 %v870, %v874
        %vm876 = vweird.f32 %v866
        %vm877 = vweird.f32 %v870
        %vm878 = vmor %vm876, %vm877
        %v879 = vsel %vm878, %v870, %v875
        %v880 = vrsqrt.pop %v867
        %v881 = vmul.f32 %v880, %v867
        %v882 = vmul.f32 %v881, %v880
        %v883 = vmul.f32 0.5, %v882
        %v884 = vsub.f32 1.5, %v883
        %v885 = vmul.f32 %v880, %v884
        %vm886 = vweird.f32 %v867
        %vm887 = vweird.f32 %v880
        %vm888 = vmor %vm886, %vm887
        %v889 = vsel %vm888, %v880, %v885
        %v890 = vrsqrt.pop %v868
        %v891 = vmul.f32 %v890, %v868
        %v892 = vmul.f32 %v891, %v890
        %v893 = vmul.f32 0.5, %v892
        %v894 = vsub.f32 1.5, %v893
        %v895 = vmul.f32 %v890, %v894
        %vm896 = vweird.f32 %v868
        %vm897 = vweird.f32 %v890
        %vm898 = vmor %vm896, %vm897
        %v899 = vsel %vm898, %v890, %v895
        %v900 = vrsqrt.pop %v869
        %v901 = vmul.f32 %v900, %v869
        %v902 = vmul.f32 %v901, %v900
        %v903 = vmul.f32 0.5, %v902
        %v904 = vsub.f32 1.5, %v903
        %v905 = vmul.f32 %v900, %v904
        %vm906 = vweird.f32 %v869
        %vm907 = vweird.f32 %v900
        %vm908 = vmor %vm906, %vm907
        %v909 = vsel %vm908, %v900, %v905
        %v910 = vmul.f32 %v862, %v879
        %v911 = vmul.f32 %v863, %v889
        %v912 = vmul.f32 %v864, %v899
        %v913 = vmul.f32 %v865, %v909
        %v915 = vperm.slane %v808, 0
        %v917 = vmul.f32 %v910, %v915
        %v918 = vmul.f32 %v911, %v915
        %v919 = vmul.f32 %v912, %v915
        %v920 = vmul.f32 %v913, %v915
        %v922 = vperm.slane %v809, 0
        %v924 = vadd.f32 %v917, %v922
        %v925 = vadd.f32 %v918, %v922
        %v926 = vadd.f32 %v919, %v922
        %v927 = vadd.f32 %v920, %v922
        %v928 = vld [vmem:[%s700] sm:$0xff]
        %v929 = vld [vmem:[%s700 + $0x8] sm:$0xff]
        %v930 = vld [vmem:[%s700 + $0x10] sm:$0xff]
        %v931 = vld [vmem:[%s700 + $0x18] sm:$0xff]
        %v932 = vld [vmem:[%s703] sm:$0x1]
        %v934 = vperm.slane %v932, 0
        %v937 = vsel %vm810, %v924, 0
        %v940 = vsel %vm810, %v925, 0
        %v943 = vsel %vm810, %v926, 0
        %v946 = vsel %vm810, %v927, 0
        %948 = vmatpush.msra.mxu0 0.0
        %949 = vmatpush.msra.mxu0 0.0
        %950 = vmatpush.msra.mxu0 0.0
        %951 = vmatpush.msra.mxu0 0.0
        %952 = vmatpush.msra.mxu0 0.0
        %953 = vmatpush.msra.mxu0 0.0
        %954 = vmatpush.msra.mxu0 0.0
        %955 = vmatpush.msra.mxu0 0.0
        %956 = vmatpush.msra.mxu0 0.0
        %957 = vmatpush.msra.mxu0 0.0
        %958 = vmatpush.msra.mxu0 0.0
        %959 = vmatpush.msra.mxu0 0.0
        %960 = vmatpush.msra.mxu0 %v931
        %961 = vmatpush.msra.mxu0 %v930
        %962 = vmatpush.msra.mxu0 %v929
        %963 = vmatpush.msra.mxu0 %v928
        %964 = vmatmul.f32.gmra.mxu0 %v937
        %v965 = vpop.f32.mrf.mxu0
        %v966 = vadd.f32 %v934, %v965
        %967 = vmatmul.f32.gmra.mxu0 %v940
        %v968 = vpop.f32.mrf.mxu0
        %v969 = vadd.f32 %v934, %v968
        %970 = vmatmul.f32.gmra.mxu0 %v943
        %v971 = vpop.f32.mrf.mxu0
        %v972 = vadd.f32 %v934, %v971
        %973 = vmatmul.f32.gmra.mxu0 %v946
        %v974 = vpop.f32.mrf.mxu0
        %v975 = vadd.f32 %v934, %v974
        %976 = vdwg.mxu0
        %979 = vrot.lane.b32.xlu0 %v966, 120
        %v980 = vpop.permute.xlu0 %979
        %981 = vrot.lane.b32.xlu0 %v969, 120
        %v982 = vpop.permute.xlu0 %981
        %985 = vrot.lane.b32.xlu0 %v966, 112
        %v986 = vpop.permute.xlu0 %985
        %987 = vrot.lane.b32.xlu0 %v969, 112
        %v988 = vpop.permute.xlu0 %987
        %991 = vrot.lane.b32.xlu0 %v966, 104
        %v992 = vpop.permute.xlu0 %991
        %993 = vrot.lane.b32.xlu0 %v969, 104
        %v994 = vpop.permute.xlu0 %993
        %v997 = vrot.slane %v986, 4
        %vm998 = vcmask 1047556
        %v999 = vsel %vm998, %v997, %v966
        %v1000 = vrot.slane %v966, 4
        %v1001 = vsel %vm998, %v986, %v1000
        %v1003 = vunpack.c.l.s4 1983009808
        %v1004 = vunpack.c.0.s8 %v1003
        %v1005 = vperm.slane %v999, %v1004
        %v1007 = vunpack.c.l.s4 1983009808
        %v1008 = vunpack.c.0.s8 %v1007
        %v1009 = vperm.slane %v1001, %v1008
        %v1010 = vrot.slane %v992, 4
        %v1011 = vsel %vm998, %v1010, %v980
        %v1012 = vrot.slane %v980, 4
        %v1013 = vsel %vm998, %v992, %v1012
        %v1015 = vunpack.c.l.s4 1983009808
        %v1016 = vunpack.c.0.s8 %v1015
        %v1017 = vperm.slane %v1011, %v1016
        %v1019 = vunpack.c.l.s4 1983009808
        %v1020 = vunpack.c.0.s8 %v1019
        %v1021 = vperm.slane %v1013, %v1020
        %v1022 = vrot.slane %v1017, 4
        %v1023 = vsel %vm998, %v1022, %v1005
        %v1024 = vrot.slane %v1005, 4
        %v1025 = vsel %vm998, %v1017, %v1024
        %v1027 = vunpack.c.l.s4 1934713408
        %v1028 = vunpack.c.0.s8 %v1027
        %v1029 = vperm.slane %v1023, %v1028
        %v1031 = vunpack.c.l.s4 1934713408
        %v1032 = vunpack.c.0.s8 %v1031
        %v1033 = vperm.slane %v1025, %v1032
        %v1034 = vrot.slane %v1021, 4
        %v1035 = vsel %vm998, %v1034, %v1009
        %v1036 = vrot.slane %v1009, 4
        %v1037 = vsel %vm998, %v1021, %v1036
        %v1039 = vunpack.c.l.s4 1934713408
        %v1040 = vunpack.c.0.s8 %v1039
        %v1041 = vperm.slane %v1035, %v1040
        %v1043 = vunpack.c.l.s4 1934713408
        %v1044 = vunpack.c.0.s8 %v1043
        %v1045 = vperm.slane %v1037, %v1044
        %v1046 = vrot.slane %v1029, 4
        %v1047 = vsel %vm998, 0.0, %v1046
        %v1048 = vrot.slane %v1033, 4
        %v1049 = vsel %vm998, 0.0, %v1048
        %v1050 = vrot.slane %v1041, 4
        %v1051 = vsel %vm998, 0.0, %v1050
        %v1052 = vrot.slane %v1045, 4
        %v1053 = vsel %vm998, 0.0, %v1052
        %v1054 = vrot.slane %v988, 4
        %v1055 = vsel %vm998, %v1054, %v969
        %v1056 = vrot.slane %v969, 4
        %v1057 = vsel %vm998, %v988, %v1056
        %v1059 = vunpack.c.l.s4 1983009808
        %v1060 = vunpack.c.0.s8 %v1059
        %v1061 = vperm.slane %v1055, %v1060
        %v1063 = vunpack.c.l.s4 1983009808
        %v1064 = vunpack.c.0.s8 %v1063
        %v1065 = vperm.slane %v1057, %v1064
        %v1066 = vrot.slane %v994, 4
        %v1067 = vsel %vm998, %v1066, %v982
        %v1068 = vrot.slane %v982, 4
        %v1069 = vsel %vm998, %v994, %v1068
        %v1071 = vunpack.c.l.s4 1983009808
        %v1072 = vunpack.c.0.s8 %v1071
        %v1073 = vperm.slane %v1067, %v1072
        %v1075 = vunpack.c.l.s4 1983009808
        %v1076 = vunpack.c.0.s8 %v1075
        %v1077 = vperm.slane %v1069, %v1076
        %v1078 = vrot.slane %v1073, 4
        %v1079 = vsel %vm998, %v1078, %v1061
        %v1080 = vrot.slane %v1061, 4
        %v1081 = vsel %vm998, %v1073, %v1080
        %v1083 = vunpack.c.l.s4 1934713408
        %v1084 = vunpack.c.0.s8 %v1083
        %v1085 = vperm.slane %v1079, %v1084
        %v1087 = vunpack.c.l.s4 1934713408
        %v1088 = vunpack.c.0.s8 %v1087
        %v1089 = vperm.slane %v1081, %v1088
        %v1090 = vrot.slane %v1077, 4
        %v1091 = vsel %vm998, %v1090, %v1065
        %v1092 = vrot.slane %v1065, 4
        %v1093 = vsel %vm998, %v1077, %v1092
        %v1095 = vunpack.c.l.s4 1934713408
        %v1096 = vunpack.c.0.s8 %v1095
        %v1097 = vperm.slane %v1091, %v1096
        %v1099 = vunpack.c.l.s4 1934713408
        %v1100 = vunpack.c.0.s8 %v1099
        %v1101 = vperm.slane %v1093, %v1100
        %v1102 = vrot.slane %v1085, 4
        %v1103 = vsel %vm998, 0.0, %v1102
        %v1104 = vrot.slane %v1089, 4
        %v1105 = vsel %vm998, 0.0, %v1104
        %v1106 = vrot.slane %v1097, 4
        %v1107 = vsel %vm998, 0.0, %v1106
        %v1108 = vrot.slane %v1101, 4
        %v1109 = vsel %vm998, 0.0, %v1108
        %v1110 = vmul.f32 %v1029, 0.35355338
        %v1111 = vmul.f32 %v1047, 0.35355338
        %v1112 = vmul.f32 %v1033, 0.35355338
        %v1113 = vmul.f32 %v1049, 0.35355338
        %v1114 = vmul.f32 %v1041, 0.35355338
        %v1115 = vmul.f32 %v1051, 0.35355338
        %v1116 = vmul.f32 %v1045, 0.35355338
        %v1117 = vmul.f32 %v1053, 0.35355338
        %v1118 = vmul.f32 %v1085, 0.35355338
        %v1119 = vmul.f32 %v1103, 0.35355338
        %v1120 = vmul.f32 %v1089, 0.35355338
        %v1121 = vmul.f32 %v1105, 0.35355338
        %v1122 = vmul.f32 %v1097, 0.35355338
        %v1123 = vmul.f32 %v1107, 0.35355338
        %v1124 = vmul.f32 %v1101, 0.35355338
        %v1125 = vmul.f32 %v1109, 0.35355338
        %v1126 = vrot.slane %v1112, 4
        %v1127 = vsel %vm998, %v1126, %v1110
        %v1129 = vunpack.c.l.s4 1983009808
        %v1130 = vunpack.c.0.s8 %v1129
        %v1131 = vperm.slane %v1127, %v1130
        %v1132 = vrot.slane %v1113, 4
        %v1133 = vsel %vm998, %v1132, %v1111
        %v1135 = vunpack.c.l.s4 1983009808
        %v1136 = vunpack.c.0.s8 %v1135
        %v1137 = vperm.slane %v1133, %v1136
        %v1138 = vrot.slane %v1116, 4
        %v1139 = vsel %vm998, %v1138, %v1114
        %v1141 = vunpack.c.l.s4 1983009808
        %v1142 = vunpack.c.0.s8 %v1141
        %v1143 = vperm.slane %v1139, %v1142
        %v1144 = vrot.slane %v1117, 4
        %v1145 = vsel %vm998, %v1144, %v1115
        %v1147 = vunpack.c.l.s4 1983009808
        %v1148 = vunpack.c.0.s8 %v1147
        %v1149 = vperm.slane %v1145, %v1148
        %v1150 = vrot.slane %v1137, 4
        %v1151 = vsel %vm998, %v1150, %v1131
        %v1152 = vrot.slane %v1131, 4
        %v1153 = vsel %vm998, %v1137, %v1152
        %v1155 = vunpack.c.l.s4 1934713408
        %v1156 = vunpack.c.0.s8 %v1155
        %v1157 = vperm.slane %v1151, %v1156
        %v1159 = vunpack.c.l.s4 1934713408
        %v1160 = vunpack.c.0.s8 %v1159
        %v1161 = vperm.slane %v1153, %v1160
        %v1162 = vrot.slane %v1149, 4
        %v1163 = vsel %vm998, %v1162, %v1143
        %v1164 = vrot.slane %v1143, 4
        %v1165 = vsel %vm998, %v1149, %v1164
        %v1167 = vunpack.c.l.s4 1934713408
        %v1168 = vunpack.c.0.s8 %v1167
        %v1169 = vperm.slane %v1163, %v1168
        %v1171 = vunpack.c.l.s4 1934713408
        %v1172 = vunpack.c.0.s8 %v1171
        %v1173 = vperm.slane %v1165, %v1172
        %v1174 = vrot.slane %v1169, 4
        %v1175 = vsel %vm998, %v1174, %v1157
        %v1176 = vrot.slane %v1157, 4
        %v1177 = vsel %vm998, %v1169, %v1176
        %v1178 = vrot.slane %v1173, 4
        %v1179 = vsel %vm998, %v1178, %v1161
        %v1180 = vrot.slane %v1161, 4
        %v1181 = vsel %vm998, %v1173, %v1180
        %v1182 = vrot.slane %v1120, 4
        %v1183 = vsel %vm998, %v1182, %v1118
        %v1185 = vunpack.c.l.s4 1983009808
        %v1186 = vunpack.c.0.s8 %v1185
        %v1187 = vperm.slane %v1183, %v1186
        %v1188 = vrot.slane %v1121, 4
        %v1189 = vsel %vm998, %v1188, %v1119
        %v1191 = vunpack.c.l.s4 1983009808
        %v1192 = vunpack.c.0.s8 %v1191
        %v1193 = vperm.slane %v1189, %v1192
        %v1194 = vrot.slane %v1124, 4
        %v1195 = vsel %vm998, %v1194, %v1122
        %v1197 = vunpack.c.l.s4 1983009808
        %v1198 = vunpack.c.0.s8 %v1197
        %v1199 = vperm.slane %v1195, %v1198
        %v1200 = vrot.slane %v1125, 4
        %v1201 = vsel %vm998, %v1200, %v1123
        %v1203 = vunpack.c.l.s4 1983009808
        %v1204 = vunpack.c.0.s8 %v1203
        %v1205 = vperm.slane %v1201, %v1204
        %v1206 = vrot.slane %v1193, 4
        %v1207 = vsel %vm998, %v1206, %v1187
        %v1208 = vrot.slane %v1187, 4
        %v1209 = vsel %vm998, %v1193, %v1208
        %v1211 = vunpack.c.l.s4 1934713408
        %v1212 = vunpack.c.0.s8 %v1211
        %v1213 = vperm.slane %v1207, %v1212
        %v1215 = vunpack.c.l.s4 1934713408
        %v1216 = vunpack.c.0.s8 %v1215
        %v1217 = vperm.slane %v1209, %v1216
        %v1218 = vrot.slane %v1205, 4
        %v1219 = vsel %vm998, %v1218, %v1199
        %v1220 = vrot.slane %v1199, 4
        %v1221 = vsel %vm998, %v1205, %v1220
        %v1223 = vunpack.c.l.s4 1934713408
        %v1224 = vunpack.c.0.s8 %v1223
        %v1225 = vperm.slane %v1219, %v1224
        %v1227 = vunpack.c.l.s4 1934713408
        %v1228 = vunpack.c.0.s8 %v1227
        %v1229 = vperm.slane %v1221, %v1228
        %v1230 = vrot.slane %v1225, 4
        %v1231 = vsel %vm998, %v1230, %v1213
        %v1232 = vrot.slane %v1213, 4
        %v1233 = vsel %vm998, %v1225, %v1232
        %v1234 = vrot.slane %v1229, 4
        %v1235 = vsel %vm998, %v1234, %v1217
        %v1236 = vrot.slane %v1217, 4
        %v1237 = vsel %vm998, %v1229, %v1236
        %1238 = vrot.lane.b32.xlu0 %v966, 96
        %v1239 = vpop.permute.xlu0 %1238
        %1240 = vrot.lane.b32.xlu0 %v969, 96
        %v1241 = vpop.permute.xlu0 %1240
        %1242 = vrot.lane.b32.xlu0 %v980, 96
        %v1243 = vpop.permute.xlu0 %1242
        %1244 = vrot.lane.b32.xlu0 %v982, 96
        %v1245 = vpop.permute.xlu0 %1244
        %1246 = vrot.lane.b32.xlu0 %v986, 96
        %v1247 = vpop.permute.xlu0 %1246
        %1248 = vrot.lane.b32.xlu0 %v988, 96
        %v1249 = vpop.permute.xlu0 %1248
        %1250 = vrot.lane.b32.xlu0 %v992, 96
        %v1251 = vpop.permute.xlu0 %1250
        %1252 = vrot.lane.b32.xlu0 %v994, 96
        %v1253 = vpop.permute.xlu0 %1252
        %1262 = vxpose.xlu0.b32.start [1/16] %v1239, 128
        %1263 = vxpose.xlu0.b32.cont [2/16] %v1241, 128
        %1264 = vxpose.xlu0.b32.cont [3/16] 0.0, 128
        %1265 = vxpose.xlu0.b32.cont [4/16] 0.0, 128
        %1266 = vxpose.xlu0.b32.cont [5/16] 0.0, 128
        %1267 = vxpose.xlu0.b32.cont [6/16] 0.0, 128
        %1268 = vxpose.xlu0.b32.cont [7/16] 0.0, 128
        %1269 = vxpose.xlu0.b32.cont [8/16] 0.0, 128
        %1270 = vxpose.xlu0.b32.cont [9/16] 0.0, 128
        %1271 = vxpose.xlu0.b32.cont [10/16] 0.0, 128
        %1272 = vxpose.xlu0.b32.cont [11/16] 0.0, 128
        %1273 = vxpose.xlu0.b32.cont [12/16] 0.0, 128
        %1274 = vxpose.xlu0.b32.cont [13/16] 0.0, 128
        %1275 = vxpose.xlu0.b32.cont [14/16] 0.0, 128
        %1276 = vxpose.xlu0.b32.cont [15/16] 0.0, 128
        %1277 = vxpose.xlu0.b32.end [16/16] 0.0, 128
        %v1278 = vpop.trf.xlu0
        %v1279 = vpop.trf.xlu0
        %v1280 = vpop.trf.xlu0
        %v1281 = vpop.trf.xlu0
        %v1282 = vpop.trf.xlu0
        %v1283 = vpop.trf.xlu0
        %v1284 = vpop.trf.xlu0
        %v1285 = vpop.trf.xlu0
        %v1286 = vpop.trf.xlu0
        %v1287 = vpop.trf.xlu0
        %v1288 = vpop.trf.xlu0
        %v1289 = vpop.trf.xlu0
        %v1290 = vpop.trf.xlu0
        %v1291 = vpop.trf.xlu0
        %v1292 = vpop.trf.xlu0
        %v1293 = vpop.trf.xlu0
        %1294 = vxpose.xlu0.b32.start [1/16] %v1243, 128
        %1295 = vxpose.xlu0.b32.cont [2/16] %v1245, 128
        %1296 = vxpose.xlu0.b32.cont [3/16] 0.0, 128
        %1297 = vxpose.xlu0.b32.cont [4/16] 0.0, 128
        %1298 = vxpose.xlu0.b32.cont [5/16] 0.0, 128
        %1299 = vxpose.xlu0.b32.cont [6/16] 0.0, 128
        %1300 = vxpose.xlu0.b32.cont [7/16] 0.0, 128
        %1301 = vxpose.xlu0.b32.cont [8/16] 0.0, 128
        %1302 = vxpose.xlu0.b32.cont [9/16] 0.0, 128
        %1303 = vxpose.xlu0.b32.cont [10/16] 0.0, 128
        %1304 = vxpose.xlu0.b32.cont [11/16] 0.0, 128
        %1305 = vxpose.xlu0.b32.cont [12/16] 0.0, 128
        %1306 = vxpose.xlu0.b32.cont [13/16] 0.0, 128
        %1307 = vxpose.xlu0.b32.cont [14/16] 0.0, 128
        %1308 = vxpose.xlu0.b32.cont [15/16] 0.0, 128
        %1309 = vxpose.xlu0.b32.end [16/16] 0.0, 128
        %v1310 = vpop.trf.xlu0
        %v1311 = vpop.trf.xlu0
        %v1312 = vpop.trf.xlu0
        %v1313 = vpop.trf.xlu0
        %v1314 = vpop.trf.xlu0
        %v1315 = vpop.trf.xlu0
        %v1316 = vpop.trf.xlu0
        %v1317 = vpop.trf.xlu0
        %v1318 = vpop.trf.xlu0
        %v1319 = vpop.trf.xlu0
        %v1320 = vpop.trf.xlu0
        %v1321 = vpop.trf.xlu0
        %v1322 = vpop.trf.xlu0
        %v1323 = vpop.trf.xlu0
        %v1324 = vpop.trf.xlu0
        %v1325 = vpop.trf.xlu0
        %1326 = vxpose.xlu0.b32.start [1/16] %v1247, 128
        %1327 = vxpose.xlu0.b32.cont [2/16] %v1249, 128
        %1328 = vxpose.xlu0.b32.cont [3/16] 0.0, 128
        %1329 = vxpose.xlu0.b32.cont [4/16] 0.0, 128
        %1330 = vxpose.xlu0.b32.cont [5/16] 0.0, 128
        %1331 = vxpose.xlu0.b32.cont [6/16] 0.0, 128
        %1332 = vxpose.xlu0.b32.cont [7/16] 0.0, 128
        %1333 = vxpose.xlu0.b32.cont [8/16] 0.0, 128
        %1334 = vxpose.xlu0.b32.cont [9/16] 0.0, 128
        %1335 = vxpose.xlu0.b32.cont [10/16] 0.0, 128
        %1336 = vxpose.xlu0.b32.cont [11/16] 0.0, 128
        %1337 = vxpose.xlu0.b32.cont [12/16] 0.0, 128
        %1338 = vxpose.xlu0.b32.cont [13/16] 0.0, 128
        %1339 = vxpose.xlu0.b32.cont [14/16] 0.0, 128
        %1340 = vxpose.xlu0.b32.cont [15/16] 0.0, 128
        %1341 = vxpose.xlu0.b32.end [16/16] 0.0, 128
        %v1342 = vpop.trf.xlu0
        %v1343 = vpop.trf.xlu0
        %v1344 = vpop.trf.xlu0
        %v1345 = vpop.trf.xlu0
        %v1346 = vpop.trf.xlu0
        %v1347 = vpop.trf.xlu0
        %v1348 = vpop.trf.xlu0
        %v1349 = vpop.trf.xlu0
        %v1350 = vpop.trf.xlu0
        %v1351 = vpop.trf.xlu0
        %v1352 = vpop.trf.xlu0
        %v1353 = vpop.trf.xlu0
        %v1354 = vpop.trf.xlu0
        %v1355 = vpop.trf.xlu0
        %v1356 = vpop.trf.xlu0
        %v1357 = vpop.trf.xlu0
        %1358 = vxpose.xlu0.b32.start [1/16] %v1251, 128
        %1359 = vxpose.xlu0.b32.cont [2/16] %v1253, 128
        %1360 = vxpose.xlu0.b32.cont [3/16] 0.0, 128
        %1361 = vxpose.xlu0.b32.cont [4/16] 0.0, 128
        %1362 = vxpose.xlu0.b32.cont [5/16] 0.0, 128
        %1363 = vxpose.xlu0.b32.cont [6/16] 0.0, 128
        %1364 = vxpose.xlu0.b32.cont [7/16] 0.0, 128
        %1365 = vxpose.xlu0.b32.cont [8/16] 0.0, 128
        %1366 = vxpose.xlu0.b32.cont [9/16] 0.0, 128
        %1367 = vxpose.xlu0.b32.cont [10/16] 0.0, 128
        %1368 = vxpose.xlu0.b32.cont [11/16] 0.0, 128
        %1369 = vxpose.xlu0.b32.cont [12/16] 0.0, 128
        %1370 = vxpose.xlu0.b32.cont [13/16] 0.0, 128
        %1371 = vxpose.xlu0.b32.cont [14/16] 0.0, 128
        %1372 = vxpose.xlu0.b32.cont [15/16] 0.0, 128
        %1373 = vxpose.xlu0.b32.end [16/16] 0.0, 128
        %v1374 = vpop.trf.xlu0
        %v1375 = vpop.trf.xlu0
        %v1376 = vpop.trf.xlu0
        %v1377 = vpop.trf.xlu0
        %v1378 = vpop.trf.xlu0
        %v1379 = vpop.trf.xlu0
        %v1380 = vpop.trf.xlu0
        %v1381 = vpop.trf.xlu0
        %v1382 = vpop.trf.xlu0
        %v1383 = vpop.trf.xlu0
        %v1384 = vpop.trf.xlu0
        %v1385 = vpop.trf.xlu0
        %v1386 = vpop.trf.xlu0
        %v1387 = vpop.trf.xlu0
        %v1388 = vpop.trf.xlu0
        %v1389 = vpop.trf.xlu0
        %vm1390 = vcmask 64512
        %v1392 = vsel %vm1390, %v1175, 0
        %v1395 = vsel %vm1390, %v1231, 0
        %1397 = vmatpush.msra.mxu0 0.0
        %1398 = vmatpush.msra.mxu0 0.0
        %1399 = vmatpush.msra.mxu0 0.0
        %1400 = vmatpush.msra.mxu0 0.0
        %1401 = vmatpush.msra.mxu0 0.0
        %1402 = vmatpush.msra.mxu0 0.0
        %1403 = vmatpush.msra.mxu0 0.0
        %1404 = vmatpush.msra.mxu0 0.0
        %1405 = vmatpush.msra.mxu0 0.0
        %1406 = vmatpush.msra.mxu0 0.0
        %1407 = vmatpush.msra.mxu0 0.0
        %1408 = vmatpush.msra.mxu0 0.0
        %1409 = vmatpush.msra.mxu0 0.0
        %1410 = vmatpush.msra.mxu0 0.0
        %1411 = vmatpush.msra.mxu0 0.0
        %1412 = vmatpush.msra.mxu0 %v1278
        %1413 = vmatmul.f32.gmra.mxu0 %v1392
        %v1414 = vpop.f32.mrf.mxu0
        %v1415 = vadd.f32 0.0, %v1414
        %1416 = vmatmul.f32.gmra.mxu0 %v1395
        %v1417 = vpop.f32.mrf.mxu0
        %v1418 = vadd.f32 0.0, %v1417
        %1419 = vdwg.mxu0
        %v1421 = vsel %vm1390, %v1177, 0
        %v1424 = vsel %vm1390, %v1233, 0
        %1426 = vmatpush.msra.mxu0 0.0
        %1427 = vmatpush.msra.mxu0 0.0
        %1428 = vmatpush.msra.mxu0 0.0
        %1429 = vmatpush.msra.mxu0 0.0
        %1430 = vmatpush.msra.mxu0 0.0
        %1431 = vmatpush.msra.mxu0 0.0
        %1432 = vmatpush.msra.mxu0 0.0
        %1433 = vmatpush.msra.mxu0 0.0
        %1434 = vmatpush.msra.mxu0 0.0
        %1435 = vmatpush.msra.mxu0 0.0
        %1436 = vmatpush.msra.mxu0 0.0
        %1437 = vmatpush.msra.mxu0 0.0
        %1438 = vmatpush.msra.mxu0 0.0
        %1439 = vmatpush.msra.mxu0 0.0
        %1440 = vmatpush.msra.mxu0 0.0
        %1441 = vmatpush.msra.mxu0 %v1310
        %1442 = vmatmul.f32.gmra.mxu0 %v1421
        %v1443 = vpop.f32.mrf.mxu0
        %v1444 = vadd.f32 0.0, %v1443
        %1445 = vmatmul.f32.gmra.mxu0 %v1424
        %v1446 = vpop.f32.mrf.mxu0
        %v1447 = vadd.f32 0.0, %v1446
        %1448 = vdwg.mxu0
        %v1450 = vsel %vm1390, %v1179, 0
        %v1453 = vsel %vm1390, %v1235, 0
        %1455 = vmatpush.msra.mxu0 0.0
        %1456 = vmatpush.msra.mxu0 0.0
        %1457 = vmatpush.msra.mxu0 0.0
        %1458 = vmatpush.msra.mxu0 0.0
        %1459 = vmatpush.msra.mxu0 0.0
        %1460 = vmatpush.msra.mxu0 0.0
        %1461 = vmatpush.msra.mxu0 0.0
        %1462 = vmatpush.msra.mxu0 0.0
        %1463 = vmatpush.msra.mxu0 0.0
        %1464 = vmatpush.msra.mxu0 0.0
        %1465 = vmatpush.msra.mxu0 0.0
        %1466 = vmatpush.msra.mxu0 0.0
        %1467 = vmatpush.msra.mxu0 0.0
        %1468 = vmatpush.msra.mxu0 0.0
        %1469 = vmatpush.msra.mxu0 0.0
        %1470 = vmatpush.msra.mxu0 %v1342
        %1471 = vmatmul.f32.gmra.mxu0 %v1450
        %v1472 = vpop.f32.mrf.mxu0
        %v1473 = vadd.f32 0.0, %v1472
        %1474 = vmatmul.f32.gmra.mxu0 %v1453
        %v1475 = vpop.f32.mrf.mxu0
        %v1476 = vadd.f32 0.0, %v1475
        %1477 = vdwg.mxu0
        %v1479 = vsel %vm1390, %v1181, 0
        %v1482 = vsel %vm1390, %v1237, 0
        %1484 = vmatpush.msra.mxu0 0.0
        %1485 = vmatpush.msra.mxu0 0.0
        %1486 = vmatpush.msra.mxu0 0.0
        %1487 = vmatpush.msra.mxu0 0.0
        %1488 = vmatpush.msra.mxu0 0.0
        %1489 = vmatpush.msra.mxu0 0.0
        %1490 = vmatpush.msra.mxu0 0.0
        %1491 = vmatpush.msra.mxu0 0.0
        %1492 = vmatpush.msra.mxu0 0.0
        %1493 = vmatpush.msra.mxu0 0.0
        %1494 = vmatpush.msra.mxu0 0.0
        %1495 = vmatpush.msra.mxu0 0.0
        %1496 = vmatpush.msra.mxu0 0.0
        %1497 = vmatpush.msra.mxu0 0.0
        %1498 = vmatpush.msra.mxu0 0.0
        %1499 = vmatpush.msra.mxu0 %v1374
        %1500 = vmatmul.f32.gmra.mxu0 %v1479
        %v1501 = vpop.f32.mrf.mxu0
        %v1502 = vadd.f32 0.0, %v1501
        %1503 = vmatmul.f32.gmra.mxu0 %v1482
        %v1504 = vpop.f32.mrf.mxu0
        %v1505 = vadd.f32 0.0, %v1504
        %1506 = vdwg.mxu0
        %vm1507 = vcmask 130048
        %v1508 = vsel %vm1507, %v1415, -inf
        %1509 = vmax.xlane.f32.xlu0 %v1508
        %v1510 = vpop.xlane.xlu0 %1509
        %v1511 = vsel %vm1507, %v1418, -inf
        %1512 = vmax.xlane.f32.xlu0 %v1511
        %v1513 = vpop.xlane.xlu0 %1512
        %v1514 = vsel %vm1507, %v1444, -inf
        %1515 = vmax.xlane.f32.xlu0 %v1514
        %v1516 = vpop.xlane.xlu0 %1515
        %v1517 = vsel %vm1507, %v1447, -inf
        %1518 = vmax.xlane.f32.xlu0 %v1517
        %v1519 = vpop.xlane.xlu0 %1518
        %v1520 = vsel %vm1507, %v1473, -inf
        %1521 = vmax.xlane.f32.xlu0 %v1520
        %v1522 = vpop.xlane.xlu0 %1521
        %v1523 = vsel %vm1507, %v1476, -inf
        %1524 = vmax.xlane.f32.xlu0 %v1523
        %v1525 = vpop.xlane.xlu0 %1524
        %v1526 = vsel %vm1507, %v1502, -inf
        %1527 = vmax.xlane.f32.xlu0 %v1526
        %v1528 = vpop.xlane.xlu0 %1527
        %v1529 = vsel %vm1507, %v1505, -inf
        %1530 = vmax.xlane.f32.xlu0 %v1529
        %v1531 = vpop.xlane.xlu0 %1530
        %v1532 = vsub.f32 %v1415, %v1510
        %v1533 = vsub.f32 %v1418, %v1513
        %v1534 = vsub.f32 %v1444, %v1516
        %v1535 = vsub.f32 %v1447, %v1519
        %v1536 = vsub.f32 %v1473, %v1522
        %v1537 = vsub.f32 %v1476, %v1525
        %v1538 = vsub.f32 %v1502, %v1528
        %v1539 = vsub.f32 %v1505, %v1531
        %v1540 = vmul.f32 %v1532, 1.442695
        %v1541 = vpow.pop %v1540
        %v1542 = vmul.f32 %v1533, 1.442695
        %v1543 = vpow.pop %v1542
        %v1544 = vmul.f32 %v1534, 1.442695
        %v1545 = vpow.pop %v1544
        %v1546 = vmul.f32 %v1535, 1.442695
        %v1547 = vpow.pop %v1546
        %v1548 = vmul.f32 %v1536, 1.442695
        %v1549 = vpow.pop %v1548
        %v1550 = vmul.f32 %v1537, 1.442695
        %v1551 = vpow.pop %v1550
        %v1552 = vmul.f32 %v1538, 1.442695
        %v1553 = vpow.pop %v1552
        %v1554 = vmul.f32 %v1539, 1.442695
        %v1555 = vpow.pop %v1554
        %v1556 = vsel %vm1507, %v1541, 0.0
        %1557 = vadd.xlane.f32.xlu0 %v1556
        %v1558 = vpop.xlane.xlu0 %1557
        %v1559 = vsel %vm1507, %v1543, 0.0
        %1560 = vadd.xlane.f32.xlu0 %v1559
        %v1561 = vpop.xlane.xlu0 %1560
        %v1562 = vsel %vm1507, %v1545, 0.0
        %1563 = vadd.xlane.f32.xlu0 %v1562
        %v1564 = vpop.xlane.xlu0 %1563
        %v1565 = vsel %vm1507, %v1547, 0.0
        %1566 = vadd.xlane.f32.xlu0 %v1565
        %v1567 = vpop.xlane.xlu0 %1566
        %v1568 = vsel %vm1507, %v1549, 0.0
        %1569 = vadd.xlane.f32.xlu0 %v1568
        %v1570 = vpop.xlane.xlu0 %1569
        %v1571 = vsel %vm1507, %v1551, 0.0
        %1572 = vadd.xlane.f32.xlu0 %v1571
        %v1573 = vpop.xlane.xlu0 %1572
        %v1574 = vsel %vm1507, %v1553, 0.0
        %1575 = vadd.xlane.f32.xlu0 %v1574
        %v1576 = vpop.xlane.xlu0 %1575
        %v1577 = vsel %vm1507, %v1555, 0.0
        %1578 = vadd.xlane.f32.xlu0 %v1577
        %v1579 = vpop.xlane.xlu0 %1578
        %v1580 = vrcp.pop %v1558
        %v1581 = vrcp.pop %v1561
        %v1582 = vrcp.pop %v1564
        %v1583 = vrcp.pop %v1567
        %v1584 = vrcp.pop %v1570
        %v1585 = vrcp.pop %v1573
        %v1586 = vrcp.pop %v1576
        %v1587 = vrcp.pop %v1579
        %v1588 = vmul.f32 %v1541, %v1580
        %v1589 = vmul.f32 %v1543, %v1581
        %v1590 = vmul.f32 %v1545, %v1582
        %v1591 = vmul.f32 %v1547, %v1583
        %v1592 = vmul.f32 %v1549, %v1584
        %v1593 = vmul.f32 %v1551, %v1585
        %v1594 = vmul.f32 %v1553, %v1586
        %v1595 = vmul.f32 %v1555, %v1587
        %1596 = vrot.lane.b32.xlu0 %v966, 64
        %v1597 = vpop.permute.xlu0 %1596
        %1598 = vrot.lane.b32.xlu0 %v969, 64
        %v1599 = vpop.permute.xlu0 %1598
        %1600 = vrot.lane.b32.xlu0 %v980, 64
        %v1601 = vpop.permute.xlu0 %1600
        %1602 = vrot.lane.b32.xlu0 %v982, 64
        %v1603 = vpop.permute.xlu0 %1602
        %1604 = vrot.lane.b32.xlu0 %v986, 64
        %v1605 = vpop.permute.xlu0 %1604
        %1606 = vrot.lane.b32.xlu0 %v988, 64
        %v1607 = vpop.permute.xlu0 %1606
        %1608 = vrot.lane.b32.xlu0 %v992, 64
        %v1609 = vpop.permute.xlu0 %1608
        %1610 = vrot.lane.b32.xlu0 %v994, 64
        %v1611 = vpop.permute.xlu0 %1610
        %1620 = vxpose.xlu0.b32.start [1/16] %v1597, 128
        %1621 = vxpose.xlu0.b32.cont [2/16] %v1599, 128
        %1622 = vxpose.xlu0.b32.cont [3/16] 0.0, 128
        %1623 = vxpose.xlu0.b32.cont [4/16] 0.0, 128
        %1624 = vxpose.xlu0.b32.cont [5/16] 0.0, 128
        %1625 = vxpose.xlu0.b32.cont [6/16] 0.0, 128
        %1626 = vxpose.xlu0.b32.cont [7/16] 0.0, 128
        %1627 = vxpose.xlu0.b32.cont [8/16] 0.0, 128
        %1628 = vxpose.xlu0.b32.cont [9/16] 0.0, 128
        %1629 = vxpose.xlu0.b32.cont [10/16] 0.0, 128
        %1630 = vxpose.xlu0.b32.cont [11/16] 0.0, 128
        %1631 = vxpose.xlu0.b32.cont [12/16] 0.0, 128
        %1632 = vxpose.xlu0.b32.cont [13/16] 0.0, 128
        %1633 = vxpose.xlu0.b32.cont [14/16] 0.0, 128
        %1634 = vxpose.xlu0.b32.cont [15/16] 0.0, 128
        %1635 = vxpose.xlu0.b32.end [16/16] 0.0, 128
        %v1636 = vpop.trf.xlu0
        %v1637 = vpop.trf.xlu0
        %v1638 = vpop.trf.xlu0
        %v1639 = vpop.trf.xlu0
        %v1640 = vpop.trf.xlu0
        %v1641 = vpop.trf.xlu0
        %v1642 = vpop.trf.xlu0
        %v1643 = vpop.trf.xlu0
        %v1644 = vpop.trf.xlu0
        %v1645 = vpop.trf.xlu0
        %v1646 = vpop.trf.xlu0
        %v1647 = vpop.trf.xlu0
        %v1648 = vpop.trf.xlu0
        %v1649 = vpop.trf.xlu0
        %v1650 = vpop.trf.xlu0
        %v1651 = vpop.trf.xlu0
        %1652 = vxpose.xlu0.b32.start [1/16] %v1601, 128
        %1653 = vxpose.xlu0.b32.cont [2/16] %v1603, 128
        %1654 = vxpose.xlu0.b32.cont [3/16] 0.0, 128
        %1655 = vxpose.xlu0.b32.cont [4/16] 0.0, 128
        %1656 = vxpose.xlu0.b32.cont [5/16] 0.0, 128
        %1657 = vxpose.xlu0.b32.cont [6/16] 0.0, 128
        %1658 = vxpose.xlu0.b32.cont [7/16] 0.0, 128
        %1659 = vxpose.xlu0.b32.cont [8/16] 0.0, 128
        %1660 = vxpose.xlu0.b32.cont [9/16] 0.0, 128
        %1661 = vxpose.xlu0.b32.cont [10/16] 0.0, 128
        %1662 = vxpose.xlu0.b32.cont [11/16] 0.0, 128
        %1663 = vxpose.xlu0.b32.cont [12/16] 0.0, 128
        %1664 = vxpose.xlu0.b32.cont [13/16] 0.0, 128
        %1665 = vxpose.xlu0.b32.cont [14/16] 0.0, 128
        %1666 = vxpose.xlu0.b32.cont [15/16] 0.0, 128
        %1667 = vxpose.xlu0.b32.end [16/16] 0.0, 128
        %v1668 = vpop.trf.xlu0
        %v1669 = vpop.trf.xlu0
        %v1670 = vpop.trf.xlu0
        %v1671 = vpop.trf.xlu0
        %v1672 = vpop.trf.xlu0
        %v1673 = vpop.trf.xlu0
        %v1674 = vpop.trf.xlu0
        %v1675 = vpop.trf.xlu0
        %v1676 = vpop.trf.xlu0
        %v1677 = vpop.trf.xlu0
        %v1678 = vpop.trf.xlu0
        %v1679 = vpop.trf.xlu0
        %v1680 = vpop.trf.xlu0
        %v1681 = vpop.trf.xlu0
        %v1682 = vpop.trf.xlu0
        %v1683 = vpop.trf.xlu0
        %1684 = vxpose.xlu0.b32.start [1/16] %v1605, 128
        %1685 = vxpose.xlu0.b32.cont [2/16] %v1607, 128
        %1686 = vxpose.xlu0.b32.cont [3/16] 0.0, 128
        %1687 = vxpose.xlu0.b32.cont [4/16] 0.0, 128
        %1688 = vxpose.xlu0.b32.cont [5/16] 0.0, 128
        %1689 = vxpose.xlu0.b32.cont [6/16] 0.0, 128
        %1690 = vxpose.xlu0.b32.cont [7/16] 0.0, 128
        %1691 = vxpose.xlu0.b32.cont [8/16] 0.0, 128
        %1692 = vxpose.xlu0.b32.cont [9/16] 0.0, 128
        %1693 = vxpose.xlu0.b32.cont [10/16] 0.0, 128
        %1694 = vxpose.xlu0.b32.cont [11/16] 0.0, 128
        %1695 = vxpose.xlu0.b32.cont [12/16] 0.0, 128
        %1696 = vxpose.xlu0.b32.cont [13/16] 0.0, 128
        %1697 = vxpose.xlu0.b32.cont [14/16] 0.0, 128
        %1698 = vxpose.xlu0.b32.cont [15/16] 0.0, 128
        %1699 = vxpose.xlu0.b32.end [16/16] 0.0, 128
        %v1700 = vpop.trf.xlu0
        %v1701 = vpop.trf.xlu0
        %v1702 = vpop.trf.xlu0
        %v1703 = vpop.trf.xlu0
        %v1704 = vpop.trf.xlu0
        %v1705 = vpop.trf.xlu0
        %v1706 = vpop.trf.xlu0
        %v1707 = vpop.trf.xlu0
        %v1708 = vpop.trf.xlu0
        %v1709 = vpop.trf.xlu0
        %v1710 = vpop.trf.xlu0
        %v1711 = vpop.trf.xlu0
        %v1712 = vpop.trf.xlu0
        %v1713 = vpop.trf.xlu0
        %v1714 = vpop.trf.xlu0
        %v1715 = vpop.trf.xlu0
        %1716 = vxpose.xlu0.b32.start [1/16] %v1609, 128
        %1717 = vxpose.xlu0.b32.cont [2/16] %v1611, 128
        %1718 = vxpose.xlu0.b32.cont [3/16] 0.0, 128
        %1719 = vxpose.xlu0.b32.cont [4/16] 0.0, 128
        %1720 = vxpose.xlu0.b32.cont [5/16] 0.0, 128
        %1721 = vxpose.xlu0.b32.cont [6/16] 0.0, 128
        %1722 = vxpose.xlu0.b32.cont [7/16] 0.0, 128
        %1723 = vxpose.xlu0.b32.cont [8/16] 0.0, 128
        %1724 = vxpose.xlu0.b32.cont [9/16] 0.0, 128
        %1725 = vxpose.xlu0.b32.cont [10/16] 0.0, 128
        %1726 = vxpose.xlu0.b32.cont [11/16] 0.0, 128
        %1727 = vxpose.xlu0.b32.cont [12/16] 0.0, 128
        %1728 = vxpose.xlu0.b32.cont [13/16] 0.0, 128
        %1729 = vxpose.xlu0.b32.cont [14/16] 0.0, 128
        %1730 = vxpose.xlu0.b32.cont [15/16] 0.0, 128
        %1731 = vxpose.xlu0.b32.end [16/16] 0.0, 128
        %v1732 = vpop.trf.xlu0
        %v1733 = vpop.trf.xlu0
        %v1734 = vpop.trf.xlu0
        %v1735 = vpop.trf.xlu0
        %v1736 = vpop.trf.xlu0
        %v1737 = vpop.trf.xlu0
        %v1738 = vpop.trf.xlu0
        %v1739 = vpop.trf.xlu0
        %v1740 = vpop.trf.xlu0
        %v1741 = vpop.trf.xlu0
        %v1742 = vpop.trf.xlu0
        %v1743 = vpop.trf.xlu0
        %v1744 = vpop.trf.xlu0
        %v1745 = vpop.trf.xlu0
        %v1746 = vpop.trf.xlu0
        %v1747 = vpop.trf.xlu0
        %v1749 = vsel %vm1507, %v1636, 0
        %v1752 = vsel %vm1507, %v1588, 0
        %v1755 = vsel %vm1507, %v1589, 0
        %1757 = vmatpush.xpose.msra.mxu0 0.0
        %1758 = vmatpush.xpose.msra.mxu0 0.0
        %1759 = vmatpush.xpose.msra.mxu0 0.0
        %1760 = vmatpush.xpose.msra.mxu0 0.0
        %1761 = vmatpush.xpose.msra.mxu0 0.0
        %1762 = vmatpush.xpose.msra.mxu0 0.0
        %1763 = vmatpush.xpose.msra.mxu0 0.0
        %1764 = vmatpush.xpose.msra.mxu0 0.0
        %1765 = vmatpush.xpose.msra.mxu0 0.0
        %1766 = vmatpush.xpose.msra.mxu0 0.0
        %1767 = vmatpush.xpose.msra.mxu0 0.0
        %1768 = vmatpush.xpose.msra.mxu0 0.0
        %1769 = vmatpush.xpose.msra.mxu0 0.0
        %1770 = vmatpush.xpose.msra.mxu0 0.0
        %1771 = vmatpush.xpose.msra.mxu0 %v1755
        %1772 = vmatpush.xpose.msra.mxu0 %v1752
        %1773 = vmatmul.f32.gmra.mxu0 %v1749
        %v1774 = vpop.f32.mrf.mxu0
        %v1775 = vadd.f32 0.0, %v1774
        %1776 = vdwg.mxu0
        %v1778 = vsel %vm1507, %v1668, 0
        %v1781 = vsel %vm1507, %v1590, 0
        %v1784 = vsel %vm1507, %v1591, 0
        %1786 = vmatpush.xpose.msra.mxu0 0.0
        %1787 = vmatpush.xpose.msra.mxu0 0.0
        %1788 = vmatpush.xpose.msra.mxu0 0.0
        %1789 = vmatpush.xpose.msra.mxu0 0.0
        %1790 = vmatpush.xpose.msra.mxu0 0.0
        %1791 = vmatpush.xpose.msra.mxu0 0.0
        %1792 = vmatpush.xpose.msra.mxu0 0.0
        %1793 = vmatpush.xpose.msra.mxu0 0.0
        %1794 = vmatpush.xpose.msra.mxu0 0.0
        %1795 = vmatpush.xpose.msra.mxu0 0.0
        %1796 = vmatpush.xpose.msra.mxu0 0.0
        %1797 = vmatpush.xpose.msra.mxu0 0.0
        %1798 = vmatpush.xpose.msra.mxu0 0.0
        %1799 = vmatpush.xpose.msra.mxu0 0.0
        %1800 = vmatpush.xpose.msra.mxu0 %v1784
        %1801 = vmatpush.xpose.msra.mxu0 %v1781
        %1802 = vmatmul.f32.gmra.mxu0 %v1778
        %v1803 = vpop.f32.mrf.mxu0
        %v1804 = vadd.f32 0.0, %v1803
        %1805 = vdwg.mxu0
        %v1807 = vsel %vm1507, %v1700, 0
        %v1810 = vsel %vm1507, %v1592, 0
        %v1813 = vsel %vm1507, %v1593, 0
        %1815 = vmatpush.xpose.msra.mxu0 0.0
        %1816 = vmatpush.xpose.msra.mxu0 0.0
        %1817 = vmatpush.xpose.msra.mxu0 0.0
        %1818 = vmatpush.xpose.msra.mxu0 0.0
        %1819 = vmatpush.xpose.msra.mxu0 0.0
        %1820 = vmatpush.xpose.msra.mxu0 0.0
        %1821 = vmatpush.xpose.msra.mxu0 0.0
        %1822 = vmatpush.xpose.msra.mxu0 0.0
        %1823 = vmatpush.xpose.msra.mxu0 0.0
        %1824 = vmatpush.xpose.msra.mxu0 0.0
        %1825 = vmatpush.xpose.msra.mxu0 0.0
        %1826 = vmatpush.xpose.msra.mxu0 0.0
        %1827 = vmatpush.xpose.msra.mxu0 0.0
        %1828 = vmatpush.xpose.msra.mxu0 0.0
        %1829 = vmatpush.xpose.msra.mxu0 %v1813
        %1830 = vmatpush.xpose.msra.mxu0 %v1810
        %1831 = vmatmul.f32.gmra.mxu0 %v1807
        %v1832 = vpop.f32.mrf.mxu0
        %v1833 = vadd.f32 0.0, %v1832
        %1834 = vdwg.mxu0
        %v1836 = vsel %vm1507, %v1732, 0
        %v1839 = vsel %vm1507, %v1594, 0
        %v1842 = vsel %vm1507, %v1595, 0
        %1844 = vmatpush.xpose.msra.mxu0 0.0
        %1845 = vmatpush.xpose.msra.mxu0 0.0
        %1846 = vmatpush.xpose.msra.mxu0 0.0
        %1847 = vmatpush.xpose.msra.mxu0 0.0
        %1848 = vmatpush.xpose.msra.mxu0 0.0
        %1849 = vmatpush.xpose.msra.mxu0 0.0
        %1850 = vmatpush.xpose.msra.mxu0 0.0
        %1851 = vmatpush.xpose.msra.mxu0 0.0
        %1852 = vmatpush.xpose.msra.mxu0 0.0
        %1853 = vmatpush.xpose.msra.mxu0 0.0
        %1854 = vmatpush.xpose.msra.mxu0 0.0
        %1855 = vmatpush.xpose.msra.mxu0 0.0
        %1856 = vmatpush.xpose.msra.mxu0 0.0
        %1857 = vmatpush.xpose.msra.mxu0 0.0
        %1858 = vmatpush.xpose.msra.mxu0 %v1842
        %1859 = vmatpush.xpose.msra.mxu0 %v1839
        %1860 = vmatmul.f32.gmra.mxu0 %v1836
        %v1861 = vpop.f32.mrf.mxu0
        %v1862 = vadd.f32 0.0, %v1861
        %1863 = vdwg.mxu0
        %1864 = vxpose.xlu0.b32.start [1/16] %v1775, 128
        %1865 = vxpose.xlu0.b32.cont [2/16] 0.0, 128
        %1866 = vxpose.xlu0.b32.cont [3/16] 0.0, 128
        %1867 = vxpose.xlu0.b32.cont [4/16] 0.0, 128
        %1868 = vxpose.xlu0.b32.cont [5/16] 0.0, 128
        %1869 = vxpose.xlu0.b32.cont [6/16] 0.0, 128
        %1870 = vxpose.xlu0.b32.cont [7/16] 0.0, 128
        %1871 = vxpose.xlu0.b32.cont [8/16] 0.0, 128
        %1872 = vxpose.xlu0.b32.cont [9/16] 0.0, 128
        %1873 = vxpose.xlu0.b32.cont [10/16] 0.0, 128
        %1874 = vxpose.xlu0.b32.cont [11/16] 0.0, 128
        %1875 = vxpose.xlu0.b32.cont [12/16] 0.0, 128
        %1876 = vxpose.xlu0.b32.cont [13/16] 0.0, 128
        %1877 = vxpose.xlu0.b32.cont [14/16] 0.0, 128
        %1878 = vxpose.xlu0.b32.cont [15/16] 0.0, 128
        %1879 = vxpose.xlu0.b32.end [16/16] 0.0, 128
        %v1880 = vpop.trf.xlu0
        %v1881 = vpop.trf.xlu0
        %v1882 = vpop.trf.xlu0
        %v1883 = vpop.trf.xlu0
        %v1884 = vpop.trf.xlu0
        %v1885 = vpop.trf.xlu0
        %v1886 = vpop.trf.xlu0
        %v1887 = vpop.trf.xlu0
        %v1888 = vpop.trf.xlu0
        %v1889 = vpop.trf.xlu0
        %v1890 = vpop.trf.xlu0
        %v1891 = vpop.trf.xlu0
        %v1892 = vpop.trf.xlu0
        %v1893 = vpop.trf.xlu0
        %v1894 = vpop.trf.xlu0
        %v1895 = vpop.trf.xlu0
        %1896 = vxpose.xlu0.b32.start [1/16] %v1804, 128
        %1897 = vxpose.xlu0.b32.cont [2/16] 0.0, 128
        %1898 = vxpose.xlu0.b32.cont [3/16] 0.0, 128
        %1899 = vxpose.xlu0.b32.cont [4/16] 0.0, 128
        %1900 = vxpose.xlu0.b32.cont [5/16] 0.0, 128
        %1901 = vxpose.xlu0.b32.cont [6/16] 0.0, 128
        %1902 = vxpose.xlu0.b32.cont [7/16] 0.0, 128
        %1903 = vxpose.xlu0.b32.cont [8/16] 0.0, 128
        %1904 = vxpose.xlu0.b32.cont [9/16] 0.0, 128
        %1905 = vxpose.xlu0.b32.cont [10/16] 0.0, 128
        %1906 = vxpose.xlu0.b32.cont [11/16] 0.0, 128
        %1907 = vxpose.xlu0.b32.cont [12/16] 0.0, 128
        %1908 = vxpose.xlu0.b32.cont [13/16] 0.0, 128
        %1909 = vxpose.xlu0.b32.cont [14/16] 0.0, 128
        %1910 = vxpose.xlu0.b32.cont [15/16] 0.0, 128
        %1911 = vxpose.xlu0.b32.end [16/16] 0.0, 128
        %v1912 = vpop.trf.xlu0
        %v1913 = vpop.trf.xlu0
        %v1914 = vpop.trf.xlu0
        %v1915 = vpop.trf.xlu0
        %v1916 = vpop.trf.xlu0
        %v1917 = vpop.trf.xlu0
        %v1918 = vpop.trf.xlu0
        %v1919 = vpop.trf.xlu0
        %v1920 = vpop.trf.xlu0
        %v1921 = vpop.trf.xlu0
        %v1922 = vpop.trf.xlu0
        %v1923 = vpop.trf.xlu0
        %v1924 = vpop.trf.xlu0
        %v1925 = vpop.trf.xlu0
        %v1926 = vpop.trf.xlu0
        %v1927 = vpop.trf.xlu0
        %1928 = vxpose.xlu0.b32.start [1/16] %v1833, 128
        %1929 = vxpose.xlu0.b32.cont [2/16] 0.0, 128
        %1930 = vxpose.xlu0.b32.cont [3/16] 0.0, 128
        %1931 = vxpose.xlu0.b32.cont [4/16] 0.0, 128
        %1932 = vxpose.xlu0.b32.cont [5/16] 0.0, 128
        %1933 = vxpose.xlu0.b32.cont [6/16] 0.0, 128
        %1934 = vxpose.xlu0.b32.cont [7/16] 0.0, 128
        %1935 = vxpose.xlu0.b32.cont [8/16] 0.0, 128
        %1936 = vxpose.xlu0.b32.cont [9/16] 0.0, 128
        %1937 = vxpose.xlu0.b32.cont [10/16] 0.0, 128
        %1938 = vxpose.xlu0.b32.cont [11/16] 0.0, 128
        %1939 = vxpose.xlu0.b32.cont [12/16] 0.0, 128
        %1940 = vxpose.xlu0.b32.cont [13/16] 0.0, 128
        %1941 = vxpose.xlu0.b32.cont [14/16] 0.0, 128
        %1942 = vxpose.xlu0.b32.cont [15/16] 0.0, 128
        %1943 = vxpose.xlu0.b32.end [16/16] 0.0, 128
        %v1944 = vpop.trf.xlu0
        %v1945 = vpop.trf.xlu0
        %v1946 = vpop.trf.xlu0
        %v1947 = vpop.trf.xlu0
        %v1948 = vpop.trf.xlu0
        %v1949 = vpop.trf.xlu0
        %v1950 = vpop.trf.xlu0
        %v1951 = vpop.trf.xlu0
        %v1952 = vpop.trf.xlu0
        %v1953 = vpop.trf.xlu0
        %v1954 = vpop.trf.xlu0
        %v1955 = vpop.trf.xlu0
        %v1956 = vpop.trf.xlu0
        %v1957 = vpop.trf.xlu0
        %v1958 = vpop.trf.xlu0
        %v1959 = vpop.trf.xlu0
        %1960 = vxpose.xlu0.b32.start [1/16] %v1862, 128
        %1961 = vxpose.xlu0.b32.cont [2/16] 0.0, 128
        %1962 = vxpose.xlu0.b32.cont [3/16] 0.0, 128
        %1963 = vxpose.xlu0.b32.cont [4/16] 0.0, 128
        %1964 = vxpose.xlu0.b32.cont [5/16] 0.0, 128
        %1965 = vxpose.xlu0.b32.cont [6/16] 0.0, 128
        %1966 = vxpose.xlu0.b32.cont [7/16] 0.0, 128
        %1967 = vxpose.xlu0.b32.cont [8/16] 0.0, 128
        %1968 = vxpose.xlu0.b32.cont [9/16] 0.0, 128
        %1969 = vxpose.xlu0.b32.cont [10/16] 0.0, 128
        %1970 = vxpose.xlu0.b32.cont [11/16] 0.0, 128
        %1971 = vxpose.xlu0.b32.cont [12/16] 0.0, 128
        %1972 = vxpose.xlu0.b32.cont [13/16] 0.0, 128
        %1973 = vxpose.xlu0.b32.cont [14/16] 0.0, 128
        %1974 = vxpose.xlu0.b32.cont [15/16] 0.0, 128
        %1975 = vxpose.xlu0.b32.end [16/16] 0.0, 128
        %v1976 = vpop.trf.xlu0
        %v1977 = vpop.trf.xlu0
        %v1978 = vpop.trf.xlu0
        %v1979 = vpop.trf.xlu0
        %v1980 = vpop.trf.xlu0
        %v1981 = vpop.trf.xlu0
        %v1982 = vpop.trf.xlu0
        %v1983 = vpop.trf.xlu0
        %v1984 = vpop.trf.xlu0
        %v1985 = vpop.trf.xlu0
        %v1986 = vpop.trf.xlu0
        %v1987 = vpop.trf.xlu0
        %v1988 = vpop.trf.xlu0
        %v1989 = vpop.trf.xlu0
        %v1990 = vpop.trf.xlu0
        %v1991 = vpop.trf.xlu0
        %v1992 = vrot.slane %v1944, 4
        %v1993 = vsel %vm998, %v1992, %v1880
        %v1994 = vrot.slane %v1880, 4
        %v1995 = vsel %vm998, %v1944, %v1994
        %v1997 = vunpack.c.l.s4 1983009808
        %v1998 = vunpack.c.0.s8 %v1997
        %v1999 = vperm.slane %v1993, %v1998
        %v2001 = vunpack.c.l.s4 1983009808
        %v2002 = vunpack.c.0.s8 %v2001
        %v2003 = vperm.slane %v1995, %v2002
        %v2004 = vrot.slane %v1976, 4
        %v2005 = vsel %vm998, %v2004, %v1912
        %v2006 = vrot.slane %v1912, 4
        %v2007 = vsel %vm998, %v1976, %v2006
        %v2009 = vunpack.c.l.s4 1983009808
        %v2010 = vunpack.c.0.s8 %v2009
        %v2011 = vperm.slane %v2005, %v2010
        %v2013 = vunpack.c.l.s4 1983009808
        %v2014 = vunpack.c.0.s8 %v2013
        %v2015 = vperm.slane %v2007, %v2014
        %v2016 = vrot.slane %v2011, 4
        %v2017 = vsel %vm998, %v2016, %v1999
        %v2018 = vrot.slane %v1999, 4
        %v2019 = vsel %vm998, %v2011, %v2018
        %v2021 = vunpack.c.l.s4 1934713408
        %v2022 = vunpack.c.0.s8 %v2021
        %v2023 = vperm.slane %v2017, %v2022
        %v2025 = vunpack.c.l.s4 1934713408
        %v2026 = vunpack.c.0.s8 %v2025
        %v2027 = vperm.slane %v2019, %v2026
        %v2028 = vrot.slane %v2015, 4
        %v2029 = vsel %vm998, %v2028, %v2003
        %v2030 = vrot.slane %v2003, 4
        %v2031 = vsel %vm998, %v2015, %v2030
        %v2033 = vunpack.c.l.s4 1934713408
        %v2034 = vunpack.c.0.s8 %v2033
        %v2035 = vperm.slane %v2029, %v2034
        %v2037 = vunpack.c.l.s4 1934713408
        %v2038 = vunpack.c.0.s8 %v2037
        %v2039 = vperm.slane %v2031, %v2038
        %v2040 = vrot.slane %v2023, 4
        %v2041 = vsel %vm998, 0.0, %v2040
        %v2042 = vrot.slane %v2027, 4
        %v2043 = vsel %vm998, 0.0, %v2042
        %v2044 = vrot.slane %v2035, 4
        %v2045 = vsel %vm998, 0.0, %v2044
        %v2046 = vrot.slane %v2039, 4
        %v2047 = vsel %vm998, 0.0, %v2046
        %v2048 = vrot.slane %v1945, 4
        %v2049 = vsel %vm998, %v2048, %v1881
        %v2050 = vrot.slane %v1881, 4
        %v2051 = vsel %vm998, %v1945, %v2050
        %v2053 = vunpack.c.l.s4 1983009808
        %v2054 = vunpack.c.0.s8 %v2053
        %v2055 = vperm.slane %v2049, %v2054
        %v2057 = vunpack.c.l.s4 1983009808
        %v2058 = vunpack.c.0.s8 %v2057
        %v2059 = vperm.slane %v2051, %v2058
        %v2060 = vrot.slane %v1977, 4
        %v2061 = vsel %vm998, %v2060, %v1913
        %v2062 = vrot.slane %v1913, 4
        %v2063 = vsel %vm998, %v1977, %v2062
        %v2065 = vunpack.c.l.s4 1983009808
        %v2066 = vunpack.c.0.s8 %v2065
        %v2067 = vperm.slane %v2061, %v2066
        %v2069 = vunpack.c.l.s4 1983009808
        %v2070 = vunpack.c.0.s8 %v2069
        %v2071 = vperm.slane %v2063, %v2070
        %v2072 = vrot.slane %v2067, 4
        %v2073 = vsel %vm998, %v2072, %v2055
        %v2074 = vrot.slane %v2055, 4
        %v2075 = vsel %vm998, %v2067, %v2074
        %v2077 = vunpack.c.l.s4 1934713408
        %v2078 = vunpack.c.0.s8 %v2077
        %v2079 = vperm.slane %v2073, %v2078
        %v2081 = vunpack.c.l.s4 1934713408
        %v2082 = vunpack.c.0.s8 %v2081
        %v2083 = vperm.slane %v2075, %v2082
        %v2084 = vrot.slane %v2071, 4
        %v2085 = vsel %vm998, %v2084, %v2059
        %v2086 = vrot.slane %v2059, 4
        %v2087 = vsel %vm998, %v2071, %v2086
        %v2089 = vunpack.c.l.s4 1934713408
        %v2090 = vunpack.c.0.s8 %v2089
        %v2091 = vperm.slane %v2085, %v2090
        %v2093 = vunpack.c.l.s4 1934713408
        %v2094 = vunpack.c.0.s8 %v2093
        %v2095 = vperm.slane %v2087, %v2094
        %v2096 = vrot.slane %v2079, 4
        %v2097 = vsel %vm998, 0.0, %v2096
        %v2098 = vrot.slane %v2083, 4
        %v2099 = vsel %vm998, 0.0, %v2098
        %v2100 = vrot.slane %v2091, 4
        %v2101 = vsel %vm998, 0.0, %v2100
        %v2102 = vrot.slane %v2095, 4
        %v2103 = vsel %vm998, 0.0, %v2102
        %v2104 = vsel %vm998, %v2042, %v2023
        %v2106 = vunpack.c.l.s4 1983009808
        %v2107 = vunpack.c.0.s8 %v2106
        %v2108 = vperm.slane %v2104, %v2107
        %v2109 = vrot.slane %v2043, 4
        %v2110 = vsel %vm998, %v2109, %v2041
        %v2112 = vunpack.c.l.s4 1983009808
        %v2113 = vunpack.c.0.s8 %v2112
        %v2114 = vperm.slane %v2110, %v2113
        %v2115 = vsel %vm998, %v2046, %v2035
        %v2117 = vunpack.c.l.s4 1983009808
        %v2118 = vunpack.c.0.s8 %v2117
        %v2119 = vperm.slane %v2115, %v2118
        %v2120 = vrot.slane %v2047, 4
        %v2121 = vsel %vm998, %v2120, %v2045
        %v2123 = vunpack.c.l.s4 1983009808
        %v2124 = vunpack.c.0.s8 %v2123
        %v2125 = vperm.slane %v2121, %v2124
        %v2126 = vrot.slane %v2114, 4
        %v2127 = vsel %vm998, %v2126, %v2108
        %v2128 = vrot.slane %v2108, 4
        %v2129 = vsel %vm998, %v2114, %v2128
        %v2131 = vunpack.c.l.s4 1934713408
        %v2132 = vunpack.c.0.s8 %v2131
        %v2133 = vperm.slane %v2127, %v2132
        %v2135 = vunpack.c.l.s4 1934713408
        %v2136 = vunpack.c.0.s8 %v2135
        %v2137 = vperm.slane %v2129, %v2136
        %v2138 = vrot.slane %v2125, 4
        %v2139 = vsel %vm998, %v2138, %v2119
        %v2140 = vrot.slane %v2119, 4
        %v2141 = vsel %vm998, %v2125, %v2140
        %v2143 = vunpack.c.l.s4 1934713408
        %v2144 = vunpack.c.0.s8 %v2143
        %v2145 = vperm.slane %v2139, %v2144
        %v2147 = vunpack.c.l.s4 1934713408
        %v2148 = vunpack.c.0.s8 %v2147
        %v2149 = vperm.slane %v2141, %v2148
        %v2150 = vrot.slane %v2145, 4
        %v2151 = vsel %vm998, %v2150, %v2133
        %v2152 = vrot.slane %v2133, 4
        %v2153 = vsel %vm998, %v2145, %v2152
        %v2154 = vrot.slane %v2149, 4
        %v2155 = vsel %vm998, %v2154, %v2137
        %v2156 = vrot.slane %v2137, 4
        %v2157 = vsel %vm998, %v2149, %v2156
        %v2158 = vsel %vm998, %v2098, %v2079
        %v2160 = vunpack.c.l.s4 1983009808
        %v2161 = vunpack.c.0.s8 %v2160
        %v2162 = vperm.slane %v2158, %v2161
        %v2163 = vrot.slane %v2099, 4
        %v2164 = vsel %vm998, %v2163, %v2097
        %v2166 = vunpack.c.l.s4 1983009808
        %v2167 = vunpack.c.0.s8 %v2166
        %v2168 = vperm.slane %v2164, %v2167
        %v2169 = vsel %vm998, %v2102, %v2091
        %v2171 = vunpack.c.l.s4 1983009808
        %v2172 = vunpack.c.0.s8 %v2171
        %v2173 = vperm.slane %v2169, %v2172
        %v2174 = vrot.slane %v2103, 4
        %v2175 = vsel %vm998, %v2174, %v2101
        %v2177 = vunpack.c.l.s4 1983009808
        %v2178 = vunpack.c.0.s8 %v2177
        %v2179 = vperm.slane %v2175, %v2178
        %v2180 = vrot.slane %v2168, 4
        %v2181 = vsel %vm998, %v2180, %v2162
        %v2182 = vrot.slane %v2162, 4
        %v2183 = vsel %vm998, %v2168, %v2182
        %v2185 = vunpack.c.l.s4 1934713408
        %v2186 = vunpack.c.0.s8 %v2185
        %v2187 = vperm.slane %v2181, %v2186
        %v2189 = vunpack.c.l.s4 1934713408
        %v2190 = vunpack.c.0.s8 %v2189
        %v2191 = vperm.slane %v2183, %v2190
        %v2192 = vrot.slane %v2179, 4
        %v2193 = vsel %vm998, %v2192, %v2173
        %v2194 = vrot.slane %v2173, 4
        %v2195 = vsel %vm998, %v2179, %v2194
        %v2197 = vunpack.c.l.s4 1934713408
        %v2198 = vunpack.c.0.s8 %v2197
        %v2199 = vperm.slane %v2193, %v2198
        %v2201 = vunpack.c.l.s4 1934713408
        %v2202 = vunpack.c.0.s8 %v2201
        %v2203 = vperm.slane %v2195, %v2202
        %v2204 = vrot.slane %v2199, 4
        %v2205 = vsel %vm998, %v2204, %v2187
        %v2206 = vrot.slane %v2187, 4
        %v2207 = vsel %vm998, %v2199, %v2206
        %v2208 = vrot.slane %v2203, 4
        %v2209 = vsel %vm998, %v2208, %v2191
        %v2210 = vrot.slane %v2191, 4
        %v2211 = vsel %vm998, %v2203, %v2210
        %2214 = vrot.lane.b32.xlu0 %v2153, 8
        %v2215 = vpop.permute.xlu0 %2214
        %2216 = vrot.lane.b32.xlu0 %v2207, 8
        %v2217 = vpop.permute.xlu0 %2216
        %2222 = vrot.lane.b32.xlu0 %v2155, 16
        %v2223 = vpop.permute.xlu0 %2222
        %2224 = vrot.lane.b32.xlu0 %v2209, 16
        %v2225 = vpop.permute.xlu0 %2224
        %2230 = vrot.lane.b32.xlu0 %v2157, 24
        %v2231 = vpop.permute.xlu0 %2230
        %2232 = vrot.lane.b32.xlu0 %v2211, 24
        %v2233 = vpop.permute.xlu0 %2232
        %v2236 = vsel %vm1390, %v2151, %v2215
        %v2237 = vsel %vm1390, %v2205, %v2217
        %v2238 = vsel %vm1507, %v2236, %v2223
        %v2239 = vsel %vm1507, %v2237, %v2225
        %vm2240 = vcmask 195584
        %v2241 = vsel %vm2240, %v2238, %v2231
        %v2242 = vsel %vm2240, %v2239, %v2233
        %2245 = vrot.lane.b32.xlu0 %v972, 120
        %v2246 = vpop.permute.xlu0 %2245
        %2247 = vrot.lane.b32.xlu0 %v975, 120
        %v2248 = vpop.permute.xlu0 %2247
        %2251 = vrot.lane.b32.xlu0 %v972, 112
        %v2252 = vpop.permute.xlu0 %2251
        %2253 = vrot.lane.b32.xlu0 %v975, 112
        %v2254 = vpop.permute.xlu0 %2253
        %2257 = vrot.lane.b32.xlu0 %v972, 104
        %v2258 = vpop.permute.xlu0 %2257
        %2259 = vrot.lane.b32.xlu0 %v975, 104
        %v2260 = vpop.permute.xlu0 %2259
        %v2263 = vrot.slane %v2252, 4
        %v2264 = vsel %vm998, %v2263, %v972
        %v2265 = vrot.slane %v972, 4
        %v2266 = vsel %vm998, %v2252, %v2265
        %v2268 = vunpack.c.l.s4 1983009808
        %v2269 = vunpack.c.0.s8 %v2268
        %v2270 = vperm.slane %v2264, %v2269
        %v2272 = vunpack.c.l.s4 1983009808
        %v2273 = vunpack.c.0.s8 %v2272
        %v2274 = vperm.slane %v2266, %v2273
        %v2275 = vrot.slane %v2258, 4
        %v2276 = vsel %vm998, %v2275, %v2246
        %v2277 = vrot.slane %v2246, 4
        %v2278 = vsel %vm998, %v2258, %v2277
        %v2280 = vunpack.c.l.s4 1983009808
        %v2281 = vunpack.c.0.s8 %v2280
        %v2282 = vperm.slane %v2276, %v2281
        %v2284 = vunpack.c.l.s4 1983009808
        %v2285 = vunpack.c.0.s8 %v2284
        %v2286 = vperm.slane %v2278, %v2285
        %v2287 = vrot.slane %v2282, 4
        %v2288 = vsel %vm998, %v2287, %v2270
        %v2289 = vrot.slane %v2270, 4
        %v2290 = vsel %vm998, %v2282, %v2289
        %v2292 = vunpack.c.l.s4 1934713408
        %v2293 = vunpack.c.0.s8 %v2292
        %v2294 = vperm.slane %v2288, %v2293
        %v2296 = vunpack.c.l.s4 1934713408
        %v2297 = vunpack.c.0.s8 %v2296
        %v2298 = vperm.slane %v2290, %v2297
        %v2299 = vrot.slane %v2286, 4
        %v2300 = vsel %vm998, %v2299, %v2274
        %v2301 = vrot.slane %v2274, 4
        %v2302 = vsel %vm998, %v2286, %v2301
        %v2304 = vunpack.c.l.s4 1934713408
        %v2305 = vunpack.c.0.s8 %v2304
        %v2306 = vperm.slane %v2300, %v2305
        %v2308 = vunpack.c.l.s4 1934713408
        %v2309 = vunpack.c.0.s8 %v2308
        %v2310 = vperm.slane %v2302, %v2309
        %v2311 = vrot.slane %v2294, 4
        %v2312 = vsel %vm998, 0.0, %v2311
        %v2313 = vrot.slane %v2298, 4
        %v2314 = vsel %vm998, 0.0, %v2313
        %v2315 = vrot.slane %v2306, 4
        %v2316 = vsel %vm998, 0.0, %v2315
        %v2317 = vrot.slane %v2310, 4
        %v2318 = vsel %vm998, 0.0, %v2317
        %v2319 = vrot.slane %v2254, 4
        %v2320 = vsel %vm998, %v2319, %v975
        %v2321 = vrot.slane %v975, 4
        %v2322 = vsel %vm998, %v2254, %v2321
        %v2324 = vunpack.c.l.s4 1983009808
        %v2325 = vunpack.c.0.s8 %v2324
        %v2326 = vperm.slane %v2320, %v2325
        %v2328 = vunpack.c.l.s4 1983009808
        %v2329 = vunpack.c.0.s8 %v2328
        %v2330 = vperm.slane %v2322, %v2329
        %v2331 = vrot.slane %v2260, 4
        %v2332 = vsel %vm998, %v2331, %v2248
        %v2333 = vrot.slane %v2248, 4
        %v2334 = vsel %vm998, %v2260, %v2333
        %v2336 = vunpack.c.l.s4 1983009808
        %v2337 = vunpack.c.0.s8 %v2336
        %v2338 = vperm.slane %v2332, %v2337
        %v2340 = vunpack.c.l.s4 1983009808
        %v2341 = vunpack.c.0.s8 %v2340
        %v2342 = vperm.slane %v2334, %v2341
        %v2343 = vrot.slane %v2338, 4
        %v2344 = vsel %vm998, %v2343, %v2326
        %v2345 = vrot.slane %v2326, 4
        %v2346 = vsel %vm998, %v2338, %v2345
        %v2348 = vunpack.c.l.s4 1934713408
        %v2349 = vunpack.c.0.s8 %v2348
        %v2350 = vperm.slane %v2344, %v2349
        %v2352 = vunpack.c.l.s4 1934713408
        %v2353 = vunpack.c.0.s8 %v2352
        %v2354 = vperm.slane %v2346, %v2353
        %v2355 = vrot.slane %v2342, 4
        %v2356 = vsel %vm998, %v2355, %v2330
        %v2357 = vrot.slane %v2330, 4
        %v2358 = vsel %vm998, %v2342, %v2357
        %v2360 = vunpack.c.l.s4 1934713408
        %v2361 = vunpack.c.0.s8 %v2360
        %v2362 = vperm.slane %v2356, %v2361
        %v2364 = vunpack.c.l.s4 1934713408
        %v2365 = vunpack.c.0.s8 %v2364
        %v2366 = vperm.slane %v2358, %v2365
        %v2367 = vrot.slane %v2350, 4
        %v2368 = vsel %vm998, 0.0, %v2367
        %v2369 = vrot.slane %v2354, 4
        %v2370 = vsel %vm998, 0.0, %v2369
        %v2371 = vrot.slane %v2362, 4
        %v2372 = vsel %vm998, 0.0, %v2371
        %v2373 = vrot.slane %v2366, 4
        %v2374 = vsel %vm998, 0.0, %v2373
        %v2375 = vmul.f32 %v2294, 0.35355338
        %v2376 = vmul.f32 %v2312, 0.35355338
        %v2377 = vmul.f32 %v2298, 0.35355338
        %v2378 = vmul.f32 %v2314, 0.35355338
        %v2379 = vmul.f32 %v2306, 0.35355338
        %v2380 = vmul.f32 %v2316, 0.35355338
        %v2381 = vmul.f32 %v2310, 0.35355338
        %v2382 = vmul.f32 %v2318, 0.35355338
        %v2383 = vmul.f32 %v2350, 0.35355338
        %v2384 = vmul.f32 %v2368, 0.35355338
        %v2385 = vmul.f32 %v2354, 0.35355338
        %v2386 = vmul.f32 %v2370, 0.35355338
        %v2387 = vmul.f32 %v2362, 0.35355338
        %v2388 = vmul.f32 %v2372, 0.35355338
        %v2389 = vmul.f32 %v2366, 0.35355338
        %v2390 = vmul.f32 %v2374, 0.35355338
        %v2391 = vrot.slane %v2377, 4
        %v2392 = vsel %vm998, %v2391, %v2375
        %v2394 = vunpack.c.l.s4 1983009808
        %v2395 = vunpack.c.0.s8 %v2394
        %v2396 = vperm.slane %v2392, %v2395
        %v2397 = vrot.slane %v2378, 4
        %v2398 = vsel %vm998, %v2397, %v2376
        %v2400 = vunpack.c.l.s4 1983009808
        %v2401 = vunpack.c.0.s8 %v2400
        %v2402 = vperm.slane %v2398, %v2401
        %v2403 = vrot.slane %v2381, 4
        %v2404 = vsel %vm998, %v2403, %v2379
        %v2406 = vunpack.c.l.s4 1983009808
        %v2407 = vunpack.c.0.s8 %v2406
        %v2408 = vperm.slane %v2404, %v2407
        %v2409 = vrot.slane %v2382, 4
        %v2410 = vsel %vm998, %v2409, %v2380
        %v2412 = vunpack.c.l.s4 1983009808
        %v2413 = vunpack.c.0.s8 %v2412
        %v2414 = vperm.slane %v2410, %v2413
        %v2415 = vrot.slane %v2402, 4
        %v2416 = vsel %vm998, %v2415, %v2396
        %v2417 = vrot.slane %v2396, 4
        %v2418 = vsel %vm998, %v2402, %v2417
        %v2420 = vunpack.c.l.s4 1934713408
        %v2421 = vunpack.c.0.s8 %v2420
        %v2422 = vperm.slane %v2416, %v2421
        %v2424 = vunpack.c.l.s4 1934713408
        %v2425 = vunpack.c.0.s8 %v2424
        %v2426 = vperm.slane %v2418, %v2425
        %v2427 = vrot.slane %v2414, 4
        %v2428 = vsel %vm998, %v2427, %v2408
        %v2429 = vrot.slane %v2408, 4
        %v2430 = vsel %vm998, %v2414, %v2429
        %v2432 = vunpack.c.l.s4 1934713408
        %v2433 = vunpack.c.0.s8 %v2432
        %v2434 = vperm.slane %v2428, %v2433
        %v2436 = vunpack.c.l.s4 1934713408
        %v2437 = vunpack.c.0.s8 %v2436
        %v2438 = vperm.slane %v2430, %v2437
        %v2439 = vrot.slane %v2434, 4
        %v2440 = vsel %vm998, %v2439, %v2422
        %v2441 = vrot.slane %v2422, 4
        %v2442 = vsel %vm998, %v2434, %v2441
        %v2443 = vrot.slane %v2438, 4
        %v2444 = vsel %vm998, %v2443, %v2426
        %v2445 = vrot.slane %v2426, 4
        %v2446 = vsel %vm998, %v2438, %v2445
        %v2447 = vrot.slane %v2385, 4
        %v2448 = vsel %vm998, %v2447, %v2383
        %v2450 = vunpack.c.l.s4 1983009808
        %v2451 = vunpack.c.0.s8 %v2450
        %v2452 = vperm.slane %v2448, %v2451
        %v2453 = vrot.slane %v2386, 4
        %v2454 = vsel %vm998, %v2453, %v2384
        %v2456 = vunpack.c.l.s4 1983009808
        %v2457 = vunpack.c.0.s8 %v2456
        %v2458 = vperm.slane %v2454, %v2457
        %v2459 = vrot.slane %v2389, 4
        %v2460 = vsel %vm998, %v2459, %v2387
        %v2462 = vunpack.c.l.s4 1983009808
        %v2463 = vunpack.c.0.s8 %v2462
        %v2464 = vperm.slane %v2460, %v2463
        %v2465 = vrot.slane %v2390, 4
        %v2466 = vsel %vm998, %v2465, %v2388
        %v2468 = vunpack.c.l.s4 1983009808
        %v2469 = vunpack.c.0.s8 %v2468
        %v2470 = vperm.slane %v2466, %v2469
        %v2471 = vrot.slane %v2458, 4
        %v2472 = vsel %vm998, %v2471, %v2452
        %v2473 = vrot.slane %v2452, 4
        %v2474 = vsel %vm998, %v2458, %v2473
        %v2476 = vunpack.c.l.s4 1934713408
        %v2477 = vunpack.c.0.s8 %v2476
        %v2478 = vperm.slane %v2472, %v2477
        %v2480 = vunpack.c.l.s4 1934713408
        %v2481 = vunpack.c.0.s8 %v2480
        %v2482 = vperm.slane %v2474, %v2481
        %v2483 = vrot.slane %v2470, 4
        %v2484 = vsel %vm998, %v2483, %v2464
        %v2485 = vrot.slane %v2464, 4
        %v2486 = vsel %vm998, %v2470, %v2485
        %v2488 = vunpack.c.l.s4 1934713408
        %v2489 = vunpack.c.0.s8 %v2488
        %v2490 = vperm.slane %v2484, %v2489
        %v2492 = vunpack.c.l.s4 1934713408
        %v2493 = vunpack.c.0.s8 %v2492
        %v2494 = vperm.slane %v2486, %v2493
        %v2495 = vrot.slane %v2490, 4
        %v2496 = vsel %vm998, %v2495, %v2478
        %v2497 = vrot.slane %v2478, 4
        %v2498 = vsel %vm998, %v2490, %v2497
        %v2499 = vrot.slane %v2494, 4
        %v2500 = vsel %vm998, %v2499, %v2482
        %v2501 = vrot.slane %v2482, 4
        %v2502 = vsel %vm998, %v2494, %v2501
        %2503 = vrot.lane.b32.xlu0 %v972, 96
        %v2504 = vpop.permute.xlu0 %2503
        %2505 = vrot.lane.b32.xlu0 %v975, 96
        %v2506 = vpop.permute.xlu0 %2505
        %2507 = vrot.lane.b32.xlu0 %v2246, 96
        %v2508 = vpop.permute.xlu0 %2507
        %2509 = vrot.lane.b32.xlu0 %v2248, 96
        %v2510 = vpop.permute.xlu0 %2509
        %2511 = vrot.lane.b32.xlu0 %v2252, 96
        %v2512 = vpop.permute.xlu0 %2511
        %2513 = vrot.lane.b32.xlu0 %v2254, 96
        %v2514 = vpop.permute.xlu0 %2513
        %2515 = vrot.lane.b32.xlu0 %v2258, 96
        %v2516 = vpop.permute.xlu0 %2515
        %2517 = vrot.lane.b32.xlu0 %v2260, 96
        %v2518 = vpop.permute.xlu0 %2517
        %2527 = vxpose.xlu0.b32.start [1/16] %v2504, 128
        %2528 = vxpose.xlu0.b32.cont [2/16] %v2506, 128
        %2529 = vxpose.xlu0.b32.cont [3/16] 0.0, 128
        %2530 = vxpose.xlu0.b32.cont [4/16] 0.0, 128
        %2531 = vxpose.xlu0.b32.cont [5/16] 0.0, 128
        %2532 = vxpose.xlu0.b32.cont [6/16] 0.0, 128
        %2533 = vxpose.xlu0.b32.cont [7/16] 0.0, 128
        %2534 = vxpose.xlu0.b32.cont [8/16] 0.0, 128
        %2535 = vxpose.xlu0.b32.cont [9/16] 0.0, 128
        %2536 = vxpose.xlu0.b32.cont [10/16] 0.0, 128
        %2537 = vxpose.xlu0.b32.cont [11/16] 0.0, 128
        %2538 = vxpose.xlu0.b32.cont [12/16] 0.0, 128
        %2539 = vxpose.xlu0.b32.cont [13/16] 0.0, 128
        %2540 = vxpose.xlu0.b32.cont [14/16] 0.0, 128
        %2541 = vxpose.xlu0.b32.cont [15/16] 0.0, 128
        %2542 = vxpose.xlu0.b32.end [16/16] 0.0, 128
        %v2543 = vpop.trf.xlu0
        %v2544 = vpop.trf.xlu0
        %v2545 = vpop.trf.xlu0
        %v2546 = vpop.trf.xlu0
        %v2547 = vpop.trf.xlu0
        %v2548 = vpop.trf.xlu0
        %v2549 = vpop.trf.xlu0
        %v2550 = vpop.trf.xlu0
        %v2551 = vpop.trf.xlu0
        %v2552 = vpop.trf.xlu0
        %v2553 = vpop.trf.xlu0
        %v2554 = vpop.trf.xlu0
        %v2555 = vpop.trf.xlu0
        %v2556 = vpop.trf.xlu0
        %v2557 = vpop.trf.xlu0
        %v2558 = vpop.trf.xlu0
        %2559 = vxpose.xlu0.b32.start [1/16] %v2508, 128
        %2560 = vxpose.xlu0.b32.cont [2/16] %v2510, 128
        %2561 = vxpose.xlu0.b32.cont [3/16] 0.0, 128
        %2562 = vxpose.xlu0.b32.cont [4/16] 0.0, 128
        %2563 = vxpose.xlu0.b32.cont [5/16] 0.0, 128
        %2564 = vxpose.xlu0.b32.cont [6/16] 0.0, 128
        %2565 = vxpose.xlu0.b32.cont [7/16] 0.0, 128
        %2566 = vxpose.xlu0.b32.cont [8/16] 0.0, 128
        %2567 = vxpose.xlu0.b32.cont [9/16] 0.0, 128
        %2568 = vxpose.xlu0.b32.cont [10/16] 0.0, 128
        %2569 = vxpose.xlu0.b32.cont [11/16] 0.0, 128
        %2570 = vxpose.xlu0.b32.cont [12/16] 0.0, 128
        %2571 = vxpose.xlu0.b32.cont [13/16] 0.0, 128
        %2572 = vxpose.xlu0.b32.cont [14/16] 0.0, 128
        %2573 = vxpose.xlu0.b32.cont [15/16] 0.0, 128
        %2574 = vxpose.xlu0.b32.end [16/16] 0.0, 128
        %v2575 = vpop.trf.xlu0
        %v2576 = vpop.trf.xlu0
        %v2577 = vpop.trf.xlu0
        %v2578 = vpop.trf.xlu0
        %v2579 = vpop.trf.xlu0
        %v2580 = vpop.trf.xlu0
        %v2581 = vpop.trf.xlu0
        %v2582 = vpop.trf.xlu0
        %v2583 = vpop.trf.xlu0
        %v2584 = vpop.trf.xlu0
        %v2585 = vpop.trf.xlu0
        %v2586 = vpop.trf.xlu0
        %v2587 = vpop.trf.xlu0
        %v2588 = vpop.trf.xlu0
        %v2589 = vpop.trf.xlu0
        %v2590 = vpop.trf.xlu0
        %2591 = vxpose.xlu0.b32.start [1/16] %v2512, 128
        %2592 = vxpose.xlu0.b32.cont [2/16] %v2514, 128
        %2593 = vxpose.xlu0.b32.cont [3/16] 0.0, 128
        %2594 = vxpose.xlu0.b32.cont [4/16] 0.0, 128
        %2595 = vxpose.xlu0.b32.cont [5/16] 0.0, 128
        %2596 = vxpose.xlu0.b32.cont [6/16] 0.0, 128
        %2597 = vxpose.xlu0.b32.cont [7/16] 0.0, 128
        %2598 = vxpose.xlu0.b32.cont [8/16] 0.0, 128
        %2599 = vxpose.xlu0.b32.cont [9/16] 0.0, 128
        %2600 = vxpose.xlu0.b32.cont [10/16] 0.0, 128
        %2601 = vxpose.xlu0.b32.cont [11/16] 0.0, 128
        %2602 = vxpose.xlu0.b32.cont [12/16] 0.0, 128
        %2603 = vxpose.xlu0.b32.cont [13/16] 0.0, 128
        %2604 = vxpose.xlu0.b32.cont [14/16] 0.0, 128
        %2605 = vxpose.xlu0.b32.cont [15/16] 0.0, 128
        %2606 = vxpose.xlu0.b32.end [16/16] 0.0, 128
        %v2607 = vpop.trf.xlu0
        %v2608 = vpop.trf.xlu0
        %v2609 = vpop.trf.xlu0
        %v2610 = vpop.trf.xlu0
        %v2611 = vpop.trf.xlu0
        %v2612 = vpop.trf.xlu0
        %v2613 = vpop.trf.xlu0
        %v2614 = vpop.trf.xlu0
        %v2615 = vpop.trf.xlu0
        %v2616 = vpop.trf.xlu0
        %v2617 = vpop.trf.xlu0
        %v2618 = vpop.trf.xlu0
        %v2619 = vpop.trf.xlu0
        %v2620 = vpop.trf.xlu0
        %v2621 = vpop.trf.xlu0
        %v2622 = vpop.trf.xlu0
        %2623 = vxpose.xlu0.b32.start [1/16] %v2516, 128
        %2624 = vxpose.xlu0.b32.cont [2/16] %v2518, 128
        %2625 = vxpose.xlu0.b32.cont [3/16] 0.0, 128
        %2626 = vxpose.xlu0.b32.cont [4/16] 0.0, 128
        %2627 = vxpose.xlu0.b32.cont [5/16] 0.0, 128
        %2628 = vxpose.xlu0.b32.cont [6/16] 0.0, 128
        %2629 = vxpose.xlu0.b32.cont [7/16] 0.0, 128
        %2630 = vxpose.xlu0.b32.cont [8/16] 0.0, 128
        %2631 = vxpose.xlu0.b32.cont [9/16] 0.0, 128
        %2632 = vxpose.xlu0.b32.cont [10/16] 0.0, 128
        %2633 = vxpose.xlu0.b32.cont [11/16] 0.0, 128
        %2634 = vxpose.xlu0.b32.cont [12/16] 0.0, 128
        %2635 = vxpose.xlu0.b32.cont [13/16] 0.0, 128
        %2636 = vxpose.xlu0.b32.cont [14/16] 0.0, 128
        %2637 = vxpose.xlu0.b32.cont [15/16] 0.0, 128
        %2638 = vxpose.xlu0.b32.end [16/16] 0.0, 128
        %v2639 = vpop.trf.xlu0
        %v2640 = vpop.trf.xlu0
        %v2641 = vpop.trf.xlu0
        %v2642 = vpop.trf.xlu0
        %v2643 = vpop.trf.xlu0
        %v2644 = vpop.trf.xlu0
        %v2645 = vpop.trf.xlu0
        %v2646 = vpop.trf.xlu0
        %v2647 = vpop.trf.xlu0
        %v2648 = vpop.trf.xlu0
        %v2649 = vpop.trf.xlu0
        %v2650 = vpop.trf.xlu0
        %v2651 = vpop.trf.xlu0
        %v2652 = vpop.trf.xlu0
        %v2653 = vpop.trf.xlu0
        %v2654 = vpop.trf.xlu0
        %v2656 = vsel %vm1390, %v2440, 0
        %v2659 = vsel %vm1390, %v2496, 0
        %2661 = vmatpush.msra.mxu0 0.0
        %2662 = vmatpush.msra.mxu0 0.0
        %2663 = vmatpush.msra.mxu0 0.0
        %2664 = vmatpush.msra.mxu0 0.0
        %2665 = vmatpush.msra.mxu0 0.0
        %2666 = vmatpush.msra.mxu0 0.0
        %2667 = vmatpush.msra.mxu0 0.0
        %2668 = vmatpush.msra.mxu0 0.0
        %2669 = vmatpush.msra.mxu0 0.0
        %2670 = vmatpush.msra.mxu0 0.0
        %2671 = vmatpush.msra.mxu0 0.0
        %2672 = vmatpush.msra.mxu0 0.0
        %2673 = vmatpush.msra.mxu0 0.0
        %2674 = vmatpush.msra.mxu0 0.0
        %2675 = vmatpush.msra.mxu0 0.0
        %2676 = vmatpush.msra.mxu0 %v2543
        %2677 = vmatmul.f32.gmra.mxu0 %v2656
        %v2678 = vpop.f32.mrf.mxu0
        %v2679 = vadd.f32 0.0, %v2678
        %2680 = vmatmul.f32.gmra.mxu0 %v2659
        %v2681 = vpop.f32.mrf.mxu0
        %v2682 = vadd.f32 0.0, %v2681
        %2683 = vdwg.mxu0
        %v2685 = vsel %vm1390, %v2442, 0
        %v2688 = vsel %vm1390, %v2498, 0
        %2690 = vmatpush.msra.mxu0 0.0
        %2691 = vmatpush.msra.mxu0 0.0
        %2692 = vmatpush.msra.mxu0 0.0
        %2693 = vmatpush.msra.mxu0 0.0
        %2694 = vmatpush.msra.mxu0 0.0
        %2695 = vmatpush.msra.mxu0 0.0
        %2696 = vmatpush.msra.mxu0 0.0
        %2697 = vmatpush.msra.mxu0 0.0
        %2698 = vmatpush.msra.mxu0 0.0
        %2699 = vmatpush.msra.mxu0 0.0
        %2700 = vmatpush.msra.mxu0 0.0
        %2701 = vmatpush.msra.mxu0 0.0
        %2702 = vmatpush.msra.mxu0 0.0
        %2703 = vmatpush.msra.mxu0 0.0
        %2704 = vmatpush.msra.mxu0 0.0
        %2705 = vmatpush.msra.mxu0 %v2575
        %2706 = vmatmul.f32.gmra.mxu0 %v2685
        %v2707 = vpop.f32.mrf.mxu0
        %v2708 = vadd.f32 0.0, %v2707
        %2709 = vmatmul.f32.gmra.mxu0 %v2688
        %v2710 = vpop.f32.mrf.mxu0
        %v2711 = vadd.f32 0.0, %v2710
        %2712 = vdwg.mxu0
        %v2714 = vsel %vm1390, %v2444, 0
        %v2717 = vsel %vm1390, %v2500, 0
        %2719 = vmatpush.msra.mxu0 0.0
        %2720 = vmatpush.msra.mxu0 0.0
        %2721 = vmatpush.msra.mxu0 0.0
        %2722 = vmatpush.msra.mxu0 0.0
        %2723 = vmatpush.msra.mxu0 0.0
        %2724 = vmatpush.msra.mxu0 0.0
        %2725 = vmatpush.msra.mxu0 0.0
        %2726 = vmatpush.msra.mxu0 0.0
        %2727 = vmatpush.msra.mxu0 0.0
        %2728 = vmatpush.msra.mxu0 0.0
        %2729 = vmatpush.msra.mxu0 0.0
        %2730 = vmatpush.msra.mxu0 0.0
        %2731 = vmatpush.msra.mxu0 0.0
        %2732 = vmatpush.msra.mxu0 0.0
        %2733 = vmatpush.msra.mxu0 0.0
        %2734 = vmatpush.msra.mxu0 %v2607
        %2735 = vmatmul.f32.gmra.mxu0 %v2714
        %v2736 = vpop.f32.mrf.mxu0
        %v2737 = vadd.f32 0.0, %v2736
        %2738 = vmatmul.f32.gmra.mxu0 %v2717
        %v2739 = vpop.f32.mrf.mxu0
        %v2740 = vadd.f32 0.0, %v2739
        %2741 = vdwg.mxu0
        %v2743 = vsel %vm1390, %v2446, 0
        %v2746 = vsel %vm1390, %v2502, 0
        %2748 = vmatpush.msra.mxu0 0.0
        %2749 = vmatpush.msra.mxu0 0.0
        %2750 = vmatpush.msra.mxu0 0.0
        %2751 = vmatpush.msra.mxu0 0.0
        %2752 = vmatpush.msra.mxu0 0.0
        %2753 = vmatpush.msra.mxu0 0.0
        %2754 = vmatpush.msra.mxu0 0.0
        %2755 = vmatpush.msra.mxu0 0.0
        %2756 = vmatpush.msra.mxu0 0.0
        %2757 = vmatpush.msra.mxu0 0.0
        %2758 = vmatpush.msra.mxu0 0.0
        %2759 = vmatpush.msra.mxu0 0.0
        %2760 = vmatpush.msra.mxu0 0.0
        %2761 = vmatpush.msra.mxu0 0.0
        %2762 = vmatpush.msra.mxu0 0.0
        %2763 = vmatpush.msra.mxu0 %v2639
        %2764 = vmatmul.f32.gmra.mxu0 %v2743
        %v2765 = vpop.f32.mrf.mxu0
        %v2766 = vadd.f32 0.0, %v2765
        %2767 = vmatmul.f32.gmra.mxu0 %v2746
        %v2768 = vpop.f32.mrf.mxu0
        %v2769 = vadd.f32 0.0, %v2768
        %2770 = vdwg.mxu0
        %v2771 = vsel %vm1507, %v2679, -inf
        %2772 = vmax.xlane.f32.xlu0 %v2771
        %v2773 = vpop.xlane.xlu0 %2772
        %v2774 = vsel %vm1507, %v2682, -inf
        %2775 = vmax.xlane.f32.xlu0 %v2774
        %v2776 = vpop.xlane.xlu0 %2775
        %v2777 = vsel %vm1507, %v2708, -inf
        %2778 = vmax.xlane.f32.xlu0 %v2777
        %v2779 = vpop.xlane.xlu0 %2778
        %v2780 = vsel %vm1507, %v2711, -inf
        %2781 = vmax.xlane.f32.xlu0 %v2780
        %v2782 = vpop.xlane.xlu0 %2781
        %v2783 = vsel %vm1507, %v2737, -inf
        %2784 = vmax.xlane.f32.xlu0 %v2783
        %v2785 = vpop.xlane.xlu0 %2784
        %v2786 = vsel %vm1507, %v2740, -inf
        %2787 = vmax.xlane.f32.xlu0 %v2786
        %v2788 = vpop.xlane.xlu0 %2787
        %v2789 = vsel %vm1507, %v2766, -inf
        %2790 = vmax.xlane.f32.xlu0 %v2789
        %v2791 = vpop.xlane.xlu0 %2790
        %v2792 = vsel %vm1507, %v2769, -inf
        %2793 = vmax.xlane.f32.xlu0 %v2792
        %v2794 = vpop.xlane.xlu0 %2793
        %v2795 = vsub.f32 %v2679, %v2773
        %v2796 = vsub.f32 %v2682, %v2776
        %v2797 = vsub.f32 %v2708, %v2779
        %v2798 = vsub.f32 %v2711, %v2782
        %v2799 = vsub.f32 %v2737, %v2785
        %v2800 = vsub.f32 %v2740, %v2788
        %v2801 = vsub.f32 %v2766, %v2791
        %v2802 = vsub.f32 %v2769, %v2794
        %v2803 = vmul.f32 %v2795, 1.442695
        %v2804 = vpow.pop %v2803
        %v2805 = vmul.f32 %v2796, 1.442695
        %v2806 = vpow.pop %v2805
        %v2807 = vmul.f32 %v2797, 1.442695
        %v2808 = vpow.pop %v2807
        %v2809 = vmul.f32 %v2798, 1.442695
        %v2810 = vpow.pop %v2809
        %v2811 = vmul.f32 %v2799, 1.442695
        %v2812 = vpow.pop %v2811
        %v2813 = vmul.f32 %v2800, 1.442695
        %v2814 = vpow.pop %v2813
        %v2815 = vmul.f32 %v2801, 1.442695
        %v2816 = vpow.pop %v2815
        %v2817 = vmul.f32 %v2802, 1.442695
        %v2818 = vpow.pop %v2817
        %v2819 = vsel %vm1507, %v2804, 0.0
        %2820 = vadd.xlane.f32.xlu0 %v2819
        %v2821 = vpop.xlane.xlu0 %2820
        %v2822 = vsel %vm1507, %v2806, 0.0
        %2823 = vadd.xlane.f32.xlu0 %v2822
        %v2824 = vpop.xlane.xlu0 %2823
        %v2825 = vsel %vm1507, %v2808, 0.0
        %2826 = vadd.xlane.f32.xlu0 %v2825
        %v2827 = vpop.xlane.xlu0 %2826
        %v2828 = vsel %vm1507, %v2810, 0.0
        %2829 = vadd.xlane.f32.xlu0 %v2828
        %v2830 = vpop.xlane.xlu0 %2829
        %v2831 = vsel %vm1507, %v2812, 0.0
        %2832 = vadd.xlane.f32.xlu0 %v2831
        %v2833 = vpop.xlane.xlu0 %2832
        %v2834 = vsel %vm1507, %v2814, 0.0
        %2835 = vadd.xlane.f32.xlu0 %v2834
        %v2836 = vpop.xlane.xlu0 %2835
        %v2837 = vsel %vm1507, %v2816, 0.0
        %2838 = vadd.xlane.f32.xlu0 %v2837
        %v2839 = vpop.xlane.xlu0 %2838
        %v2840 = vsel %vm1507, %v2818, 0.0
        %2841 = vadd.xlane.f32.xlu0 %v2840
        %v2842 = vpop.xlane.xlu0 %2841
        %v2843 = vrcp.pop %v2821
        %v2844 = vrcp.pop %v2824
        %v2845 = vrcp.pop %v2827
        %v2846 = vrcp.pop %v2830
        %v2847 = vrcp.pop %v2833
        %v2848 = vrcp.pop %v2836
        %v2849 = vrcp.pop %v2839
        %v2850 = vrcp.pop %v2842
        %v2851 = vmul.f32 %v2804, %v2843
        %v2852 = vmul.f32 %v2806, %v2844
        %v2853 = vmul.f32 %v2808, %v2845
        %v2854 = vmul.f32 %v2810, %v2846
        %v2855 = vmul.f32 %v2812, %v2847
        %v2856 = vmul.f32 %v2814, %v2848
        %v2857 = vmul.f32 %v2816, %v2849
        %v2858 = vmul.f32 %v2818, %v2850
        %2859 = vrot.lane.b32.xlu0 %v972, 64
        %v2860 = vpop.permute.xlu0 %2859
        %2861 = vrot.lane.b32.xlu0 %v975, 64
        %v2862 = vpop.permute.xlu0 %2861
        %2863 = vrot.lane.b32.xlu0 %v2246, 64
        %v2864 = vpop.permute.xlu0 %2863
        %2865 = vrot.lane.b32.xlu0 %v2248, 64
        %v2866 = vpop.permute.xlu0 %2865
        %2867 = vrot.lane.b32.xlu0 %v2252, 64
        %v2868 = vpop.permute.xlu0 %2867
        %2869 = vrot.lane.b32.xlu0 %v2254, 64
        %v2870 = vpop.permute.xlu0 %2869
        %2871 = vrot.lane.b32.xlu0 %v2258, 64
        %v2872 = vpop.permute.xlu0 %2871
        %2873 = vrot.lane.b32.xlu0 %v2260, 64
        %v2874 = vpop.permute.xlu0 %2873
        %2883 = vxpose.xlu0.b32.start [1/16] %v2860, 128
        %2884 = vxpose.xlu0.b32.cont [2/16] %v2862, 128
        %2885 = vxpose.xlu0.b32.cont [3/16] 0.0, 128
        %2886 = vxpose.xlu0.b32.cont [4/16] 0.0, 128
        %2887 = vxpose.xlu0.b32.cont [5/16] 0.0, 128
        %2888 = vxpose.xlu0.b32.cont [6/16] 0.0, 128
        %2889 = vxpose.xlu0.b32.cont [7/16] 0.0, 128
        %2890 = vxpose.xlu0.b32.cont [8/16] 0.0, 128
        %2891 = vxpose.xlu0.b32.cont [9/16] 0.0, 128
        %2892 = vxpose.xlu0.b32.cont [10/16] 0.0, 128
        %2893 = vxpose.xlu0.b32.cont [11/16] 0.0, 128
        %2894 = vxpose.xlu0.b32.cont [12/16] 0.0, 128
        %2895 = vxpose.xlu0.b32.cont [13/16] 0.0, 128
        %2896 = vxpose.xlu0.b32.cont [14/16] 0.0, 128
        %2897 = vxpose.xlu0.b32.cont [15/16] 0.0, 128
        %2898 = vxpose.xlu0.b32.end [16/16] 0.0, 128
        %v2899 = vpop.trf.xlu0
        %v2900 = vpop.trf.xlu0
        %v2901 = vpop.trf.xlu0
        %v2902 = vpop.trf.xlu0
        %v2903 = vpop.trf.xlu0
        %v2904 = vpop.trf.xlu0
        %v2905 = vpop.trf.xlu0
        %v2906 = vpop.trf.xlu0
        %v2907 = vpop.trf.xlu0
        %v2908 = vpop.trf.xlu0
        %v2909 = vpop.trf.xlu0
        %v2910 = vpop.trf.xlu0
        %v2911 = vpop.trf.xlu0
        %v2912 = vpop.trf.xlu0
        %v2913 = vpop.trf.xlu0
        %v2914 = vpop.trf.xlu0
        %2915 = vxpose.xlu0.b32.start [1/16] %v2864, 128
        %2916 = vxpose.xlu0.b32.cont [2/16] %v2866, 128
        %2917 = vxpose.xlu0.b32.cont [3/16] 0.0, 128
        %2918 = vxpose.xlu0.b32.cont [4/16] 0.0, 128
        %2919 = vxpose.xlu0.b32.cont [5/16] 0.0, 128
        %2920 = vxpose.xlu0.b32.cont [6/16] 0.0, 128
        %2921 = vxpose.xlu0.b32.cont [7/16] 0.0, 128
        %2922 = vxpose.xlu0.b32.cont [8/16] 0.0, 128
        %2923 = vxpose.xlu0.b32.cont [9/16] 0.0, 128
        %2924 = vxpose.xlu0.b32.cont [10/16] 0.0, 128
        %2925 = vxpose.xlu0.b32.cont [11/16] 0.0, 128
        %2926 = vxpose.xlu0.b32.cont [12/16] 0.0, 128
        %2927 = vxpose.xlu0.b32.cont [13/16] 0.0, 128
        %2928 = vxpose.xlu0.b32.cont [14/16] 0.0, 128
        %2929 = vxpose.xlu0.b32.cont [15/16] 0.0, 128
        %2930 = vxpose.xlu0.b32.end [16/16] 0.0, 128
        %v2931 = vpop.trf.xlu0
        %v2932 = vpop.trf.xlu0
        %v2933 = vpop.trf.xlu0
        %v2934 = vpop.trf.xlu0
        %v2935 = vpop.trf.xlu0
        %v2936 = vpop.trf.xlu0
        %v2937 = vpop.trf.xlu0
        %v2938 = vpop.trf.xlu0
        %v2939 = vpop.trf.xlu0
        %v2940 = vpop.trf.xlu0
        %v2941 = vpop.trf.xlu0
        %v2942 = vpop.trf.xlu0
        %v2943 = vpop.trf.xlu0
        %v2944 = vpop.trf.xlu0
        %v2945 = vpop.trf.xlu0
        %v2946 = vpop.trf.xlu0
        %2947 = vxpose.xlu0.b32.start [1/16] %v2868, 128
        %2948 = vxpose.xlu0.b32.cont [2/16] %v2870, 128
        %2949 = vxpose.xlu0.b32.cont [3/16] 0.0, 128
        %2950 = vxpose.xlu0.b32.cont [4/16] 0.0, 128
        %2951 = vxpose.xlu0.b32.cont [5/16] 0.0, 128
        %2952 = vxpose.xlu0.b32.cont [6/16] 0.0, 128
        %2953 = vxpose.xlu0.b32.cont [7/16] 0.0, 128
        %2954 = vxpose.xlu0.b32.cont [8/16] 0.0, 128
        %2955 = vxpose.xlu0.b32.cont [9/16] 0.0, 128
        %2956 = vxpose.xlu0.b32.cont [10/16] 0.0, 128
        %2957 = vxpose.xlu0.b32.cont [11/16] 0.0, 128
        %2958 = vxpose.xlu0.b32.cont [12/16] 0.0, 128
        %2959 = vxpose.xlu0.b32.cont [13/16] 0.0, 128
        %2960 = vxpose.xlu0.b32.cont [14/16] 0.0, 128
        %2961 = vxpose.xlu0.b32.cont [15/16] 0.0, 128
        %2962 = vxpose.xlu0.b32.end [16/16] 0.0, 128
        %v2963 = vpop.trf.xlu0
        %v2964 = vpop.trf.xlu0
        %v2965 = vpop.trf.xlu0
        %v2966 = vpop.trf.xlu0
        %v2967 = vpop.trf.xlu0
        %v2968 = vpop.trf.xlu0
        %v2969 = vpop.trf.xlu0
        %v2970 = vpop.trf.xlu0
        %v2971 = vpop.trf.xlu0
        %v2972 = vpop.trf.xlu0
        %v2973 = vpop.trf.xlu0
        %v2974 = vpop.trf.xlu0
        %v2975 = vpop.trf.xlu0
        %v2976 = vpop.trf.xlu0
        %v2977 = vpop.trf.xlu0
        %v2978 = vpop.trf.xlu0
        %2979 = vxpose.xlu0.b32.start [1/16] %v2872, 128
        %2980 = vxpose.xlu0.b32.cont [2/16] %v2874, 128
        %2981 = vxpose.xlu0.b32.cont [3/16] 0.0, 128
        %2982 = vxpose.xlu0.b32.cont [4/16] 0.0, 128
        %2983 = vxpose.xlu0.b32.cont [5/16] 0.0, 128
        %2984 = vxpose.xlu0.b32.cont [6/16] 0.0, 128
        %2985 = vxpose.xlu0.b32.cont [7/16] 0.0, 128
        %2986 = vxpose.xlu0.b32.cont [8/16] 0.0, 128
        %2987 = vxpose.xlu0.b32.cont [9/16] 0.0, 128
        %2988 = vxpose.xlu0.b32.cont [10/16] 0.0, 128
        %2989 = vxpose.xlu0.b32.cont [11/16] 0.0, 128
        %2990 = vxpose.xlu0.b32.cont [12/16] 0.0, 128
        %2991 = vxpose.xlu0.b32.cont [13/16] 0.0, 128
        %2992 = vxpose.xlu0.b32.cont [14/16] 0.0, 128
        %2993 = vxpose.xlu0.b32.cont [15/16] 0.0, 128
        %2994 = vxpose.xlu0.b32.end [16/16] 0.0, 128
        %v2995 = vpop.trf.xlu0
        %v2996 = vpop.trf.xlu0
        %v2997 = vpop.trf.xlu0
        %v2998 = vpop.trf.xlu0
        %v2999 = vpop.trf.xlu0
        %v3000 = vpop.trf.xlu0
        %v3001 = vpop.trf.xlu0
        %v3002 = vpop.trf.xlu0
        %v3003 = vpop.trf.xlu0
        %v3004 = vpop.trf.xlu0
        %v3005 = vpop.trf.xlu0
        %v3006 = vpop.trf.xlu0
        %v3007 = vpop.trf.xlu0
        %v3008 = vpop.trf.xlu0
        %v3009 = vpop.trf.xlu0
        %v3010 = vpop.trf.xlu0
        %v3012 = vsel %vm1507, %v2899, 0
        %v3015 = vsel %vm1507, %v2851, 0
        %v3018 = vsel %vm1507, %v2852, 0
        %3020 = vmatpush.xpose.msra.mxu0 0.0
        %3021 = vmatpush.xpose.msra.mxu0 0.0
        %3022 = vmatpush.xpose.msra.mxu0 0.0
        %3023 = vmatpush.xpose.msra.mxu0 0.0
        %3024 = vmatpush.xpose.msra.mxu0 0.0
        %3025 = vmatpush.xpose.msra.mxu0 0.0
        %3026 = vmatpush.xpose.msra.mxu0 0.0
        %3027 = vmatpush.xpose.msra.mxu0 0.0
        %3028 = vmatpush.xpose.msra.mxu0 0.0
        %3029 = vmatpush.xpose.msra.mxu0 0.0
        %3030 = vmatpush.xpose.msra.mxu0 0.0
        %3031 = vmatpush.xpose.msra.mxu0 0.0
        %3032 = vmatpush.xpose.msra.mxu0 0.0
        %3033 = vmatpush.xpose.msra.mxu0 0.0
        %3034 = vmatpush.xpose.msra.mxu0 %v3018
        %3035 = vmatpush.xpose.msra.mxu0 %v3015
        %3036 = vmatmul.f32.gmra.mxu0 %v3012
        %v3037 = vpop.f32.mrf.mxu0
        %v3038 = vadd.f32 0.0, %v3037
        %3039 = vdwg.mxu0
        %v3041 = vsel %vm1507, %v2931, 0
        %v3044 = vsel %vm1507, %v2853, 0
        %v3047 = vsel %vm1507, %v2854, 0
        %3049 = vmatpush.xpose.msra.mxu0 0.0
        %3050 = vmatpush.xpose.msra.mxu0 0.0
        %3051 = vmatpush.xpose.msra.mxu0 0.0
        %3052 = vmatpush.xpose.msra.mxu0 0.0
        %3053 = vmatpush.xpose.msra.mxu0 0.0
        %3054 = vmatpush.xpose.msra.mxu0 0.0
        %3055 = vmatpush.xpose.msra.mxu0 0.0
        %3056 = vmatpush.xpose.msra.mxu0 0.0
        %3057 = vmatpush.xpose.msra.mxu0 0.0
        %3058 = vmatpush.xpose.msra.mxu0 0.0
        %3059 = vmatpush.xpose.msra.mxu0 0.0
        %3060 = vmatpush.xpose.msra.mxu0 0.0
        %3061 = vmatpush.xpose.msra.mxu0 0.0
        %3062 = vmatpush.xpose.msra.mxu0 0.0
        %3063 = vmatpush.xpose.msra.mxu0 %v3047
        %3064 = vmatpush.xpose.msra.mxu0 %v3044
        %3065 = vmatmul.f32.gmra.mxu0 %v3041
        %v3066 = vpop.f32.mrf.mxu0
        %v3067 = vadd.f32 0.0, %v3066
        %3068 = vdwg.mxu0
        %v3070 = vsel %vm1507, %v2963, 0
        %v3073 = vsel %vm1507, %v2855, 0
        %v3076 = vsel %vm1507, %v2856, 0
        %3078 = vmatpush.xpose.msra.mxu0 0.0
        %3079 = vmatpush.xpose.msra.mxu0 0.0
        %3080 = vmatpush.xpose.msra.mxu0 0.0
        %3081 = vmatpush.xpose.msra.mxu0 0.0
        %3082 = vmatpush.xpose.msra.mxu0 0.0
        %3083 = vmatpush.xpose.msra.mxu0 0.0
        %3084 = vmatpush.xpose.msra.mxu0 0.0
        %3085 = vmatpush.xpose.msra.mxu0 0.0
        %3086 = vmatpush.xpose.msra.mxu0 0.0
        %3087 = vmatpush.xpose.msra.mxu0 0.0
        %3088 = vmatpush.xpose.msra.mxu0 0.0
        %3089 = vmatpush.xpose.msra.mxu0 0.0
        %3090 = vmatpush.xpose.msra.mxu0 0.0
        %3091 = vmatpush.xpose.msra.mxu0 0.0
        %3092 = vmatpush.xpose.msra.mxu0 %v3076
        %3093 = vmatpush.xpose.msra.mxu0 %v3073
        %3094 = vmatmul.f32.gmra.mxu0 %v3070
        %v3095 = vpop.f32.mrf.mxu0
        %v3096 = vadd.f32 0.0, %v3095
        %3097 = vdwg.mxu0
        %v3099 = vsel %vm1507, %v2995, 0
        %v3102 = vsel %vm1507, %v2857, 0
        %v3105 = vsel %vm1507, %v2858, 0
        %3107 = vmatpush.xpose.msra.mxu0 0.0
        %3108 = vmatpush.xpose.msra.mxu0 0.0
        %3109 = vmatpush.xpose.msra.mxu0 0.0
        %3110 = vmatpush.xpose.msra.mxu0 0.0
        %3111 = vmatpush.xpose.msra.mxu0 0.0
        %3112 = vmatpush.xpose.msra.mxu0 0.0
        %3113 = vmatpush.xpose.msra.mxu0 0.0
        %3114 = vmatpush.xpose.msra.mxu0 0.0
        %3115 = vmatpush.xpose.msra.mxu0 0.0
        %3116 = vmatpush.xpose.msra.mxu0 0.0
        %3117 = vmatpush.xpose.msra.mxu0 0.0
        %3118 = vmatpush.xpose.msra.mxu0 0.0
        %3119 = vmatpush.xpose.msra.mxu0 0.0
        %3120 = vmatpush.xpose.msra.mxu0 0.0
        %3121 = vmatpush.xpose.msra.mxu0 %v3105
        %3122 = vmatpush.xpose.msra.mxu0 %v3102
        %3123 = vmatmul.f32.gmra.mxu0 %v3099
        %v3124 = vpop.f32.mrf.mxu0
        %v3125 = vadd.f32 0.0, %v3124
        %3126 = vdwg.mxu0
        %3127 = vxpose.xlu0.b32.start [1/16] %v3038, 128
        %3128 = vxpose.xlu0.b32.cont [2/16] 0.0, 128
        %3129 = vxpose.xlu0.b32.cont [3/16] 0.0, 128
        %3130 = vxpose.xlu0.b32.cont [4/16] 0.0, 128
        %3131 = vxpose.xlu0.b32.cont [5/16] 0.0, 128
        %3132 = vxpose.xlu0.b32.cont [6/16] 0.0, 128
        %3133 = vxpose.xlu0.b32.cont [7/16] 0.0, 128
        %3134 = vxpose.xlu0.b32.cont [8/16] 0.0, 128
        %3135 = vxpose.xlu0.b32.cont [9/16] 0.0, 128
        %3136 = vxpose.xlu0.b32.cont [10/16] 0.0, 128
        %3137 = vxpose.xlu0.b32.cont [11/16] 0.0, 128
        %3138 = vxpose.xlu0.b32.cont [12/16] 0.0, 128
        %3139 = vxpose.xlu0.b32.cont [13/16] 0.0, 128
        %3140 = vxpose.xlu0.b32.cont [14/16] 0.0, 128
        %3141 = vxpose.xlu0.b32.cont [15/16] 0.0, 128
        %3142 = vxpose.xlu0.b32.end [16/16] 0.0, 128
        %v3143 = vpop.trf.xlu0
        %v3144 = vpop.trf.xlu0
        %v3145 = vpop.trf.xlu0
        %v3146 = vpop.trf.xlu0
        %v3147 = vpop.trf.xlu0
        %v3148 = vpop.trf.xlu0
        %v3149 = vpop.trf.xlu0
        %v3150 = vpop.trf.xlu0
        %v3151 = vpop.trf.xlu0
        %v3152 = vpop.trf.xlu0
        %v3153 = vpop.trf.xlu0
        %v3154 = vpop.trf.xlu0
        %v3155 = vpop.trf.xlu0
        %v3156 = vpop.trf.xlu0
        %v3157 = vpop.trf.xlu0
        %v3158 = vpop.trf.xlu0
        %3159 = vxpose.xlu0.b32.start [1/16] %v3067, 128
        %3160 = vxpose.xlu0.b32.cont [2/16] 0.0, 128
        %3161 = vxpose.xlu0.b32.cont [3/16] 0.0, 128
        %3162 = vxpose.xlu0.b32.cont [4/16] 0.0, 128
        %3163 = vxpose.xlu0.b32.cont [5/16] 0.0, 128
        %3164 = vxpose.xlu0.b32.cont [6/16] 0.0, 128
        %3165 = vxpose.xlu0.b32.cont [7/16] 0.0, 128
        %3166 = vxpose.xlu0.b32.cont [8/16] 0.0, 128
        %3167 = vxpose.xlu0.b32.cont [9/16] 0.0, 128
        %3168 = vxpose.xlu0.b32.cont [10/16] 0.0, 128
        %3169 = vxpose.xlu0.b32.cont [11/16] 0.0, 128
        %3170 = vxpose.xlu0.b32.cont [12/16] 0.0, 128
        %3171 = vxpose.xlu0.b32.cont [13/16] 0.0, 128
        %3172 = vxpose.xlu0.b32.cont [14/16] 0.0, 128
        %3173 = vxpose.xlu0.b32.cont [15/16] 0.0, 128
        %3174 = vxpose.xlu0.b32.end [16/16] 0.0, 128
        %v3175 = vpop.trf.xlu0
        %v3176 = vpop.trf.xlu0
        %v3177 = vpop.trf.xlu0
        %v3178 = vpop.trf.xlu0
        %v3179 = vpop.trf.xlu0
        %v3180 = vpop.trf.xlu0
        %v3181 = vpop.trf.xlu0
        %v3182 = vpop.trf.xlu0
        %v3183 = vpop.trf.xlu0
        %v3184 = vpop.trf.xlu0
        %v3185 = vpop.trf.xlu0
        %v3186 = vpop.trf.xlu0
        %v3187 = vpop.trf.xlu0
        %v3188 = vpop.trf.xlu0
        %v3189 = vpop.trf.xlu0
        %v3190 = vpop.trf.xlu0
        %3191 = vxpose.xlu0.b32.start [1/16] %v3096, 128
        %3192 = vxpose.xlu0.b32.cont [2/16] 0.0, 128
        %3193 = vxpose.xlu0.b32.cont [3/16] 0.0, 128
        %3194 = vxpose.xlu0.b32.cont [4/16] 0.0, 128
        %3195 = vxpose.xlu0.b32.cont [5/16] 0.0, 128
        %3196 = vxpose.xlu0.b32.cont [6/16] 0.0, 128
        %3197 = vxpose.xlu0.b32.cont [7/16] 0.0, 128
        %3198 = vxpose.xlu0.b32.cont [8/16] 0.0, 128
        %3199 = vxpose.xlu0.b32.cont [9/16] 0.0, 128
        %3200 = vxpose.xlu0.b32.cont [10/16] 0.0, 128
        %3201 = vxpose.xlu0.b32.cont [11/16] 0.0, 128
        %3202 = vxpose.xlu0.b32.cont [12/16] 0.0, 128
        %3203 = vxpose.xlu0.b32.cont [13/16] 0.0, 128
        %3204 = vxpose.xlu0.b32.cont [14/16] 0.0, 128
        %3205 = vxpose.xlu0.b32.cont [15/16] 0.0, 128
        %3206 = vxpose.xlu0.b32.end [16/16] 0.0, 128
        %v3207 = vpop.trf.xlu0
        %v3208 = vpop.trf.xlu0
        %v3209 = vpop.trf.xlu0
        %v3210 = vpop.trf.xlu0
        %v3211 = vpop.trf.xlu0
        %v3212 = vpop.trf.xlu0
        %v3213 = vpop.trf.xlu0
        %v3214 = vpop.trf.xlu0
        %v3215 = vpop.trf.xlu0
        %v3216 = vpop.trf.xlu0
        %v3217 = vpop.trf.xlu0
        %v3218 = vpop.trf.xlu0
        %v3219 = vpop.trf.xlu0
        %v3220 = vpop.trf.xlu0
        %v3221 = vpop.trf.xlu0
        %v3222 = vpop.trf.xlu0
        %3223 = vxpose.xlu0.b32.start [1/16] %v3125, 128
        %3224 = vxpose.xlu0.b32.cont [2/16] 0.0, 128
        %3225 = vxpose.xlu0.b32.cont [3/16] 0.0, 128
        %3226 = vxpose.xlu0.b32.cont [4/16] 0.0, 128
        %3227 = vxpose.xlu0.b32.cont [5/16] 0.0, 128
        %3228 = vxpose.xlu0.b32.cont [6/16] 0.0, 128
        %3229 = vxpose.xlu0.b32.cont [7/16] 0.0, 128
        %3230 = vxpose.xlu0.b32.cont [8/16] 0.0, 128
        %3231 = vxpose.xlu0.b32.cont [9/16] 0.0, 128
        %3232 = vxpose.xlu0.b32.cont [10/16] 0.0, 128
        %3233 = vxpose.xlu0.b32.cont [11/16] 0.0, 128
        %3234 = vxpose.xlu0.b32.cont [12/16] 0.0, 128
        %3235 = vxpose.xlu0.b32.cont [13/16] 0.0, 128
        %3236 = vxpose.xlu0.b32.cont [14/16] 0.0, 128
        %3237 = vxpose.xlu0.b32.cont [15/16] 0.0, 128
        %3238 = vxpose.xlu0.b32.end [16/16] 0.0, 128
        %v3239 = vpop.trf.xlu0
        %v3240 = vpop.trf.xlu0
        %v3241 = vpop.trf.xlu0
        %v3242 = vpop.trf.xlu0
        %v3243 = vpop.trf.xlu0
        %v3244 = vpop.trf.xlu0
        %v3245 = vpop.trf.xlu0
        %v3246 = vpop.trf.xlu0
        %v3247 = vpop.trf.xlu0
        %v3248 = vpop.trf.xlu0
        %v3249 = vpop.trf.xlu0
        %v3250 = vpop.trf.xlu0
        %v3251 = vpop.trf.xlu0
        %v3252 = vpop.trf.xlu0
        %v3253 = vpop.trf.xlu0
        %v3254 = vpop.trf.xlu0
        %v3255 = vrot.slane %v3207, 4
        %v3256 = vsel %vm998, %v3255, %v3143
        %v3257 = vrot.slane %v3143, 4
        %v3258 = vsel %vm998, %v3207, %v3257
        %v3260 = vunpack.c.l.s4 1983009808
        %v3261 = vunpack.c.0.s8 %v3260
        %v3262 = vperm.slane %v3256, %v3261
        %v3264 = vunpack.c.l.s4 1983009808
        %v3265 = vunpack.c.0.s8 %v3264
        %v3266 = vperm.slane %v3258, %v3265
        %v3267 = vrot.slane %v3239, 4
        %v3268 = vsel %vm998, %v3267, %v3175
        %v3269 = vrot.slane %v3175, 4
        %v3270 = vsel %vm998, %v3239, %v3269
        %v3272 = vunpack.c.l.s4 1983009808
        %v3273 = vunpack.c.0.s8 %v3272
        %v3274 = vperm.slane %v3268, %v3273
        %v3276 = vunpack.c.l.s4 1983009808
        %v3277 = vunpack.c.0.s8 %v3276
        %v3278 = vperm.slane %v3270, %v3277
        %v3279 = vrot.slane %v3274, 4
        %v3280 = vsel %vm998, %v3279, %v3262
        %v3281 = vrot.slane %v3262, 4
        %v3282 = vsel %vm998, %v3274, %v3281
        %v3284 = vunpack.c.l.s4 1934713408
        %v3285 = vunpack.c.0.s8 %v3284
        %v3286 = vperm.slane %v3280, %v3285
        %v3288 = vunpack.c.l.s4 1934713408
        %v3289 = vunpack.c.0.s8 %v3288
        %v3290 = vperm.slane %v3282, %v3289
        %v3291 = vrot.slane %v3278, 4
        %v3292 = vsel %vm998, %v3291, %v3266
        %v3293 = vrot.slane %v3266, 4
        %v3294 = vsel %vm998, %v3278, %v3293
        %v3296 = vunpack.c.l.s4 1934713408
        %v3297 = vunpack.c.0.s8 %v3296
        %v3298 = vperm.slane %v3292, %v3297
        %v3300 = vunpack.c.l.s4 1934713408
        %v3301 = vunpack.c.0.s8 %v3300
        %v3302 = vperm.slane %v3294, %v3301
        %v3303 = vrot.slane %v3286, 4
        %v3304 = vsel %vm998, 0.0, %v3303
        %v3305 = vrot.slane %v3290, 4
        %v3306 = vsel %vm998, 0.0, %v3305
        %v3307 = vrot.slane %v3298, 4
        %v3308 = vsel %vm998, 0.0, %v3307
        %v3309 = vrot.slane %v3302, 4
        %v3310 = vsel %vm998, 0.0, %v3309
        %v3311 = vrot.slane %v3208, 4
        %v3312 = vsel %vm998, %v3311, %v3144
        %v3313 = vrot.slane %v3144, 4
        %v3314 = vsel %vm998, %v3208, %v3313
        %v3316 = vunpack.c.l.s4 1983009808
        %v3317 = vunpack.c.0.s8 %v3316
        %v3318 = vperm.slane %v3312, %v3317
        %v3320 = vunpack.c.l.s4 1983009808
        %v3321 = vunpack.c.0.s8 %v3320
        %v3322 = vperm.slane %v3314, %v3321
        %v3323 = vrot.slane %v3240, 4
        %v3324 = vsel %vm998, %v3323, %v3176
        %v3325 = vrot.slane %v3176, 4
        %v3326 = vsel %vm998, %v3240, %v3325
        %v3328 = vunpack.c.l.s4 1983009808
        %v3329 = vunpack.c.0.s8 %v3328
        %v3330 = vperm.slane %v3324, %v3329
        %v3332 = vunpack.c.l.s4 1983009808
        %v3333 = vunpack.c.0.s8 %v3332
        %v3334 = vperm.slane %v3326, %v3333
        %v3335 = vrot.slane %v3330, 4
        %v3336 = vsel %vm998, %v3335, %v3318
        %v3337 = vrot.slane %v3318, 4
        %v3338 = vsel %vm998, %v3330, %v3337
        %v3340 = vunpack.c.l.s4 1934713408
        %v3341 = vunpack.c.0.s8 %v3340
        %v3342 = vperm.slane %v3336, %v3341
        %v3344 = vunpack.c.l.s4 1934713408
        %v3345 = vunpack.c.0.s8 %v3344
        %v3346 = vperm.slane %v3338, %v3345
        %v3347 = vrot.slane %v3334, 4
        %v3348 = vsel %vm998, %v3347, %v3322
        %v3349 = vrot.slane %v3322, 4
        %v3350 = vsel %vm998, %v3334, %v3349
        %v3352 = vunpack.c.l.s4 1934713408
        %v3353 = vunpack.c.0.s8 %v3352
        %v3354 = vperm.slane %v3348, %v3353
        %v3356 = vunpack.c.l.s4 1934713408
        %v3357 = vunpack.c.0.s8 %v3356
        %v3358 = vperm.slane %v3350, %v3357
        %v3359 = vrot.slane %v3342, 4
        %v3360 = vsel %vm998, 0.0, %v3359
        %v3361 = vrot.slane %v3346, 4
        %v3362 = vsel %vm998, 0.0, %v3361
        %v3363 = vrot.slane %v3354, 4
        %v3364 = vsel %vm998, 0.0, %v3363
        %v3365 = vrot.slane %v3358, 4
        %v3366 = vsel %vm998, 0.0, %v3365
        %v3367 = vsel %vm998, %v3305, %v3286
        %v3369 = vunpack.c.l.s4 1983009808
        %v3370 = vunpack.c.0.s8 %v3369
        %v3371 = vperm.slane %v3367, %v3370
        %v3372 = vrot.slane %v3306, 4
        %v3373 = vsel %vm998, %v3372, %v3304
        %v3375 = vunpack.c.l.s4 1983009808
        %v3376 = vunpack.c.0.s8 %v3375
        %v3377 = vperm.slane %v3373, %v3376
        %v3378 = vsel %vm998, %v3309, %v3298
        %v3380 = vunpack.c.l.s4 1983009808
        %v3381 = vunpack.c.0.s8 %v3380
        %v3382 = vperm.slane %v3378, %v3381
        %v3383 = vrot.slane %v3310, 4
        %v3384 = vsel %vm998, %v3383, %v3308
        %v3386 = vunpack.c.l.s4 1983009808
        %v3387 = vunpack.c.0.s8 %v3386
        %v3388 = vperm.slane %v3384, %v3387
        %v3389 = vrot.slane %v3377, 4
        %v3390 = vsel %vm998, %v3389, %v3371
        %v3391 = vrot.slane %v3371, 4
        %v3392 = vsel %vm998, %v3377, %v3391
        %v3394 = vunpack.c.l.s4 1934713408
        %v3395 = vunpack.c.0.s8 %v3394
        %v3396 = vperm.slane %v3390, %v3395
        %v3398 = vunpack.c.l.s4 1934713408
        %v3399 = vunpack.c.0.s8 %v3398
        %v3400 = vperm.slane %v3392, %v3399
        %v3401 = vrot.slane %v3388, 4
        %v3402 = vsel %vm998, %v3401, %v3382
        %v3403 = vrot.slane %v3382, 4
        %v3404 = vsel %vm998, %v3388, %v3403
        %v3406 = vunpack.c.l.s4 1934713408
        %v3407 = vunpack.c.0.s8 %v3406
        %v3408 = vperm.slane %v3402, %v3407
        %v3410 = vunpack.c.l.s4 1934713408
        %v3411 = vunpack.c.0.s8 %v3410
        %v3412 = vperm.slane %v3404, %v3411
        %v3413 = vrot.slane %v3408, 4
        %v3414 = vsel %vm998, %v3413, %v3396
        %v3415 = vrot.slane %v3396, 4
        %v3416 = vsel %vm998, %v3408, %v3415
        %v3417 = vrot.slane %v3412, 4
        %v3418 = vsel %vm998, %v3417, %v3400
        %v3419 = vrot.slane %v3400, 4
        %v3420 = vsel %vm998, %v3412, %v3419
        %v3421 = vsel %vm998, %v3361, %v3342
        %v3423 = vunpack.c.l.s4 1983009808
        %v3424 = vunpack.c.0.s8 %v3423
        %v3425 = vperm.slane %v3421, %v3424
        %v3426 = vrot.slane %v3362, 4
        %v3427 = vsel %vm998, %v3426, %v3360
        %v3429 = vunpack.c.l.s4 1983009808
        %v3430 = vunpack.c.0.s8 %v3429
        %v3431 = vperm.slane %v3427, %v3430
        %v3432 = vsel %vm998, %v3365, %v3354
        %v3434 = vunpack.c.l.s4 1983009808
        %v3435 = vunpack.c.0.s8 %v3434
        %v3436 = vperm.slane %v3432, %v3435
        %v3437 = vrot.slane %v3366, 4
        %v3438 = vsel %vm998, %v3437, %v3364
        %v3440 = vunpack.c.l.s4 1983009808
        %v3441 = vunpack.c.0.s8 %v3440
        %v3442 = vperm.slane %v3438, %v3441
        %v3443 = vrot.slane %v3431, 4
        %v3444 = vsel %vm998, %v3443, %v3425
        %v3445 = vrot.slane %v3425, 4
        %v3446 = vsel %vm998, %v3431, %v3445
        %v3448 = vunpack.c.l.s4 1934713408
        %v3449 = vunpack.c.0.s8 %v3448
        %v3450 = vperm.slane %v3444, %v3449
        %v3452 = vunpack.c.l.s4 1934713408
        %v3453 = vunpack.c.0.s8 %v3452
        %v3454 = vperm.slane %v3446, %v3453
        %v3455 = vrot.slane %v3442, 4
        %v3456 = vsel %vm998, %v3455, %v3436
        %v3457 = vrot.slane %v3436, 4
        %v3458 = vsel %vm998, %v3442, %v3457
        %v3460 = vunpack.c.l.s4 1934713408
        %v3461 = vunpack.c.0.s8 %v3460
        %v3462 = vperm.slane %v3456, %v3461
        %v3464 = vunpack.c.l.s4 1934713408
        %v3465 = vunpack.c.0.s8 %v3464
        %v3466 = vperm.slane %v3458, %v3465
        %v3467 = vrot.slane %v3462, 4
        %v3468 = vsel %vm998, %v3467, %v3450
        %v3469 = vrot.slane %v3450, 4
        %v3470 = vsel %vm998, %v3462, %v3469
        %v3471 = vrot.slane %v3466, 4
        %v3472 = vsel %vm998, %v3471, %v3454
        %v3473 = vrot.slane %v3454, 4
        %v3474 = vsel %vm998, %v3466, %v3473
        %3477 = vrot.lane.b32.xlu0 %v3416, 8
        %v3478 = vpop.permute.xlu0 %3477
        %3479 = vrot.lane.b32.xlu0 %v3470, 8
        %v3480 = vpop.permute.xlu0 %3479
        %3485 = vrot.lane.b32.xlu0 %v3418, 16
        %v3486 = vpop.permute.xlu0 %3485
        %3487 = vrot.lane.b32.xlu0 %v3472, 16
        %v3488 = vpop.permute.xlu0 %3487
        %3493 = vrot.lane.b32.xlu0 %v3420, 24
        %v3494 = vpop.permute.xlu0 %3493
        %3495 = vrot.lane.b32.xlu0 %v3474, 24
        %v3496 = vpop.permute.xlu0 %3495
        %v3499 = vsel %vm1390, %v3414, %v3478
        %v3500 = vsel %vm1390, %v3468, %v3480
        %v3501 = vsel %vm1507, %v3499, %v3486
        %v3502 = vsel %vm1507, %v3500, %v3488
        %v3503 = vsel %vm2240, %v3501, %v3494
        %v3504 = vsel %vm2240, %v3502, %v3496
        %v3505 = vld [vmem:[%s708] sm:$0xff]
        %v3506 = vld [vmem:[%s708 + $0x8] sm:$0xff]
        %v3507 = vld [vmem:[%s708 + $0x10] sm:$0xff]
        %v3508 = vld [vmem:[%s708 + $0x18] sm:$0xff]
        %v3509 = vld [vmem:[%s711] sm:$0x1]
        %v3511 = vperm.slane %v3509, 0
        %v3514 = vsel %vm810, %v2241, 0
        %v3517 = vsel %vm810, %v2242, 0
        %v3520 = vsel %vm810, %v3503, 0
        %v3523 = vsel %vm810, %v3504, 0
        %3525 = vmatpush.msra.mxu0 0.0
        %3526 = vmatpush.msra.mxu0 0.0
        %3527 = vmatpush.msra.mxu0 0.0
        %3528 = vmatpush.msra.mxu0 0.0
        %3529 = vmatpush.msra.mxu0 0.0
        %3530 = vmatpush.msra.mxu0 0.0
        %3531 = vmatpush.msra.mxu0 0.0
        %3532 = vmatpush.msra.mxu0 0.0
        %3533 = vmatpush.msra.mxu0 0.0
        %3534 = vmatpush.msra.mxu0 0.0
        %3535 = vmatpush.msra.mxu0 0.0
        %3536 = vmatpush.msra.mxu0 0.0
        %3537 = vmatpush.msra.mxu0 %v3508
        %3538 = vmatpush.msra.mxu0 %v3507
        %3539 = vmatpush.msra.mxu0 %v3506
        %3540 = vmatpush.msra.mxu0 %v3505
        %3541 = vmatmul.f32.gmra.mxu0 %v3514
        %v3542 = vpop.f32.mrf.mxu0
        %v3543 = vadd.f32 %v3511, %v3542
        %3544 = vmatmul.f32.gmra.mxu0 %v3517
        %v3545 = vpop.f32.mrf.mxu0
        %v3546 = vadd.f32 %v3511, %v3545
        %3547 = vmatmul.f32.gmra.mxu0 %v3520
        %v3548 = vpop.f32.mrf.mxu0
        %v3549 = vadd.f32 %v3511, %v3548
        %3550 = vmatmul.f32.gmra.mxu0 %v3523
        %v3551 = vpop.f32.mrf.mxu0
        %v3552 = vadd.f32 %v3511, %v3551
        %3553 = vdwg.mxu0
        %v3554 = vadd.f32 %v804, %v3543
        %v3555 = vadd.f32 %v805, %v3546
        %v3556 = vadd.f32 %v806, %v3549
        %v3557 = vadd.f32 %v807, %v3552
        %v3558 = vld [vmem:[%s714] sm:$0x1]
        %v3559 = vld [vmem:[%s717] sm:$0x1]
        %v3560 = vsel %vm810, %v3554, 0.0
        %3561 = vadd.xlane.f32.xlu0 %v3560
        %v3562 = vpop.xlane.xlu0 %3561
        %v3563 = vsel %vm810, %v3555, 0.0
        %3564 = vadd.xlane.f32.xlu0 %v3563
        %v3565 = vpop.xlane.xlu0 %3564
        %v3566 = vsel %vm810, %v3556, 0.0
        %3567 = vadd.xlane.f32.xlu0 %v3566
        %v3568 = vpop.xlane.xlu0 %3567
        %v3569 = vsel %vm810, %v3557, 0.0
        %3570 = vadd.xlane.f32.xlu0 %v3569
        %v3571 = vpop.xlane.xlu0 %3570
        %v3572 = vmul.f32 %v3562, %v829
        %v3573 = vmul.f32 %v3565, %v829
        %v3574 = vmul.f32 %v3568, %v829
        %v3575 = vmul.f32 %v3571, %v829
        %v3576 = vmul.f32 %v3554, %v3554
        %v3577 = vmul.f32 %v3555, %v3555
        %v3578 = vmul.f32 %v3556, %v3556
        %v3579 = vmul.f32 %v3557, %v3557
        %v3580 = vsel %vm810, %v3576, 0.0
        %3581 = vadd.xlane.f32.xlu0 %v3580
        %v3582 = vpop.xlane.xlu0 %3581
        %v3583 = vsel %vm810, %v3577, 0.0
        %3584 = vadd.xlane.f32.xlu0 %v3583
        %v3585 = vpop.xlane.xlu0 %3584
        %v3586 = vsel %vm810, %v3578, 0.0
        %3587 = vadd.xlane.f32.xlu0 %v3586
        %v3588 = vpop.xlane.xlu0 %3587
        %v3589 = vsel %vm810, %v3579, 0.0
        %3590 = vadd.xlane.f32.xlu0 %v3589
        %v3591 = vpop.xlane.xlu0 %3590
        %v3592 = vmul.f32 %v3582, %v829
        %v3593 = vmul.f32 %v3585, %v829
        %v3594 = vmul.f32 %v3588, %v829
        %v3595 = vmul.f32 %v3591, %v829
        %v3596 = vmul.f32 %v3572, %v3572
        %v3597 = vmul.f32 %v3573, %v3573
        %v3598 = vmul.f32 %v3574, %v3574
        %v3599 = vmul.f32 %v3575, %v3575
        %v3600 = vsub.f32 %v3592, %v3596
        %v3601 = vsub.f32 %v3593, %v3597
        %v3602 = vsub.f32 %v3594, %v3598
        %v3603 = vsub.f32 %v3595, %v3599
        %v3604 = vsub.f32 %v3554, %v3572
        %v3605 = vsub.f32 %v3555, %v3573
        %v3606 = vsub.f32 %v3556, %v3574
        %v3607 = vsub.f32 %v3557, %v3575
        %v3608 = vadd.f32 %v3600, 1e-05
        %v3609 = vadd.f32 %v3601, 1e-05
        %v3610 = vadd.f32 %v3602, 1e-05
        %v3611 = vadd.f32 %v3603, 1e-05
        %v3612 = vrsqrt.pop %v3608
        %v3613 = vmul.f32 %v3612, %v3608
        %v3614 = vmul.f32 %v3613, %v3612
        %v3615 = vmul.f32 0.5, %v3614
        %v3616 = vsub.f32 1.5, %v3615
        %v3617 = vmul.f32 %v3612, %v3616
        %vm3618 = vweird.f32 %v3608
        %vm3619 = vweird.f32 %v3612
        %vm3620 = vmor %vm3618, %vm3619
        %v3621 = vsel %vm3620, %v3612, %v3617
        %v3622 = vrsqrt.pop %v3609
        %v3623 = vmul.f32 %v3622, %v3609
        %v3624 = vmul.f32 %v3623, %v3622
        %v3625 = vmul.f32 0.5, %v3624
        %v3626 = vsub.f32 1.5, %v3625
        %v3627 = vmul.f32 %v3622, %v3626
        %vm3628 = vweird.f32 %v3609
        %vm3629 = vweird.f32 %v3622
        %vm3630 = vmor %vm3628, %vm3629
        %v3631 = vsel %vm3630, %v3622, %v3627
        %v3632 = vrsqrt.pop %v3610
        %v3633 = vmul.f32 %v3632, %v3610
        %v3634 = vmul.f32 %v3633, %v3632
        %v3635 = vmul.f32 0.5, %v3634
        %v3636 = vsub.f32 1.5, %v3635
        %v3637 = vmul.f32 %v3632, %v3636
        %vm3638 = vweird.f32 %v3610
        %vm3639 = vweird.f32 %v3632
        %vm3640 = vmor %vm3638, %vm3639
        %v3641 = vsel %vm3640, %v3632, %v3637
        %v3642 = vrsqrt.pop %v3611
        %v3643 = vmul.f32 %v3642, %v3611
        %v3644 = vmul.f32 %v3643, %v3642
        %v3645 = vmul.f32 0.5, %v3644
        %v3646 = vsub.f32 1.5, %v3645
        %v3647 = vmul.f32 %v3642, %v3646
        %vm3648 = vweird.f32 %v3611
        %vm3649 = vweird.f32 %v3642
        %vm3650 = vmor %vm3648, %vm3649
        %v3651 = vsel %vm3650, %v3642, %v3647
        %v3652 = vmul.f32 %v3604, %v3621
        %v3653 = vmul.f32 %v3605, %v3631
        %v3654 = vmul.f32 %v3606, %v3641
        %v3655 = vmul.f32 %v3607, %v3651
        %v3657 = vperm.slane %v3558, 0
        %v3659 = vmul.f32 %v3652, %v3657
        %v3660 = vmul.f32 %v3653, %v3657
        %v3661 = vmul.f32 %v3654, %v3657
        %v3662 = vmul.f32 %v3655, %v3657
        %v3664 = vperm.slane %v3559, 0
        %v3666 = vadd.f32 %v3659, %v3664
        %v3667 = vadd.f32 %v3660, %v3664
        %v3668 = vadd.f32 %v3661, %v3664
        %v3669 = vadd.f32 %v3662, %v3664
        %v3670 = vld [vmem:[%s722] sm:$0xff]
        %v3671 = vld [vmem:[%s722 + $0x8] sm:$0xff]
        %v3672 = vld [vmem:[%s722 + $0x10] sm:$0xff]
        %v3673 = vld [vmem:[%s722 + $0x18] sm:$0xff]
        %v3674 = vld [vmem:[%s725] sm:$0x1]
        %v3676 = vperm.slane %v3674, 0
        %v3679 = vsel %vm810, %v3666, 0
        %v3682 = vsel %vm810, %v3667, 0
        %v3685 = vsel %vm810, %v3668, 0
        %v3688 = vsel %vm810, %v3669, 0
        %3690 = vmatpush.msra.mxu0 0.0
        %3691 = vmatpush.msra.mxu0 0.0
        %3692 = vmatpush.msra.mxu0 0.0
        %3693 = vmatpush.msra.mxu0 0.0
        %3694 = vmatpush.msra.mxu0 0.0
        %3695 = vmatpush.msra.mxu0 0.0
        %3696 = vmatpush.msra.mxu0 0.0
        %3697 = vmatpush.msra.mxu0 0.0
        %3698 = vmatpush.msra.mxu0 0.0
        %3699 = vmatpush.msra.mxu0 0.0
        %3700 = vmatpush.msra.mxu0 0.0
        %3701 = vmatpush.msra.mxu0 0.0
        %3702 = vmatpush.msra.mxu0 %v3673
        %3703 = vmatpush.msra.mxu0 %v3672
        %3704 = vmatpush.msra.mxu0 %v3671
        %3705 = vmatpush.msra.mxu0 %v3670
        %3706 = vmatmul.f32.gmra.mxu0 %v3679
        %v3707 = vpop.f32.mrf.mxu0
        %v3708 = vadd.f32 %v3676, %v3707
        %3709 = vmatmul.f32.gmra.mxu0 %v3682
        %v3710 = vpop.f32.mrf.mxu0
        %v3711 = vadd.f32 %v3676, %v3710
        %3712 = vmatmul.f32.gmra.mxu0 %v3685
        %v3713 = vpop.f32.mrf.mxu0
        %v3714 = vadd.f32 %v3676, %v3713
        %3715 = vmatmul.f32.gmra.mxu0 %v3688
        %v3716 = vpop.f32.mrf.mxu0
        %v3717 = vadd.f32 %v3676, %v3716
        %3718 = vdwg.mxu0
        %v3719 = vmul.f32 %v3708, %v3708
        %v3720 = vmul.f32 %v3711, %v3711
        %v3721 = vmul.f32 %v3714, %v3714
        %v3722 = vmul.f32 %v3717, %v3717
        %v3723 = vmul.f32 %v3708, %v3719
        %v3724 = vmul.f32 %v3711, %v3720
        %v3725 = vmul.f32 %v3714, %v3721
        %v3726 = vmul.f32 %v3717, %v3722
        %v3727 = vmul.f32 %v3723, 0.044715
        %v3728 = vmul.f32 %v3724, 0.044715
        %v3729 = vmul.f32 %v3725, 0.044715
        %v3730 = vmul.f32 %v3726, 0.044715
        %v3731 = vadd.f32 %v3708, %v3727
        %v3732 = vadd.f32 %v3711, %v3728
        %v3733 = vadd.f32 %v3714, %v3729
        %v3734 = vadd.f32 %v3717, %v3730
        %v3735 = vmul.f32 %v3731, 0.7978846
        %v3736 = vmul.f32 %v3732, 0.7978846
        %v3737 = vmul.f32 %v3733, 0.7978846
        %v3738 = vmul.f32 %v3734, 0.7978846
        %v3739 = vtanh.pop %v3735
        %v3740 = vtanh.pop %v3736
        %v3741 = vtanh.pop %v3737
        %v3742 = vtanh.pop %v3738
        %v3743 = vadd.f32 %v3739, 1.0
        %v3744 = vadd.f32 %v3740, 1.0
        %v3745 = vadd.f32 %v3741, 1.0
        %v3746 = vadd.f32 %v3742, 1.0
        %v3747 = vmul.f32 %v3743, 0.5
        %v3748 = vmul.f32 %v3744, 0.5
        %v3749 = vmul.f32 %v3745, 0.5
        %v3750 = vmul.f32 %v3746, 0.5
        %v3751 = vmul.f32 %v3708, %v3747
        %v3752 = vmul.f32 %v3711, %v3748
        %v3753 = vmul.f32 %v3714, %v3749
        %v3754 = vmul.f32 %v3717, %v3750
        %v3755 = vld [vmem:[%s730] sm:$0xff]
        %v3756 = vld [vmem:[%s730 + $0x8] sm:$0xff]
        %v3757 = vld [vmem:[%s730 + $0x10] sm:$0xff]
        %v3758 = vld [vmem:[%s730 + $0x18] sm:$0xff]
        %v3759 = vld [vmem:[%s730 + $0x20] sm:$0xff]
        %v3760 = vld [vmem:[%s730 + $0x28] sm:$0xff]
        %v3761 = vld [vmem:[%s730 + $0x30] sm:$0xff]
        %v3762 = vld [vmem:[%s730 + $0x38] sm:$0xff]
        %v3763 = vld [vmem:[%s730 + $0x40] sm:$0xff]
        %v3764 = vld [vmem:[%s730 + $0x48] sm:$0xff]
        %v3765 = vld [vmem:[%s730 + $0x50] sm:$0xff]
        %v3766 = vld [vmem:[%s730 + $0x58] sm:$0xff]
        %v3767 = vld [vmem:[%s730 + $0x60] sm:$0xff]
        %v3768 = vld [vmem:[%s730 + $0x68] sm:$0xff]
        %v3769 = vld [vmem:[%s730 + $0x70] sm:$0xff]
        %v3770 = vld [vmem:[%s730 + $0x78] sm:$0xff]
        %v3771 = vld [vmem:[%s733] sm:$0x1]
        %v3773 = vperm.slane %v3771, 0
        %3775 = vmatpush.msra.mxu0 %v3770
        %3776 = vmatpush.msra.mxu0 %v3769
        %3777 = vmatpush.msra.mxu0 %v3768
        %3778 = vmatpush.msra.mxu0 %v3767
        %3779 = vmatpush.msra.mxu0 %v3766
        %3780 = vmatpush.msra.mxu0 %v3765
        %3781 = vmatpush.msra.mxu0 %v3764
        %3782 = vmatpush.msra.mxu0 %v3763
        %3783 = vmatpush.msra.mxu0 %v3762
        %3784 = vmatpush.msra.mxu0 %v3761
        %3785 = vmatpush.msra.mxu0 %v3760
        %3786 = vmatpush.msra.mxu0 %v3759
        %3787 = vmatpush.msra.mxu0 %v3758
        %3788 = vmatpush.msra.mxu0 %v3757
        %3789 = vmatpush.msra.mxu0 %v3756
        %3790 = vmatpush.msra.mxu0 %v3755
        %3791 = vmatmul.f32.gmra.mxu0 %v3751
        %v3792 = vpop.f32.mrf.mxu0
        %v3793 = vadd.f32 %v3773, %v3792
        %3794 = vmatmul.f32.gmra.mxu0 %v3752
        %v3795 = vpop.f32.mrf.mxu0
        %v3796 = vadd.f32 %v3773, %v3795
        %3797 = vmatmul.f32.gmra.mxu0 %v3753
        %v3798 = vpop.f32.mrf.mxu0
        %v3799 = vadd.f32 %v3773, %v3798
        %3800 = vmatmul.f32.gmra.mxu0 %v3754
        %v3801 = vpop.f32.mrf.mxu0
        %v3802 = vadd.f32 %v3773, %v3801
        %3803 = vdwg.mxu0
        %v3804 = vadd.f32 %v3554, %v3793
        %v3805 = vadd.f32 %v3555, %v3796
        %v3806 = vadd.f32 %v3556, %v3799
        %v3807 = vadd.f32 %v3557, %v3802
        %3808 = vst.msk [vmem:[#allocation2] sm:$0xff] %vm810, %v3804
        %3809 = vst.msk [vmem:[#allocation2 + $0x8] sm:$0xff] %vm810, %v3805
        %3810 = vst.msk [vmem:[#allocation2 + $0x10] sm:$0xff] %vm810, %v3806
        %3811 = vst.msk [vmem:[#allocation2 + $0x18] sm:$0xff] %vm810, %v3807
        %s3812 = sadd.s32 %s30, 1
        %p3813 = scmp.lt.s32.totalorder %s3812, 0
        %s3814 = ssub.s32 0, %s3812
        %s3815 = scalar_select %p3813, %s3814, %s3812
        %s3816 = sand.u32 %s3815, 1
        %s3817 = ssub.s32 0, %s3816
        %s3818 = scalar_select %p3813, %s3817, %s3816
        %p3819 = scmp.ne.s32.totalorder %s3818, 0
        %p3820 = scmp.lt.s32.totalorder %s3818, 0
        %p3821 = pnand %p3820, %p3819
        %p3822 = pneg %p3821
        %s3823 = sadd.s32 %s3818, 2
        %s3824 = scalar_select %p3822, %s3823, %s3818
        %p3825 = scmp.eq.s32.totalorder %s3824, 0
        // Predicated region
        $region97: #{tpu_custom_call.1} parent=91 // pred_check
          %p3826 = pneg %p3825
        $region98: #{tpu_custom_call.1} parent=91 // pred_check_branch
          %3828 = sbr.rel (%p3826) target = $region100
        $region99: #{tpu_custom_call.1} parent=91 // pred_region
          %v3829 = vld [vmem:[#allocation2] sm:$0xff]
          %v3830 = vld [vmem:[#allocation2 + $0x8] sm:$0xff]
          %v3831 = vld [vmem:[#allocation2 + $0x10] sm:$0xff]
          %v3832 = vld [vmem:[#allocation2 + $0x18] sm:$0xff]
          %v3833 = vld [vmem:[#allocation3] sm:$0xff]
          %v3834 = vld [vmem:[#allocation3 + $0x8] sm:$0xff]
          %v3835 = vld [vmem:[#allocation3 + $0x10] sm:$0xff]
          %v3836 = vld [vmem:[#allocation3 + $0x18] sm:$0xff]
          %v3837 = vadd.f32 %v3829, %v3833
          %v3838 = vadd.f32 %v3830, %v3834
          %v3839 = vadd.f32 %v3831, %v3835
          %v3840 = vadd.f32 %v3832, %v3836
          %3841 = vst.msk [vmem:[#allocation2] sm:$0xff] %vm810, %v3837
          %3842 = vst.msk [vmem:[#allocation2 + $0x8] sm:$0xff] %vm810, %v3838
          %3843 = vst.msk [vmem:[#allocation2 + $0x10] sm:$0xff] %vm810, %v3839
          %3844 = vst.msk [vmem:[#allocation2 + $0x18] sm:$0xff] %vm810, %v3840
          %3845 = vst.msk [vmem:[#allocation3] sm:$0xff] %vm810, %v3837
          %3846 = vst.msk [vmem:[#allocation3 + $0x8] sm:$0xff] %vm810, %v3838
          %3847 = vst.msk [vmem:[#allocation3 + $0x10] sm:$0xff] %vm810, %v3839
          %3848 = vst.msk [vmem:[#allocation3 + $0x18] sm:$0xff] %vm810, %v3840
        $region100: #{tpu_custom_call.1} parent=91 // pred_fallthru
          _
        %p3849 = scmp.eq.s32.totalorder %s30, 1
        // Predicated region
        $region101: #{tpu_custom_call.1} parent=91 // pred_check
          %p3850 = pneg %p3849
        $region102: #{tpu_custom_call.1} parent=91 // pred_check_branch
          %3852 = sbr.rel (%p3850) target = $region104
        $region103: #{tpu_custom_call.1} parent=91 // pred_region
          %v3853 = vld [vmem:[#allocation2] sm:$0xff]
          %v3854 = vld [vmem:[#allocation2 + $0x8] sm:$0xff]
          %v3855 = vld [vmem:[#allocation2 + $0x10] sm:$0xff]
          %v3856 = vld [vmem:[#allocation2 + $0x18] sm:$0xff]
          %v3857 = vld [vmem:[%s16] sm:$0x1]
          %v3858 = vld [vmem:[%s17] sm:$0x1]
          %v3859 = vsel %vm810, %v3853, 0.0
          %3860 = vadd.xlane.f32.xlu0 %v3859
          %v3861 = vpop.xlane.xlu0 %3860
          %v3862 = vsel %vm810, %v3854, 0.0
          %3863 = vadd.xlane.f32.xlu0 %v3862
          %v3864 = vpop.xlane.xlu0 %3863
          %v3865 = vsel %vm810, %v3855, 0.0
          %3866 = vadd.xlane.f32.xlu0 %v3865
          %v3867 = vpop.xlane.xlu0 %3866
          %v3868 = vsel %vm810, %v3856, 0.0
          %3869 = vadd.xlane.f32.xlu0 %v3868
          %v3870 = vpop.xlane.xlu0 %3869
          %v3871 = vmul.f32 %v3861, %v829
          %v3872 = vmul.f32 %v3864, %v829
          %v3873 = vmul.f32 %v3867, %v829
          %v3874 = vmul.f32 %v3870, %v829
          %v3875 = vmul.f32 %v3853, %v3853
          %v3876 = vmul.f32 %v3854, %v3854
          %v3877 = vmul.f32 %v3855, %v3855
          %v3878 = vmul.f32 %v3856, %v3856
          %v3879 = vsel %vm810, %v3875, 0.0
          %3880 = vadd.xlane.f32.xlu0 %v3879
          %v3881 = vpop.xlane.xlu0 %3880
          %v3882 = vsel %vm810, %v3876, 0.0
          %3883 = vadd.xlane.f32.xlu0 %v3882
          %v3884 = vpop.xlane.xlu0 %3883
          %v3885 = vsel %vm810, %v3877, 0.0
          %3886 = vadd.xlane.f32.xlu0 %v3885
          %v3887 = vpop.xlane.xlu0 %3886
          %v3888 = vsel %vm810, %v3878, 0.0
          %3889 = vadd.xlane.f32.xlu0 %v3888
          %v3890 = vpop.xlane.xlu0 %3889
          %v3891 = vmul.f32 %v3881, %v829
          %v3892 = vmul.f32 %v3884, %v829
          %v3893 = vmul.f32 %v3887, %v829
          %v3894 = vmul.f32 %v3890, %v829
          %v3895 = vmul.f32 %v3871, %v3871
          %v3896 = vmul.f32 %v3872, %v3872
          %v3897 = vmul.f32 %v3873, %v3873
          %v3898 = vmul.f32 %v3874, %v3874
          %v3899 = vsub.f32 %v3891, %v3895
          %v3900 = vsub.f32 %v3892, %v3896
          %v3901 = vsub.f32 %v3893, %v3897
          %v3902 = vsub.f32 %v3894, %v3898
          %v3903 = vsub.f32 %v3853, %v3871
          %v3904 = vsub.f32 %v3854, %v3872
          %v3905 = vsub.f32 %v3855, %v3873
          %v3906 = vsub.f32 %v3856, %v3874
          %v3907 = vadd.f32 %v3899, 1e-05
          %v3908 = vadd.f32 %v3900, 1e-05
          %v3909 = vadd.f32 %v3901, 1e-05
          %v3910 = vadd.f32 %v3902, 1e-05
          %v3911 = vrsqrt.pop %v3907
          %v3912 = vmul.f32 %v3911, %v3907
          %v3913 = vmul.f32 %v3912, %v3911
          %v3914 = vmul.f32 0.5, %v3913
          %v3915 = vsub.f32 1.5, %v3914
          %v3916 = vmul.f32 %v3911, %v3915
          %vm3917 = vweird.f32 %v3907
          %vm3918 = vweird.f32 %v3911
          %vm3919 = vmor %vm3917, %vm3918
          %v3920 = vsel %vm3919, %v3911, %v3916
          %v3921 = vrsqrt.pop %v3908
          %v3922 = vmul.f32 %v3921, %v3908
          %v3923 = vmul.f32 %v3922, %v3921
          %v3924 = vmul.f32 0.5, %v3923
          %v3925 = vsub.f32 1.5, %v3924
          %v3926 = vmul.f32 %v3921, %v3925
          %vm3927 = vweird.f32 %v3908
          %vm3928 = vweird.f32 %v3921
          %vm3929 = vmor %vm3927, %vm3928
          %v3930 = vsel %vm3929, %v3921, %v3926
          %v3931 = vrsqrt.pop %v3909
          %v3932 = vmul.f32 %v3931, %v3909
          %v3933 = vmul.f32 %v3932, %v3931
          %v3934 = vmul.f32 0.5, %v3933
          %v3935 = vsub.f32 1.5, %v3934
          %v3936 = vmul.f32 %v3931, %v3935
          %vm3937 = vweird.f32 %v3909
          %vm3938 = vweird.f32 %v3931
          %vm3939 = vmor %vm3937, %vm3938
          %v3940 = vsel %vm3939, %v3931, %v3936
          %v3941 = vrsqrt.pop %v3910
          %v3942 = vmul.f32 %v3941, %v3910
          %v3943 = vmul.f32 %v3942, %v3941
          %v3944 = vmul.f32 0.5, %v3943
          %v3945 = vsub.f32 1.5, %v3944
          %v3946 = vmul.f32 %v3941, %v3945
          %vm3947 = vweird.f32 %v3910
          %vm3948 = vweird.f32 %v3941
          %vm3949 = vmor %vm3947, %vm3948
          %v3950 = vsel %vm3949, %v3941, %v3946
          %v3951 = vmul.f32 %v3903, %v3920
          %v3952 = vmul.f32 %v3904, %v3930
          %v3953 = vmul.f32 %v3905, %v3940
          %v3954 = vmul.f32 %v3906, %v3950
          %v3956 = vperm.slane %v3857, 0
          %v3958 = vmul.f32 %v3951, %v3956
          %v3959 = vmul.f32 %v3952, %v3956
          %v3960 = vmul.f32 %v3953, %v3956
          %v3961 = vmul.f32 %v3954, %v3956
          %v3963 = vperm.slane %v3858, 0
          %v3965 = vadd.f32 %v3958, %v3963
          %v3966 = vadd.f32 %v3959, %v3963
          %v3967 = vadd.f32 %v3960, %v3963
          %v3968 = vadd.f32 %v3961, %v3963
          %3969 = vst.msk [vmem:[#allocation4] sm:$0xff] %vm810, %v3965
          %3970 = vst.msk [vmem:[#allocation4 + $0x8] sm:$0xff] %vm810, %v3966
          %3971 = vst.msk [vmem:[#allocation4 + $0x10] sm:$0xff] %vm810, %v3967
          %3972 = vst.msk [vmem:[#allocation4 + $0x18] sm:$0xff] %vm810, %v3968
        $region104: #{tpu_custom_call.1} parent=91 // pred_fallthru
          _
        // Predicated region
        $region105: #{tpu_custom_call.1} parent=91 // pred_check
          %p3973 = pneg %p481
        $region106: #{tpu_custom_call.1} parent=91 // pred_check_branch
          %3975 = sbr.rel (%p3973) target = $region108
        $region107: #{tpu_custom_call.1} parent=91 // pred_region
          %3977 = vsyncadd [#allocation5], 0
          %s3978 = sshll.u32 [#allocation4], 4
          %s3979 = int_to_ptr.vmem [resolvable:$true] %s3978
          %s3980 = sshll.u32 %s18, 4
          %s3981 = int_to_ptr.hbm [resolvable:$true] %s3980
          %3986 = dma.vmem_to_hbm [thread:$0]  %s3979, 512, %s3981, [#allocation5], 128, 128, 8
        $region108: #{tpu_custom_call.1} parent=91 // pred_fallthru
          _
        // Predicated region
        $region109: #{tpu_custom_call.1} parent=91 // pred_check
          %p3987 = pneg %p481
        $region110: #{tpu_custom_call.1} parent=91 // pred_check_branch
          %3989 = sbr.rel (%p3987) target = $region112
        $region111: #{tpu_custom_call.1} parent=91 // pred_region
          %3991 = dma.done [#allocation5], 512
        $region112: #{tpu_custom_call.1} parent=91 // pred_fallthru
          _
      $region92: #{tpu_custom_call.1} parent=5 // pred_fallthru
        _
      %p3992 = scmp.le.s32.totalorder 2, %s25
      // Predicated region
      $region113: #{tpu_custom_call.1} parent=5 // pred_check
        %p3993 = pneg %p3992
      $region114: #{tpu_custom_call.1} parent=5 // pred_check_branch
        %3995 = sbr.rel (%p3993) target = $region116
      $region115: #{tpu_custom_call.1} parent=5 // pred_region
        %s3996 = ssub.s32 %s25, 2
      $region116: #{tpu_custom_call.1} parent=5 // pred_fallthru
        _
    $region6: #{tpu_custom_call.1} parent=1 // loop_footer
      %s29 = sadd.s32 1, %s25
    $region7: #{tpu_custom_call.1} parent=1 // loop_footer_branch
      %24 = sbr.rel target = $region3
    $region8: #{tpu_custom_call.1} parent=1 // loop_exit
      _
    %3997 = vsyncpa [#allocation5], 1
    %s3998 = scalar_lea.sflag [#allocation5], 1
    %3999 = vsyncpa %s3998, 1

</llo_original>
